<compile_context>
chip_gen: v6e
topology: v6e:2x2x1
jax: 0.10.0
libtpu: 0.0.40
codegen_flags: <defaults>
</compile_context>

<pallas_src>
import jax
import jax.numpy as jnp
from jax.experimental import pallas as pl
from jax.experimental.pallas import tpu as pltpu


def _shallow_cnn_kernel(x_ref, w1_ref, b1_ref, w2_ref, b2_ref, o_ref,
                        xp1_scr, xp2_scr):
    # x_ref:  (1, H, W, Cin)          one batch element, NHWC, unpadded
    # w1_ref: (9*Cin, Cmid)           conv1 taps (dy,dx,cin rows), BN scale folded
    # b1_ref: (1, Cmid)               folded conv1 bias + BN shift
    # w2_ref: (9*Cmid, Cout)          conv2 taps, BN scale folded
    # b2_ref: (1, Cout)
    # o_ref:  (1, H//4, (W//4)*Cout)  lane-dense output slab
    # xp1_scr:(H+2, W+2, Cin)         VMEM scratch, zero-padded input
    # xp2_scr:(H//2+2, W//2+2, Cmid)  VMEM scratch, zero-padded block-1 output
    _, H, W, Cin = x_ref.shape
    Cmid = w1_ref.shape[1]
    Cout = w2_ref.shape[1]
    H2, W2 = H // 2, W // 2
    H4, W4 = H2 // 2, W2 // 2

    def im2col(xpad_ref, Ho, Wo):
        # (Ho+2, Wo+2, C) padded map -> (Ho*Wo, 9*C) patch matrix; column order
        # (dy, dx, c) matches the folded weight layout built in the wrapper.
        xp = xpad_ref[...]
        C = xp.shape[-1]
        taps = [xp[dy:dy + Ho, dx:dx + Wo, :]        # static shifted views
                for dy in range(3) for dx in range(3)]
        return jnp.concatenate(taps, axis=-1).reshape(Ho * Wo, 9 * C)

    def maxpool2x2(a, Ho, Wo, C):
        # a: (2*Ho*2*Wo, C), rows in (h, w) row-major order -> (Ho, Wo, C).
        a5 = a.reshape(Ho, 2, Wo, 2, C)
        return jnp.maximum(
            jnp.maximum(a5[:, 0, :, 0, :], a5[:, 0, :, 1, :]),
            jnp.maximum(a5[:, 1, :, 0, :], a5[:, 1, :, 1, :]))

    # ---- block 1: pad -> conv (im2col matmul) -> bias -> tanh -> 2x2 pool ----
    xp1_scr[...] = jnp.zeros_like(xp1_scr)
    xp1_scr[1:H + 1, 1:W + 1, :] = x_ref[0]
    p1 = im2col(xp1_scr, H, W)                                   # (H*W, 9*Cin)
    a1 = jnp.tanh(jnp.dot(p1, w1_ref[...],
                          preferred_element_type=jnp.float32) + b1_ref[...])
    x1 = maxpool2x2(a1, H2, W2, Cmid)                            # (H2, W2, Cmid)

    # ---- block 2: block-1 output never leaves VMEM ---------------------------
    xp2_scr[...] = jnp.zeros_like(xp2_scr)
    xp2_scr[1:H2 + 1, 1:W2 + 1, :] = x1
    p2 = im2col(xp2_scr, H2, W2)                                 # (H2*W2, 9*Cmid)
    a2 = jnp.tanh(jnp.dot(p2, w2_ref[...],
                          preferred_element_type=jnp.float32) + b2_ref[...])
    x2 = maxpool2x2(a2, H4, W4, Cout)                            # (H4, W4, Cout)

    # Lane-dense store: last dim W4*Cout (= 128 for the default config).
    o_ref[0] = x2.reshape(H4, W4 * Cout)


def _fold_conv_bn(w_oihw, b_conv, gamma, beta, rmean, rvar, eps=1e-5):
    """Fold inference-mode BatchNorm into the conv; return im2col-layout weight."""
    Cout, Cin = w_oihw.shape[0], w_oihw.shape[1]
    scale = gamma / jnp.sqrt(rvar + eps)                         # (Cout,)
    w = jnp.transpose(w_oihw, (2, 3, 1, 0)) * scale              # (3,3,Cin,Cout)
    w = w.reshape(9 * Cin, Cout).astype(jnp.float32)             # rows: (dy,dx,cin)
    bias = (beta + (b_conv - rmean) * scale).astype(jnp.float32)
    return w, bias.reshape(1, Cout)


def shallow_cnn_forward(x_nchw, params):
    """ShallowCNN.forward. Input/output are NCHW (PyTorch convention)."""
    N, Cin, H, W = x_nchw.shape
    assert H % 4 == 0 and W % 4 == 0, "spatial dims must be divisible by 4"

    w1, b1 = _fold_conv_bn(*params["block1"])
    w2, b2 = _fold_conv_bn(*params["block2"])
    Cmid, Cout = w1.shape[1], w2.shape[1]
    H2, W2 = H // 2, W // 2
    H4, W4 = H2 // 2, W2 // 2

    x_nhwc = jnp.transpose(x_nchw, (0, 2, 3, 1)).astype(jnp.float32)

    out = pl.pallas_call(
        _shallow_cnn_kernel,
        out_shape=jax.ShapeDtypeStruct((N, H4, W4 * Cout), jnp.float32),
        grid_spec=pltpu.PrefetchScalarGridSpec(
            num_scalar_prefetch=0,
            grid=(N,),                                  # parallel over batch (2 TCs on v7x)
            in_specs=[
                pl.BlockSpec((1, H, W, Cin), lambda b: (b, 0, 0, 0)),
                pl.BlockSpec((9 * Cin, Cmid), lambda b: (0, 0)),
                pl.BlockSpec((1, Cmid), lambda b: (0, 0)),
                pl.BlockSpec((9 * Cmid, Cout), lambda b: (0, 0)),
                pl.BlockSpec((1, Cout), lambda b: (0, 0)),
            ],
            out_specs=pl.BlockSpec((1, H4, W4 * Cout), lambda b: (b, 0, 0)),
            scratch_shapes=[
                pltpu.VMEM((H + 2, W + 2, Cin), jnp.float32),      # padded input
                pltpu.VMEM((H2 + 2, W2 + 2, Cmid), jnp.float32),   # padded block-1 out
            ],
        ),
        compiler_params=pltpu.CompilerParams(
            dimension_semantics=("parallel",)),
    )(x_nhwc, w1, b1, w2, b2)

    # (N, H4, W4*Cout) -> (N, H4, W4, Cout) -> NCHW
    return jnp.transpose(out.reshape(N, H4, W4, Cout), (0, 3, 1, 2))


# ------------------------- pure-JAX reference -------------------------

def _ref_block(x_nhwc, w_oihw, b, gamma, beta, rmean, rvar, eps=1e-5):
    w_hwio = jnp.transpose(w_oihw, (2, 3, 1, 0))
    y = jax.lax.conv_general_dilated(
        x_nhwc, w_hwio, window_strides=(1, 1), padding="SAME",
        dimension_numbers=("NHWC", "HWIO", "NHWC"))
    y = y + b
    y = gamma * (y - rmean) / jnp.sqrt(rvar + eps) + beta
    y = jnp.tanh(y)
    return jax.lax.reduce_window(y, -jnp.inf, jax.lax.max,
                                 (1, 2, 2, 1), (1, 2, 2, 1), "VALID")


def _ref_forward(x_nchw, params):
    x = jnp.transpose(x_nchw, (0, 2, 3, 1))
    x1 = _ref_block(x, *params["block1"])
    x2 = _ref_block(x1, *params["block2"])
    return jnp.transpose(x2, (0, 3, 1, 2))


# ------------------------------ main ----------------------------------

if __name__ == "__main__":
    ch_in, ch_mid, model_dim = 4, 8, 32
    N, H, W = 2, 16, 16

    key = jax.random.PRNGKey(0)
    ks = jax.random.split(key, 7)

    def bn_params(k, c):
        k1, k2, k3, k4 = jax.random.split(k, 4)
        gamma = 1.0 + 0.1 * jax.random.normal(k1, (c,), jnp.float32)
        beta = 0.05 * jax.random.normal(k2, (c,), jnp.float32)
        rmean = 0.02 * jax.random.normal(k3, (c,), jnp.float32)
        rvar = 1.0 + 0.1 * jnp.abs(jax.random.normal(k4, (c,), jnp.float32))
        return gamma, beta, rmean, rvar

    # conv1: Conv2d(ch_in, ch_mid, 3, 1, 1) + BN(ch_mid)
    w1 = 0.1 * jax.random.normal(ks[0], (ch_mid, ch_in, 3, 3), jnp.float32)
    b1 = 0.05 * jax.random.normal(ks[1], (ch_mid,), jnp.float32)
    g1, be1, m1, v1 = bn_params(ks[2], ch_mid)
    # conv2: Conv2d(ch_mid, model_dim, 3, 1, 1) + BN(model_dim)
    w2 = 0.1 * jax.random.normal(ks[3], (model_dim, ch_mid, 3, 3), jnp.float32)
    b2 = 0.05 * jax.random.normal(ks[4], (model_dim,), jnp.float32)
    g2, be2, m2, v2 = bn_params(ks[5], model_dim)

    params = {"block1": (w1, b1, g1, be1, m1, v1),
              "block2": (w2, b2, g2, be2, m2, v2)}

    x = jax.random.normal(ks[6], (N, ch_in, H, W), jnp.float32)  # NCHW input

    out = jax.block_until_ready(shallow_cnn_forward(x, params))
    assert out.shape == (N, model_dim, H // 4, W // 4), out.shape

    ref = jax.block_until_ready(_ref_forward(x, params))
    assert jnp.allclose(out, ref, atol=1e-4, rtol=1e-4), \
        float(jnp.max(jnp.abs(out - ref)))

    print("KERNEL_OK")
</pallas_src>

<mosaic_0001>
module attributes {stable_mosaic.version = 11 : i64} {
  func.func @_shallow_cnn_kernel(%arg0: i32, %arg1: memref<1x16x16x4xf32, #tpu.memory_space<vmem>>, %arg2: memref<36x8xf32, #tpu.memory_space<vmem>>, %arg3: memref<1x8xf32, #tpu.memory_space<vmem>>, %arg4: memref<72x32xf32, #tpu.memory_space<vmem>>, %arg5: memref<1x32xf32, #tpu.memory_space<vmem>>, %arg6: memref<1x4x128xf32, #tpu.memory_space<vmem>>, %arg7: memref<18x18x4xf32, #tpu.memory_space<vmem>>, %arg8: memref<10x10x8xf32, #tpu.memory_space<vmem>>) attributes {dimension_semantics = [#tpu.dimension_semantics<parallel>], iteration_bounds = array<i64: 2>, scalar_prefetch = 0 : i64, scratch_operands = 2 : i64, tpu.core_type = #tpu.core_type<tc>, window_params = [{transform_indices = @transform_0, window_bounds = array<i64: 1, 16, 16, 4>}, {pipeline_mode = #tpu.pipeline_mode<synchronous>, transform_indices = @transform_1, window_bounds = array<i64: 36, 8>}, {pipeline_mode = #tpu.pipeline_mode<synchronous>, transform_indices = @transform_2, window_bounds = array<i64: 1, 8>}, {pipeline_mode = #tpu.pipeline_mode<synchronous>, transform_indices = @transform_3, window_bounds = array<i64: 72, 32>}, {pipeline_mode = #tpu.pipeline_mode<synchronous>, transform_indices = @transform_4, window_bounds = array<i64: 1, 32>}, {transform_indices = @transform_5, window_bounds = array<i64: 1, 4, 128>}]} {
    %cst = arith.constant 0.000000e+00 : f32
    %0 = vector.broadcast %cst : f32 to vector<18x18x4xf32>
    %c0 = arith.constant 0 : index
    %c0_0 = arith.constant 0 : index
    %c0_1 = arith.constant 0 : index
    %1 = vector.load %arg7[%c0, %c0_0, %c0_1] : memref<18x18x4xf32, #tpu.memory_space<vmem>>, vector<18x18x4xf32>
    tpu.vector_store %arg7[%c0, %c0_0, %c0_1], %0 {strides = array<i32>} : memref<18x18x4xf32, #tpu.memory_space<vmem>>, vector<18x18x4xf32>,
    %c0_2 = arith.constant 0 : index
    %c0_3 = arith.constant 0 : index
    %c0_4 = arith.constant 0 : index
    %c0_5 = arith.constant 0 : index
    %2 = vector.load %arg1[%c0_2, %c0_3, %c0_4, %c0_5] : memref<1x16x16x4xf32, #tpu.memory_space<vmem>>, vector<1x16x16x4xf32>
    %3 = vector.shape_cast %2 : vector<1x16x16x4xf32> to vector<16x16x4xf32>
    %c1 = arith.constant 1 : index
    %c1_6 = arith.constant 1 : index
    %c0_7 = arith.constant 0 : index
    %4 = vector.load %arg7[%c1, %c1_6, %c0_7] : memref<18x18x4xf32, #tpu.memory_space<vmem>>, vector<16x16x4xf32>
    tpu.vector_store %arg7[%c1, %c1_6, %c0_7], %3 {strides = array<i32>} : memref<18x18x4xf32, #tpu.memory_space<vmem>>, vector<16x16x4xf32>,
    %c0_8 = arith.constant 0 : index
    %c0_9 = arith.constant 0 : index
    %c0_10 = arith.constant 0 : index
    %5 = vector.load %arg7[%c0_8, %c0_9, %c0_10] : memref<18x18x4xf32, #tpu.memory_space<vmem>>, vector<18x18x4xf32>
    %6 = vector.extract_strided_slice %5 {offsets = [0, 0, 0], sizes = [16, 16, 4], strides = [1, 1, 1]} : vector<18x18x4xf32> to vector<16x16x4xf32>
    %7 = vector.extract_strided_slice %5 {offsets = [0, 1, 0], sizes = [16, 16, 4], strides = [1, 1, 1]} : vector<18x18x4xf32> to vector<16x16x4xf32>
    %8 = vector.extract_strided_slice %5 {offsets = [0, 2, 0], sizes = [16, 16, 4], strides = [1, 1, 1]} : vector<18x18x4xf32> to vector<16x16x4xf32>
    %9 = vector.extract_strided_slice %5 {offsets = [1, 0, 0], sizes = [16, 16, 4], strides = [1, 1, 1]} : vector<18x18x4xf32> to vector<16x16x4xf32>
    %10 = vector.extract_strided_slice %5 {offsets = [1, 1, 0], sizes = [16, 16, 4], strides = [1, 1, 1]} : vector<18x18x4xf32> to vector<16x16x4xf32>
    %11 = vector.extract_strided_slice %5 {offsets = [1, 2, 0], sizes = [16, 16, 4], strides = [1, 1, 1]} : vector<18x18x4xf32> to vector<16x16x4xf32>
    %12 = vector.extract_strided_slice %5 {offsets = [2, 0, 0], sizes = [16, 16, 4], strides = [1, 1, 1]} : vector<18x18x4xf32> to vector<16x16x4xf32>
    %13 = vector.extract_strided_slice %5 {offsets = [2, 1, 0], sizes = [16, 16, 4], strides = [1, 1, 1]} : vector<18x18x4xf32> to vector<16x16x4xf32>
    %14 = vector.extract_strided_slice %5 {offsets = [2, 2, 0], sizes = [16, 16, 4], strides = [1, 1, 1]} : vector<18x18x4xf32> to vector<16x16x4xf32>
    %15 = tpu.concatenate %6, %7, %8, %9, %10, %11, %12, %13, %14 in 2 : vector<16x16x4xf32>, vector<16x16x4xf32>, vector<16x16x4xf32>, vector<16x16x4xf32>, vector<16x16x4xf32>, vector<16x16x4xf32>, vector<16x16x4xf32>, vector<16x16x4xf32>, vector<16x16x4xf32> -> vector<16x16x36xf32>
    %16 = vector.shape_cast %15 : vector<16x16x36xf32> to vector<256x36xf32>
    %c0_11 = arith.constant 0 : index
    %c0_12 = arith.constant 0 : index
    %17 = vector.load %arg2[%c0_11, %c0_12] : memref<36x8xf32, #tpu.memory_space<vmem>>, vector<36x8xf32>
    %cst_13 = arith.constant dense<0.000000e+00> : vector<256x8xf32>
    %18 = tpu.matmul %16, %17, %cst_13 {dimension_numbers = #tpu.dot_dimension_numbers<[1], [0], [0], [1], [0, 0, 1, 1], [], []>} : vector<256x36xf32>, vector<36x8xf32>, vector<256x8xf32> -> vector<256x8xf32>
    %c0_14 = arith.constant 0 : index
    %c0_15 = arith.constant 0 : index
    %19 = vector.load %arg3[%c0_14, %c0_15] : memref<1x8xf32, #tpu.memory_space<vmem>>, vector<1x8xf32>
    %20 = vector.broadcast %19 : vector<1x8xf32> to vector<256x8xf32>
    %21 = arith.addf %18, %20 : vector<256x8xf32>
    %22 = math.tanh %21 : vector<256x8xf32>
    %23 = vector.shape_cast %22 : vector<256x8xf32> to vector<8x2x8x2x8xf32>
    %24 = vector.extract_strided_slice %23 {offsets = [0, 0, 0, 0, 0], sizes = [8, 1, 8, 1, 8], strides = [1, 1, 1, 1, 1]} : vector<8x2x8x2x8xf32> to vector<8x1x8x1x8xf32>
    %25 = vector.shape_cast %24 : vector<8x1x8x1x8xf32> to vector<8x8x8xf32>
    %26 = vector.extract_strided_slice %23 {offsets = [0, 0, 0, 1, 0], sizes = [8, 1, 8, 1, 8], strides = [1, 1, 1, 1, 1]} : vector<8x2x8x2x8xf32> to vector<8x1x8x1x8xf32>
    %27 = vector.shape_cast %26 : vector<8x1x8x1x8xf32> to vector<8x8x8xf32>
    %28 = arith.maximumf %25, %27 : vector<8x8x8xf32>
    %29 = vector.extract_strided_slice %23 {offsets = [0, 1, 0, 0, 0], sizes = [8, 1, 8, 1, 8], strides = [1, 1, 1, 1, 1]} : vector<8x2x8x2x8xf32> to vector<8x1x8x1x8xf32>
    %30 = vector.shape_cast %29 : vector<8x1x8x1x8xf32> to vector<8x8x8xf32>
    %31 = vector.extract_strided_slice %23 {offsets = [0, 1, 0, 1, 0], sizes = [8, 1, 8, 1, 8], strides = [1, 1, 1, 1, 1]} : vector<8x2x8x2x8xf32> to vector<8x1x8x1x8xf32>
    %32 = vector.shape_cast %31 : vector<8x1x8x1x8xf32> to vector<8x8x8xf32>
    %33 = arith.maximumf %30, %32 : vector<8x8x8xf32>
    %34 = arith.maximumf %28, %33 : vector<8x8x8xf32>
    %cst_16 = arith.constant 0.000000e+00 : f32
    %35 = vector.broadcast %cst_16 : f32 to vector<10x10x8xf32>
    %c0_17 = arith.constant 0 : index
    %c0_18 = arith.constant 0 : index
    %c0_19 = arith.constant 0 : index
    %36 = vector.load %arg8[%c0_17, %c0_18, %c0_19] : memref<10x10x8xf32, #tpu.memory_space<vmem>>, vector<10x10x8xf32>
    tpu.vector_store %arg8[%c0_17, %c0_18, %c0_19], %35 {strides = array<i32>} : memref<10x10x8xf32, #tpu.memory_space<vmem>>, vector<10x10x8xf32>,
    %c1_20 = arith.constant 1 : index
    %c1_21 = arith.constant 1 : index
    %c0_22 = arith.constant 0 : index
    %37 = vector.load %arg8[%c1_20, %c1_21, %c0_22] : memref<10x10x8xf32, #tpu.memory_space<vmem>>, vector<8x8x8xf32>
    tpu.vector_store %arg8[%c1_20, %c1_21, %c0_22], %34 {strides = array<i32>} : memref<10x10x8xf32, #tpu.memory_space<vmem>>, vector<8x8x8xf32>,
    %c0_23 = arith.constant 0 : index
    %c0_24 = arith.constant 0 : index
    %c0_25 = arith.constant 0 : index
    %38 = vector.load %arg8[%c0_23, %c0_24, %c0_25] : memref<10x10x8xf32, #tpu.memory_space<vmem>>, vector<10x10x8xf32>
    %39 = vector.extract_strided_slice %38 {offsets = [0, 0, 0], sizes = [8, 8, 8], strides = [1, 1, 1]} : vector<10x10x8xf32> to vector<8x8x8xf32>
    %40 = vector.extract_strided_slice %38 {offsets = [0, 1, 0], sizes = [8, 8, 8], strides = [1, 1, 1]} : vector<10x10x8xf32> to vector<8x8x8xf32>
    %41 = vector.extract_strided_slice %38 {offsets = [0, 2, 0], sizes = [8, 8, 8], strides = [1, 1, 1]} : vector<10x10x8xf32> to vector<8x8x8xf32>
    %42 = vector.extract_strided_slice %38 {offsets = [1, 0, 0], sizes = [8, 8, 8], strides = [1, 1, 1]} : vector<10x10x8xf32> to vector<8x8x8xf32>
    %43 = vector.extract_strided_slice %38 {offsets = [1, 1, 0], sizes = [8, 8, 8], strides = [1, 1, 1]} : vector<10x10x8xf32> to vector<8x8x8xf32>
    %44 = vector.extract_strided_slice %38 {offsets = [1, 2, 0], sizes = [8, 8, 8], strides = [1, 1, 1]} : vector<10x10x8xf32> to vector<8x8x8xf32>
    %45 = vector.extract_strided_slice %38 {offsets = [2, 0, 0], sizes = [8, 8, 8], strides = [1, 1, 1]} : vector<10x10x8xf32> to vector<8x8x8xf32>
    %46 = vector.extract_strided_slice %38 {offsets = [2, 1, 0], sizes = [8, 8, 8], strides = [1, 1, 1]} : vector<10x10x8xf32> to vector<8x8x8xf32>
    %47 = vector.extract_strided_slice %38 {offsets = [2, 2, 0], sizes = [8, 8, 8], strides = [1, 1, 1]} : vector<10x10x8xf32> to vector<8x8x8xf32>
    %48 = tpu.concatenate %39, %40, %41, %42, %43, %44, %45, %46, %47 in 2 : vector<8x8x8xf32>, vector<8x8x8xf32>, vector<8x8x8xf32>, vector<8x8x8xf32>, vector<8x8x8xf32>, vector<8x8x8xf32>, vector<8x8x8xf32>, vector<8x8x8xf32>, vector<8x8x8xf32> -> vector<8x8x72xf32>
    %49 = vector.shape_cast %48 : vector<8x8x72xf32> to vector<64x72xf32>
    %c0_26 = arith.constant 0 : index
    %c0_27 = arith.constant 0 : index
    %50 = vector.load %arg4[%c0_26, %c0_27] : memref<72x32xf32, #tpu.memory_space<vmem>>, vector<72x32xf32>
    %cst_28 = arith.constant dense<0.000000e+00> : vector<64x32xf32>
    %51 = tpu.matmul %49, %50, %cst_28 {dimension_numbers = #tpu.dot_dimension_numbers<[1], [0], [0], [1], [0, 0, 1, 1], [], []>} : vector<64x72xf32>, vector<72x32xf32>, vector<64x32xf32> -> vector<64x32xf32>
    %c0_29 = arith.constant 0 : index
    %c0_30 = arith.constant 0 : index
    %52 = vector.load %arg5[%c0_29, %c0_30] : memref<1x32xf32, #tpu.memory_space<vmem>>, vector<1x32xf32>
    %53 = vector.broadcast %52 : vector<1x32xf32> to vector<64x32xf32>
    %54 = arith.addf %51, %53 : vector<64x32xf32>
    %55 = math.tanh %54 : vector<64x32xf32>
    %56 = vector.shape_cast %55 : vector<64x32xf32> to vector<4x2x4x2x32xf32>
    %57 = vector.extract_strided_slice %56 {offsets = [0, 0, 0, 0, 0], sizes = [4, 1, 4, 1, 32], strides = [1, 1, 1, 1, 1]} : vector<4x2x4x2x32xf32> to vector<4x1x4x1x32xf32>
    %58 = vector.shape_cast %57 : vector<4x1x4x1x32xf32> to vector<4x4x32xf32>
    %59 = vector.extract_strided_slice %56 {offsets = [0, 0, 0, 1, 0], sizes = [4, 1, 4, 1, 32], strides = [1, 1, 1, 1, 1]} : vector<4x2x4x2x32xf32> to vector<4x1x4x1x32xf32>
    %60 = vector.shape_cast %59 : vector<4x1x4x1x32xf32> to vector<4x4x32xf32>
    %61 = arith.maximumf %58, %60 : vector<4x4x32xf32>
    %62 = vector.extract_strided_slice %56 {offsets = [0, 1, 0, 0, 0], sizes = [4, 1, 4, 1, 32], strides = [1, 1, 1, 1, 1]} : vector<4x2x4x2x32xf32> to vector<4x1x4x1x32xf32>
    %63 = vector.shape_cast %62 : vector<4x1x4x1x32xf32> to vector<4x4x32xf32>
    %64 = vector.extract_strided_slice %56 {offsets = [0, 1, 0, 1, 0], sizes = [4, 1, 4, 1, 32], strides = [1, 1, 1, 1, 1]} : vector<4x2x4x2x32xf32> to vector<4x1x4x1x32xf32>
    %65 = vector.shape_cast %64 : vector<4x1x4x1x32xf32> to vector<4x4x32xf32>
    %66 = arith.maximumf %63, %65 : vector<4x4x32xf32>
    %67 = arith.maximumf %61, %66 : vector<4x4x32xf32>
    %68 = vector.shape_cast %67 : vector<4x4x32xf32> to vector<4x128xf32>
    %c0_31 = arith.constant 0 : index
    %c0_32 = arith.constant 0 : index
    %c0_33 = arith.constant 0 : index
    %69 = vector.load %arg6[%c0_31, %c0_32, %c0_33] : memref<1x4x128xf32, #tpu.memory_space<vmem>>, vector<1x4x128xf32>
    %70 = vector.shape_cast %69 : vector<1x4x128xf32> to vector<4x128xf32>
    %71 = vector.shape_cast %68 : vector<4x128xf32> to vector<1x4x128xf32>
    tpu.vector_store %arg6[%c0_31, %c0_32, %c0_33], %71 {strides = array<i32>} : memref<1x4x128xf32, #tpu.memory_space<vmem>>, vector<1x4x128xf32>,
    return
  }
  func.func @transform_0(%arg0: i32) -> (i32, i32, i32, i32) {
    %c0_i32 = arith.constant 0 : i32
    %c0_i32_0 = arith.constant 0 : i32
    %c0_i32_1 = arith.constant 0 : i32
    %c0_i32_2 = arith.constant 0 : i32
    return %arg0, %c0_i32, %c0_i32_0, %c0_i32_1 : i32, i32, i32, i32
  }
  func.func @transform_1(%arg0: i32) -> (i32, i32) {
    %c0_i32 = arith.constant 0 : i32
    %c0_i32_0 = arith.constant 0 : i32
    %c0_i32_1 = arith.constant 0 : i32
    return %c0_i32, %c0_i32_0 : i32, i32
  }
  func.func @transform_2(%arg0: i32) -> (i32, i32) {
    %c0_i32 = arith.constant 0 : i32
    %c0_i32_0 = arith.constant 0 : i32
    %c0_i32_1 = arith.constant 0 : i32
    return %c0_i32, %c0_i32_0 : i32, i32
  }
  func.func @transform_3(%arg0: i32) -> (i32, i32) {
    %c0_i32 = arith.constant 0 : i32
    %c0_i32_0 = arith.constant 0 : i32
    %c0_i32_1 = arith.constant 0 : i32
    return %c0_i32, %c0_i32_0 : i32, i32
  }
  func.func @transform_4(%arg0: i32) -> (i32, i32) {
    %c0_i32 = arith.constant 0 : i32
    %c0_i32_0 = arith.constant 0 : i32
    %c0_i32_1 = arith.constant 0 : i32
    return %c0_i32, %c0_i32_0 : i32, i32
  }
  func.func @transform_5(%arg0: i32) -> (i32, i32, i32) {
    %c0_i32 = arith.constant 0 : i32
    %c0_i32_0 = arith.constant 0 : i32
    %c0_i32_1 = arith.constant 0 : i32
    return %arg0, %c0_i32, %c0_i32_0 : i32, i32, i32
  }
}

</mosaic_0001>

<llo_original>
// kernel: tpu_custom_call.1
$region0: #{tpu_custom_call.1}
  #allocation0 [shape = 'u32[]', space=smem, size = 0x4, offset = 0x4, fixed_abs, tag = 'smem constant byte address 0x4 - core index']
  #allocation1 [shape = 'u32[144,128]{1,0:T(1,128)}', space=vmem, size = 0x12000, scoped, tag = 'internal scratch']
  #allocation2 [shape = 'f32[18,18,4]{2,1,0:T(8,128)}', space=vmem, size = 0x36000, scoped, tag = 'scratch operand']
  #allocation3 [shape = 'f32[10,10,8]{2,1,0:T(8,128)}', space=vmem, size = 0x14000, scoped, tag = 'scratch operand']
  %s0 = inlined_call_operand.vmem [shape: f32[2,16,16,4], index: 0, kind: input, shape index: {}]
  %s1 = inlined_call_operand.vmem [shape: f32[36,8], index: 1, kind: input, shape index: {}]
  %s2 = inlined_call_operand.vmem [shape: f32[1,8], index: 2, kind: input, shape index: {}]
  %s3 = inlined_call_operand.vmem [shape: f32[72,32], index: 3, kind: input, shape index: {}]
  %s4 = inlined_call_operand.vmem [shape: f32[1,32], index: 4, kind: input, shape index: {}]
  %s5 = inlined_call_operand.hbm [shape: f32[2,4,128], index: 5, kind: output, shape index: {}]
  %s6 = sld [smem:[#allocation0]]
  $region53: #{tpu_custom_call.1} parent=0
    _
  %s8 = ssub.s32 1, %s6
  %s9 = scalar_select 0, %s8, %s6
  $region1: #{tpu_custom_call.1} parent=0
    #allocation4 [shape = 'u8[4096]{0}', space=vmem, size = 0x1000, scoped, tag = 'output window, operand 0']
    #allocation5 [shape = 's32[2]{0}', space=sflag, size = 0x8, scoped, tag = 'scoped memory for tpu_custom_call.1']
    %10 = vsyncpa [#allocation5], 0
    %s11 = scalar_lea.sflag [#allocation5], 1
    %12 = vsyncpa %s11, 0
    loop: start=0, step=1, limit=4
    $region2: #{tpu_custom_call.1} parent=1 // loop_pre_header
      _
    $region3: #{tpu_custom_call.1} parent=1 // loop_header
      %s14 = sphi 0, %s18
      %p15 = scmp.ge.s32.totalorder %s14, 4
      %s24 = sphi 0, %s26
      %s27 = sphi 0, %s24
      %s28 = sphi 0, %s27
      %s44 = sphi 0, %s28
      %s48 = sphi 0, %s48
      %s50 = sphi 0, %s48
      %s51 = sphi 0, %s50
      %s65 = sphi 0, %s51
      %s69 = sphi 0, %s69
      %s71 = sphi 0, %s69
      %s72 = sphi 0, %s71
      %s86 = sphi 0, %s72
      %s90 = sphi 0, %s90
      %s92 = sphi 0, %s90
      %s93 = sphi 0, %s92
      %s107 = sphi 0, %s93
      %s111 = sphi 0, %s111
      %s113 = sphi 0, %s111
      %s114 = sphi 0, %s113
      %s128 = sphi 0, %s114
      %s134 = sphi 0, %s136
      %s137 = sphi 0, %s134
      %s138 = sphi 0, %s137
      %s154 = sphi 0, %s138
    $region4: #{tpu_custom_call.1} parent=1 // loop_header_branch
      %17 = sbr.rel (%p15) target = $region8
    $region5: #{tpu_custom_call.1} parent=1 // loop_body
      %s19 = ssub.s32 %s14, 1
      %s20 = ssub.s32 %s14, 2
      %s21 = sadd.s32 %s14, 1
      %s22 = ssub.s32 %s14, %s21
      %p23 = scmp.eq.s32.totalorder %s22, 0
      %s25 = sadd.s32 %s24, 1
      %s26 = scalar_select %p23, %s24, %s25
      %p29 = pneg %p23
      %p30 = scmp.eq.s32.totalorder %s14, 1
      %p31 = por %p29, %p30
      %p32 = scmp.ne.s32.totalorder %s24, %s27
      %p33 = scmp.eq.s32.totalorder %s14, 0
      %p34 = por %p32, %p33
      %p35 = scmp.ne.s32.totalorder %s24, %s27
      %p36 = scmp.eq.s32.totalorder %s19, 1
      %p37 = por %p35, %p36
      %p38 = scmp.ne.s32.totalorder %s27, %s28
      %p39 = scmp.eq.s32.totalorder %s19, 0
      %p40 = por %p38, %p39
      %p41 = scmp.ne.s32.totalorder %s27, %s28
      %p42 = scmp.eq.s32.totalorder %s20, 1
      %p43 = por %p41, %p42
      %p45 = scmp.ne.s32.totalorder %s28, %s44
      %p46 = scmp.eq.s32.totalorder %s20, 0
      %p47 = por %p45, %p46
      %s49 = sadd.s32 %s48, 1
      %p52 = scmp.eq.s32.totalorder %s14, 1
      %p53 = scmp.ne.s32.totalorder %s48, %s50
      %p54 = scmp.eq.s32.totalorder %s14, 0
      %p55 = por %p53, %p54
      %p56 = scmp.ne.s32.totalorder %s48, %s50
      %p57 = scmp.eq.s32.totalorder %s19, 1
      %p58 = por %p56, %p57
      %p59 = scmp.ne.s32.totalorder %s50, %s51
      %p60 = scmp.eq.s32.totalorder %s19, 0
      %p61 = por %p59, %p60
      %p62 = scmp.ne.s32.totalorder %s50, %s51
      %p63 = scmp.eq.s32.totalorder %s20, 1
      %p64 = por %p62, %p63
      %p66 = scmp.ne.s32.totalorder %s51, %s65
      %p67 = scmp.eq.s32.totalorder %s20, 0
      %p68 = por %p66, %p67
      %s70 = sadd.s32 %s69, 1
      %p73 = scmp.eq.s32.totalorder %s14, 1
      %p74 = scmp.ne.s32.totalorder %s69, %s71
      %p75 = scmp.eq.s32.totalorder %s14, 0
      %p76 = por %p74, %p75
      %p77 = scmp.ne.s32.totalorder %s69, %s71
      %p78 = scmp.eq.s32.totalorder %s19, 1
      %p79 = por %p77, %p78
      %p80 = scmp.ne.s32.totalorder %s71, %s72
      %p81 = scmp.eq.s32.totalorder %s19, 0
      %p82 = por %p80, %p81
      %p83 = scmp.ne.s32.totalorder %s71, %s72
      %p84 = scmp.eq.s32.totalorder %s20, 1
      %p85 = por %p83, %p84
      %p87 = scmp.ne.s32.totalorder %s72, %s86
      %p88 = scmp.eq.s32.totalorder %s20, 0
      %p89 = por %p87, %p88
      %s91 = sadd.s32 %s90, 1
      %p94 = scmp.eq.s32.totalorder %s14, 1
      %p95 = scmp.ne.s32.totalorder %s90, %s92
      %p96 = scmp.eq.s32.totalorder %s14, 0
      %p97 = por %p95, %p96
      %p98 = scmp.ne.s32.totalorder %s90, %s92
      %p99 = scmp.eq.s32.totalorder %s19, 1
      %p100 = por %p98, %p99
      %p101 = scmp.ne.s32.totalorder %s92, %s93
      %p102 = scmp.eq.s32.totalorder %s19, 0
      %p103 = por %p101, %p102
      %p104 = scmp.ne.s32.totalorder %s92, %s93
      %p105 = scmp.eq.s32.totalorder %s20, 1
      %p106 = por %p104, %p105
      %p108 = scmp.ne.s32.totalorder %s93, %s107
      %p109 = scmp.eq.s32.totalorder %s20, 0
      %p110 = por %p108, %p109
      %s112 = sadd.s32 %s111, 1
      %p115 = scmp.eq.s32.totalorder %s14, 1
      %p116 = scmp.ne.s32.totalorder %s111, %s113
      %p117 = scmp.eq.s32.totalorder %s14, 0
      %p118 = por %p116, %p117
      %p119 = scmp.ne.s32.totalorder %s111, %s113
      %p120 = scmp.eq.s32.totalorder %s19, 1
      %p121 = por %p119, %p120
      %p122 = scmp.ne.s32.totalorder %s113, %s114
      %p123 = scmp.eq.s32.totalorder %s19, 0
      %p124 = por %p122, %p123
      %p125 = scmp.ne.s32.totalorder %s113, %s114
      %p126 = scmp.eq.s32.totalorder %s20, 1
      %p127 = por %p125, %p126
      %p129 = scmp.ne.s32.totalorder %s114, %s128
      %p130 = scmp.eq.s32.totalorder %s20, 0
      %p131 = por %p129, %p130
      %s132 = ssub.s32 %s14, %s21
      %p133 = scmp.eq.s32.totalorder %s132, 0
      %s135 = sadd.s32 %s134, 1
      %s136 = scalar_select %p133, %s134, %s135
      %p139 = pneg %p133
      %p140 = scmp.eq.s32.totalorder %s14, 1
      %p141 = por %p139, %p140
      %p142 = scmp.ne.s32.totalorder %s134, %s137
      %p143 = scmp.eq.s32.totalorder %s14, 0
      %p144 = por %p142, %p143
      %p145 = scmp.ne.s32.totalorder %s134, %s137
      %p146 = scmp.eq.s32.totalorder %s19, 1
      %p147 = por %p145, %p146
      %p148 = scmp.ne.s32.totalorder %s137, %s138
      %p149 = scmp.eq.s32.totalorder %s19, 0
      %p150 = por %p148, %p149
      %p151 = scmp.ne.s32.totalorder %s137, %s138
      %p152 = scmp.eq.s32.totalorder %s20, 1
      %p153 = por %p151, %p152
      %p155 = scmp.ne.s32.totalorder %s138, %s154
      %p156 = scmp.eq.s32.totalorder %s20, 0
      %p157 = por %p155, %p156
      %p158 = scmp.le.s32.totalorder 1, %s14
      %p159 = scmp.lt.s32.totalorder %s14, 3
      %p160 = pnand %p158, %p159
      %p161 = pneg %p160
      // Predicated region
      $region9: #{tpu_custom_call.1} parent=5 // pred_check
        _
      $region10: #{tpu_custom_call.1} parent=5 // pred_check_branch
        %163 = sbr.rel (%p160) target = $region12
      $region11: #{tpu_custom_call.1} parent=5 // pred_region
        %s164 = ssub.s32 %s14, 1
        // Predicated region
        $region13: #{tpu_custom_call.1} parent=11 // pred_check
          %p165 = pneg %p61
        $region14: #{tpu_custom_call.1} parent=11 // pred_check_branch
          %167 = sbr.rel (%p165) target = $region16
        $region15: #{tpu_custom_call.1} parent=11 // pred_region
          _
        $region16: #{tpu_custom_call.1} parent=11 // pred_fallthru
          _
        // Predicated region
        $region17: #{tpu_custom_call.1} parent=11 // pred_check
          %p168 = pneg %p82
        $region18: #{tpu_custom_call.1} parent=11 // pred_check_branch
          %170 = sbr.rel (%p168) target = $region20
        $region19: #{tpu_custom_call.1} parent=11 // pred_region
          _
        $region20: #{tpu_custom_call.1} parent=11 // pred_fallthru
          _
        // Predicated region
        $region21: #{tpu_custom_call.1} parent=11 // pred_check
          %p171 = pneg %p103
        $region22: #{tpu_custom_call.1} parent=11 // pred_check_branch
          %173 = sbr.rel (%p171) target = $region24
        $region23: #{tpu_custom_call.1} parent=11 // pred_region
          _
        $region24: #{tpu_custom_call.1} parent=11 // pred_fallthru
          _
        // Predicated region
        $region25: #{tpu_custom_call.1} parent=11 // pred_check
          %p174 = pneg %p124
        $region26: #{tpu_custom_call.1} parent=11 // pred_check_branch
          %176 = sbr.rel (%p174) target = $region28
        $region27: #{tpu_custom_call.1} parent=11 // pred_region
          _
        $region28: #{tpu_custom_call.1} parent=11 // pred_fallthru
          _
      $region12: #{tpu_custom_call.1} parent=5 // pred_fallthru
        _
      %p177 = scmp.lt.s32.totalorder %s14, 2
      // Predicated region
      $region29: #{tpu_custom_call.1} parent=5 // pred_check
        %p178 = pneg %p177
      $region30: #{tpu_custom_call.1} parent=5 // pred_check_branch
        %180 = sbr.rel (%p178) target = $region32
      $region31: #{tpu_custom_call.1} parent=5 // pred_region
        // Predicated region
        $region33: #{tpu_custom_call.1} parent=31 // pred_check
          %p181 = pneg %p34
        $region34: #{tpu_custom_call.1} parent=31 // pred_check_branch
          %183 = sbr.rel (%p181) target = $region36
        $region35: #{tpu_custom_call.1} parent=31 // pred_region
          %p184 = scmp.lt.s32.totalorder %s14, 1
          %s185 = scalar_select %p184, %s14, 1
          %s186 = smul.addr %s185, 32
          %s187 = smul.addr %s186, 8
          %s188 = scalar_lea.vmem %s0, %s187
        $region36: #{tpu_custom_call.1} parent=31 // pred_fallthru
          _
      $region32: #{tpu_custom_call.1} parent=5 // pred_fallthru
        _
      %p189 = scmp.le.s32.totalorder 1, %s14
      %p190 = scmp.lt.s32.totalorder %s14, 3
      %p191 = pnand %p189, %p190
      %p192 = pneg %p191
      // Predicated region
      $region37: #{tpu_custom_call.1} parent=5 // pred_check
        _
      $region38: #{tpu_custom_call.1} parent=5 // pred_check_branch
        %194 = sbr.rel (%p191) target = $region40
      $region39: #{tpu_custom_call.1} parent=5 // pred_region
        %s195 = ssub.s32 %s14, 1
        %p196 = scmp.lt.s32.totalorder %s19, 1
        %s197 = scalar_select %p196, %s19, 1
        %s198 = smul.addr %s197, 32
        %s199 = smul.addr %s198, 8
        %s200 = scalar_lea.vmem %s0, %s199
        %p201 = pneg %p40
        %p202 = pneg %p37
        %p203 = pneg %p61
        %p204 = pneg %p58
        %p205 = pneg %p82
        %p206 = pneg %p79
        %p207 = pneg %p103
        %p208 = pneg %p100
        %p209 = pneg %p124
        %p210 = pneg %p121
        %p211 = pneg %p150
        %p212 = pneg %p147
        %s213 = sand.u32 %s137, 1
        %s214 = scalar_lea.sflag [#allocation5], %s213
        %s215 = sand.u32 %s137, 1
        %s216 = smul.addr %s215, 4
        %s217 = scalar_lea.vmem [#allocation4], %s216
        %p218 = scmp.lt.s32.totalorder %s19, 1
        %s219 = scalar_select %p218, %s19, 1
        %s220 = smul.addr %s219, 32
        %s221 = smul.addr %s220, 8
        %s222 = scalar_lea.vmem %s0, %s221
        %vm223 = vcmask 31744
        %224 = vst.msk [vmem:[#allocation2] sm:$0xff] %vm223, 0.0
        %225 = vst.msk [vmem:[#allocation2 + $0x8] sm:$0xff] %vm223, 0.0
        %vm226 = vcmask 25600
        %227 = vst.msk [vmem:[#allocation2 + $0x10] sm:$0x3] %vm226, 0.0
        %228 = vst.msk [vmem:[#allocation2 + $0x18] sm:$0xff] %vm223, 0.0
        %229 = vst.msk [vmem:[#allocation2 + $0x20] sm:$0xff] %vm223, 0.0
        %230 = vst.msk [vmem:[#allocation2 + $0x28] sm:$0x3] %vm226, 0.0
        %231 = vst.msk [vmem:[#allocation2 + $0x30] sm:$0xff] %vm223, 0.0
        %232 = vst.msk [vmem:[#allocation2 + $0x38] sm:$0xff] %vm223, 0.0
        %233 = vst.msk [vmem:[#allocation2 + $0x40] sm:$0x3] %vm226, 0.0
        %234 = vst.msk [vmem:[#allocation2 + $0x48] sm:$0xff] %vm223, 0.0
        %235 = vst.msk [vmem:[#allocation2 + $0x50] sm:$0xff] %vm223, 0.0
        %236 = vst.msk [vmem:[#allocation2 + $0x58] sm:$0x3] %vm226, 0.0
        %237 = vst.msk [vmem:[#allocation2 + $0x60] sm:$0xff] %vm223, 0.0
        %238 = vst.msk [vmem:[#allocation2 + $0x68] sm:$0xff] %vm223, 0.0
        %239 = vst.msk [vmem:[#allocation2 + $0x70] sm:$0x3] %vm226, 0.0
        %240 = vst.msk [vmem:[#allocation2 + $0x78] sm:$0xff] %vm223, 0.0
        %241 = vst.msk [vmem:[#allocation2 + $0x80] sm:$0xff] %vm223, 0.0
        %242 = vst.msk [vmem:[#allocation2 + $0x88] sm:$0x3] %vm226, 0.0
        %243 = vst.msk [vmem:[#allocation2 + $0x90] sm:$0xff] %vm223, 0.0
        %244 = vst.msk [vmem:[#allocation2 + $0x98] sm:$0xff] %vm223, 0.0
        %245 = vst.msk [vmem:[#allocation2 + $0xa0] sm:$0x3] %vm226, 0.0
        %246 = vst.msk [vmem:[#allocation2 + $0xa8] sm:$0xff] %vm223, 0.0
        %247 = vst.msk [vmem:[#allocation2 + $0xb0] sm:$0xff] %vm223, 0.0
        %248 = vst.msk [vmem:[#allocation2 + $0xb8] sm:$0x3] %vm226, 0.0
        %249 = vst.msk [vmem:[#allocation2 + $0xc0] sm:$0xff] %vm223, 0.0
        %250 = vst.msk [vmem:[#allocation2 + $0xc8] sm:$0xff] %vm223, 0.0
        %251 = vst.msk [vmem:[#allocation2 + $0xd0] sm:$0x3] %vm226, 0.0
        %252 = vst.msk [vmem:[#allocation2 + $0xd8] sm:$0xff] %vm223, 0.0
        %253 = vst.msk [vmem:[#allocation2 + $0xe0] sm:$0xff] %vm223, 0.0
        %254 = vst.msk [vmem:[#allocation2 + $0xe8] sm:$0x3] %vm226, 0.0
        %255 = vst.msk [vmem:[#allocation2 + $0xf0] sm:$0xff] %vm223, 0.0
        %256 = vst.msk [vmem:[#allocation2 + $0xf8] sm:$0xff] %vm223, 0.0
        %257 = vst.msk [vmem:[#allocation2 + $0x100] sm:$0x3] %vm226, 0.0
        %258 = vst.msk [vmem:[#allocation2 + $0x108] sm:$0xff] %vm223, 0.0
        %259 = vst.msk [vmem:[#allocation2 + $0x110] sm:$0xff] %vm223, 0.0
        %260 = vst.msk [vmem:[#allocation2 + $0x118] sm:$0x3] %vm226, 0.0
        %261 = vst.msk [vmem:[#allocation2 + $0x120] sm:$0xff] %vm223, 0.0
        %262 = vst.msk [vmem:[#allocation2 + $0x128] sm:$0xff] %vm223, 0.0
        %263 = vst.msk [vmem:[#allocation2 + $0x130] sm:$0x3] %vm226, 0.0
        %264 = vst.msk [vmem:[#allocation2 + $0x138] sm:$0xff] %vm223, 0.0
        %265 = vst.msk [vmem:[#allocation2 + $0x140] sm:$0xff] %vm223, 0.0
        %266 = vst.msk [vmem:[#allocation2 + $0x148] sm:$0x3] %vm226, 0.0
        %267 = vst.msk [vmem:[#allocation2 + $0x150] sm:$0xff] %vm223, 0.0
        %268 = vst.msk [vmem:[#allocation2 + $0x158] sm:$0xff] %vm223, 0.0
        %269 = vst.msk [vmem:[#allocation2 + $0x160] sm:$0x3] %vm226, 0.0
        %270 = vst.msk [vmem:[#allocation2 + $0x168] sm:$0xff] %vm223, 0.0
        %271 = vst.msk [vmem:[#allocation2 + $0x170] sm:$0xff] %vm223, 0.0
        %272 = vst.msk [vmem:[#allocation2 + $0x178] sm:$0x3] %vm226, 0.0
        %273 = vst.msk [vmem:[#allocation2 + $0x180] sm:$0xff] %vm223, 0.0
        %274 = vst.msk [vmem:[#allocation2 + $0x188] sm:$0xff] %vm223, 0.0
        %275 = vst.msk [vmem:[#allocation2 + $0x190] sm:$0x3] %vm226, 0.0
        %276 = vst.msk [vmem:[#allocation2 + $0x198] sm:$0xff] %vm223, 0.0
        %277 = vst.msk [vmem:[#allocation2 + $0x1a0] sm:$0xff] %vm223, 0.0
        %278 = vst.msk [vmem:[#allocation2 + $0x1a8] sm:$0x3] %vm226, 0.0
        %v279 = vld [vmem:[%s222] sm:$0xff]
        %v280 = vld [vmem:[%s222 + $0x8] sm:$0xff]
        %v281 = vld [vmem:[%s222 + $0x10] sm:$0xff]
        %v282 = vld [vmem:[%s222 + $0x18] sm:$0xff]
        %v283 = vld [vmem:[%s222 + $0x20] sm:$0xff]
        %v284 = vld [vmem:[%s222 + $0x28] sm:$0xff]
        %v285 = vld [vmem:[%s222 + $0x30] sm:$0xff]
        %v286 = vld [vmem:[%s222 + $0x38] sm:$0xff]
        %v287 = vld [vmem:[%s222 + $0x40] sm:$0xff]
        %v288 = vld [vmem:[%s222 + $0x48] sm:$0xff]
        %v289 = vld [vmem:[%s222 + $0x50] sm:$0xff]
        %v290 = vld [vmem:[%s222 + $0x58] sm:$0xff]
        %v291 = vld [vmem:[%s222 + $0x60] sm:$0xff]
        %v292 = vld [vmem:[%s222 + $0x68] sm:$0xff]
        %v293 = vld [vmem:[%s222 + $0x70] sm:$0xff]
        %v294 = vld [vmem:[%s222 + $0x78] sm:$0xff]
        %v295 = vld [vmem:[%s222 + $0x80] sm:$0xff]
        %v296 = vld [vmem:[%s222 + $0x88] sm:$0xff]
        %v297 = vld [vmem:[%s222 + $0x90] sm:$0xff]
        %v298 = vld [vmem:[%s222 + $0x98] sm:$0xff]
        %v299 = vld [vmem:[%s222 + $0xa0] sm:$0xff]
        %v300 = vld [vmem:[%s222 + $0xa8] sm:$0xff]
        %v301 = vld [vmem:[%s222 + $0xb0] sm:$0xff]
        %v302 = vld [vmem:[%s222 + $0xb8] sm:$0xff]
        %v303 = vld [vmem:[%s222 + $0xc0] sm:$0xff]
        %v304 = vld [vmem:[%s222 + $0xc8] sm:$0xff]
        %v305 = vld [vmem:[%s222 + $0xd0] sm:$0xff]
        %v306 = vld [vmem:[%s222 + $0xd8] sm:$0xff]
        %v307 = vld [vmem:[%s222 + $0xe0] sm:$0xff]
        %v308 = vld [vmem:[%s222 + $0xe8] sm:$0xff]
        %v309 = vld [vmem:[%s222 + $0xf0] sm:$0xff]
        %v310 = vld [vmem:[%s222 + $0xf8] sm:$0xff]
        %s311 = scalar_lea.vmem [#allocation2], 24
        %312 = vst.msk [vmem:[%s311 + $0x1] sm:$0xff] %vm223, %v279
        %313 = vst.msk [vmem:[%s311 + $0x9] sm:$0xff] %vm223, %v280
        %314 = vst.msk [vmem:[%s311 + $0x19] sm:$0xff] %vm223, %v281
        %315 = vst.msk [vmem:[%s311 + $0x21] sm:$0xff] %vm223, %v282
        %316 = vst.msk [vmem:[%s311 + $0x31] sm:$0xff] %vm223, %v283
        %317 = vst.msk [vmem:[%s311 + $0x39] sm:$0xff] %vm223, %v284
        %318 = vst.msk [vmem:[%s311 + $0x49] sm:$0xff] %vm223, %v285
        %319 = vst.msk [vmem:[%s311 + $0x51] sm:$0xff] %vm223, %v286
        %320 = vst.msk [vmem:[%s311 + $0x61] sm:$0xff] %vm223, %v287
        %321 = vst.msk [vmem:[%s311 + $0x69] sm:$0xff] %vm223, %v288
        %322 = vst.msk [vmem:[%s311 + $0x79] sm:$0xff] %vm223, %v289
        %323 = vst.msk [vmem:[%s311 + $0x81] sm:$0xff] %vm223, %v290
        %324 = vst.msk [vmem:[%s311 + $0x91] sm:$0xff] %vm223, %v291
        %325 = vst.msk [vmem:[%s311 + $0x99] sm:$0xff] %vm223, %v292
        %326 = vst.msk [vmem:[%s311 + $0xa9] sm:$0xff] %vm223, %v293
        %327 = vst.msk [vmem:[%s311 + $0xb1] sm:$0xff] %vm223, %v294
        %328 = vst.msk [vmem:[%s311 + $0xc1] sm:$0xff] %vm223, %v295
        %329 = vst.msk [vmem:[%s311 + $0xc9] sm:$0xff] %vm223, %v296
        %330 = vst.msk [vmem:[%s311 + $0xd9] sm:$0xff] %vm223, %v297
        %331 = vst.msk [vmem:[%s311 + $0xe1] sm:$0xff] %vm223, %v298
        %332 = vst.msk [vmem:[%s311 + $0xf1] sm:$0xff] %vm223, %v299
        %333 = vst.msk [vmem:[%s311 + $0xf9] sm:$0xff] %vm223, %v300
        %334 = vst.msk [vmem:[%s311 + $0x109] sm:$0xff] %vm223, %v301
        %335 = vst.msk [vmem:[%s311 + $0x111] sm:$0xff] %vm223, %v302
        %336 = vst.msk [vmem:[%s311 + $0x121] sm:$0xff] %vm223, %v303
        %337 = vst.msk [vmem:[%s311 + $0x129] sm:$0xff] %vm223, %v304
        %338 = vst.msk [vmem:[%s311 + $0x139] sm:$0xff] %vm223, %v305
        %339 = vst.msk [vmem:[%s311 + $0x141] sm:$0xff] %vm223, %v306
        %340 = vst.msk [vmem:[%s311 + $0x151] sm:$0xff] %vm223, %v307
        %341 = vst.msk [vmem:[%s311 + $0x159] sm:$0xff] %vm223, %v308
        %342 = vst.msk [vmem:[%s311 + $0x169] sm:$0xff] %vm223, %v309
        %343 = vst.msk [vmem:[%s311 + $0x171] sm:$0xff] %vm223, %v310
        %v344 = vld [vmem:[#allocation2] sm:$0xff]
        %v345 = vld [vmem:[#allocation2 + $0x8] sm:$0xff]
        %v346 = vld [vmem:[#allocation2 + $0x10] sm:$0x3]
        %v347 = vld [vmem:[#allocation2 + $0x18] sm:$0xff]
        %v348 = vld [vmem:[#allocation2 + $0x20] sm:$0xff]
        %v349 = vld [vmem:[#allocation2 + $0x28] sm:$0x3]
        %v350 = vld [vmem:[#allocation2 + $0x30] sm:$0xff]
        %v351 = vld [vmem:[#allocation2 + $0x38] sm:$0xff]
        %v352 = vld [vmem:[#allocation2 + $0x40] sm:$0x3]
        %v353 = vld [vmem:[#allocation2 + $0x48] sm:$0xff]
        %v354 = vld [vmem:[#allocation2 + $0x50] sm:$0xff]
        %v355 = vld [vmem:[#allocation2 + $0x58] sm:$0x3]
        %v356 = vld [vmem:[#allocation2 + $0x60] sm:$0xff]
        %v357 = vld [vmem:[#allocation2 + $0x68] sm:$0xff]
        %v358 = vld [vmem:[#allocation2 + $0x70] sm:$0x3]
        %v359 = vld [vmem:[#allocation2 + $0x78] sm:$0xff]
        %v360 = vld [vmem:[#allocation2 + $0x80] sm:$0xff]
        %v361 = vld [vmem:[#allocation2 + $0x88] sm:$0x3]
        %v362 = vld [vmem:[#allocation2 + $0x90] sm:$0xff]
        %v363 = vld [vmem:[#allocation2 + $0x98] sm:$0xff]
        %v364 = vld [vmem:[#allocation2 + $0xa0] sm:$0x3]
        %v365 = vld [vmem:[#allocation2 + $0xa8] sm:$0xff]
        %v366 = vld [vmem:[#allocation2 + $0xb0] sm:$0xff]
        %v367 = vld [vmem:[#allocation2 + $0xb8] sm:$0x3]
        %v368 = vld [vmem:[#allocation2 + $0xc0] sm:$0xff]
        %v369 = vld [vmem:[#allocation2 + $0xc8] sm:$0xff]
        %v370 = vld [vmem:[#allocation2 + $0xd0] sm:$0x3]
        %v371 = vld [vmem:[#allocation2 + $0xd8] sm:$0xff]
        %v372 = vld [vmem:[#allocation2 + $0xe0] sm:$0xff]
        %v373 = vld [vmem:[#allocation2 + $0xe8] sm:$0x3]
        %v374 = vld [vmem:[#allocation2 + $0xf0] sm:$0xff]
        %v375 = vld [vmem:[#allocation2 + $0xf8] sm:$0xff]
        %v376 = vld [vmem:[#allocation2 + $0x100] sm:$0x3]
        %v377 = vld [vmem:[#allocation2 + $0x108] sm:$0xff]
        %v378 = vld [vmem:[#allocation2 + $0x110] sm:$0xff]
        %v379 = vld [vmem:[#allocation2 + $0x118] sm:$0x3]
        %v380 = vld [vmem:[#allocation2 + $0x120] sm:$0xff]
        %v381 = vld [vmem:[#allocation2 + $0x128] sm:$0xff]
        %v382 = vld [vmem:[#allocation2 + $0x130] sm:$0x3]
        %v383 = vld [vmem:[#allocation2 + $0x138] sm:$0xff]
        %v384 = vld [vmem:[#allocation2 + $0x140] sm:$0xff]
        %v385 = vld [vmem:[#allocation2 + $0x148] sm:$0x3]
        %v386 = vld [vmem:[#allocation2 + $0x150] sm:$0xff]
        %v387 = vld [vmem:[#allocation2 + $0x158] sm:$0xff]
        %v388 = vld [vmem:[#allocation2 + $0x160] sm:$0x3]
        %v389 = vld [vmem:[#allocation2 + $0x168] sm:$0xff]
        %v390 = vld [vmem:[#allocation2 + $0x170] sm:$0xff]
        %v391 = vld [vmem:[#allocation2 + $0x178] sm:$0x3]
        %v392 = vld [vmem:[#allocation2 + $0x180] sm:$0xff]
        %v393 = vld [vmem:[#allocation2 + $0x188] sm:$0xff]
        %v394 = vld [vmem:[#allocation2 + $0x190] sm:$0x3]
        %v395 = vld [vmem:[#allocation2 + $0x198] sm:$0xff]
        %v396 = vld [vmem:[#allocation2 + $0x1a0] sm:$0xff]
        %v397 = vld [vmem:[#allocation2 + $0x1a8] sm:$0x3]
        %vm446 = vcmask 1046528
        %v447 = vrot.slane %v344, 1
        %v448 = vrot.slane %v345, 1
        %v449 = vsel %vm446, %v447, %v448
        %v450 = vrot.slane %v346, 1
        %v451 = vsel %vm446, %v448, %v450
        %v452 = vrot.slane %v347, 1
        %v453 = vrot.slane %v348, 1
        %v454 = vsel %vm446, %v452, %v453
        %v455 = vrot.slane %v349, 1
        %v456 = vsel %vm446, %v453, %v455
        %v457 = vrot.slane %v350, 1
        %v458 = vrot.slane %v351, 1
        %v459 = vsel %vm446, %v457, %v458
        %v460 = vrot.slane %v352, 1
        %v461 = vsel %vm446, %v458, %v460
        %v462 = vrot.slane %v353, 1
        %v463 = vrot.slane %v354, 1
        %v464 = vsel %vm446, %v462, %v463
        %v465 = vrot.slane %v355, 1
        %v466 = vsel %vm446, %v463, %v465
        %v467 = vrot.slane %v356, 1
        %v468 = vrot.slane %v357, 1
        %v469 = vsel %vm446, %v467, %v468
        %v470 = vrot.slane %v358, 1
        %v471 = vsel %vm446, %v468, %v470
        %v472 = vrot.slane %v359, 1
        %v473 = vrot.slane %v360, 1
        %v474 = vsel %vm446, %v472, %v473
        %v475 = vrot.slane %v361, 1
        %v476 = vsel %vm446, %v473, %v475
        %v477 = vrot.slane %v362, 1
        %v478 = vrot.slane %v363, 1
        %v479 = vsel %vm446, %v477, %v478
        %v480 = vrot.slane %v364, 1
        %v481 = vsel %vm446, %v478, %v480
        %v482 = vrot.slane %v365, 1
        %v483 = vrot.slane %v366, 1
        %v484 = vsel %vm446, %v482, %v483
        %v485 = vrot.slane %v367, 1
        %v486 = vsel %vm446, %v483, %v485
        %v487 = vrot.slane %v368, 1
        %v488 = vrot.slane %v369, 1
        %v489 = vsel %vm446, %v487, %v488
        %v490 = vrot.slane %v370, 1
        %v491 = vsel %vm446, %v488, %v490
        %v492 = vrot.slane %v371, 1
        %v493 = vrot.slane %v372, 1
        %v494 = vsel %vm446, %v492, %v493
        %v495 = vrot.slane %v373, 1
        %v496 = vsel %vm446, %v493, %v495
        %v497 = vrot.slane %v374, 1
        %v498 = vrot.slane %v375, 1
        %v499 = vsel %vm446, %v497, %v498
        %v500 = vrot.slane %v376, 1
        %v501 = vsel %vm446, %v498, %v500
        %v502 = vrot.slane %v377, 1
        %v503 = vrot.slane %v378, 1
        %v504 = vsel %vm446, %v502, %v503
        %v505 = vrot.slane %v379, 1
        %v506 = vsel %vm446, %v503, %v505
        %v507 = vrot.slane %v380, 1
        %v508 = vrot.slane %v381, 1
        %v509 = vsel %vm446, %v507, %v508
        %v510 = vrot.slane %v382, 1
        %v511 = vsel %vm446, %v508, %v510
        %v512 = vrot.slane %v383, 1
        %v513 = vrot.slane %v384, 1
        %v514 = vsel %vm446, %v512, %v513
        %v515 = vrot.slane %v385, 1
        %v516 = vsel %vm446, %v513, %v515
        %v517 = vrot.slane %v386, 1
        %v518 = vrot.slane %v387, 1
        %v519 = vsel %vm446, %v517, %v518
        %v520 = vrot.slane %v388, 1
        %v521 = vsel %vm446, %v518, %v520
        %v522 = vrot.slane %v389, 1
        %v523 = vrot.slane %v390, 1
        %v524 = vsel %vm446, %v522, %v523
        %v525 = vrot.slane %v391, 1
        %v526 = vsel %vm446, %v523, %v525
        %527 = vrot.lane.b32.xlu0 %v449, 4
        %v528 = vpop.permute.xlu0 %527
        %529 = vrot.lane.b32.xlu0 %v451, 4
        %v530 = vpop.permute.xlu0 %529
        %531 = vrot.lane.b32.xlu0 %v454, 4
        %v532 = vpop.permute.xlu0 %531
        %533 = vrot.lane.b32.xlu0 %v456, 4
        %v534 = vpop.permute.xlu0 %533
        %535 = vrot.lane.b32.xlu0 %v459, 4
        %v536 = vpop.permute.xlu0 %535
        %537 = vrot.lane.b32.xlu0 %v461, 4
        %v538 = vpop.permute.xlu0 %537
        %539 = vrot.lane.b32.xlu0 %v464, 4
        %v540 = vpop.permute.xlu0 %539
        %541 = vrot.lane.b32.xlu0 %v466, 4
        %v542 = vpop.permute.xlu0 %541
        %543 = vrot.lane.b32.xlu0 %v469, 4
        %v544 = vpop.permute.xlu0 %543
        %545 = vrot.lane.b32.xlu0 %v471, 4
        %v546 = vpop.permute.xlu0 %545
        %547 = vrot.lane.b32.xlu0 %v474, 4
        %v548 = vpop.permute.xlu0 %547
        %549 = vrot.lane.b32.xlu0 %v476, 4
        %v550 = vpop.permute.xlu0 %549
        %551 = vrot.lane.b32.xlu0 %v479, 4
        %v552 = vpop.permute.xlu0 %551
        %553 = vrot.lane.b32.xlu0 %v481, 4
        %v554 = vpop.permute.xlu0 %553
        %555 = vrot.lane.b32.xlu0 %v484, 4
        %v556 = vpop.permute.xlu0 %555
        %557 = vrot.lane.b32.xlu0 %v486, 4
        %v558 = vpop.permute.xlu0 %557
        %559 = vrot.lane.b32.xlu0 %v489, 4
        %v560 = vpop.permute.xlu0 %559
        %561 = vrot.lane.b32.xlu0 %v491, 4
        %v562 = vpop.permute.xlu0 %561
        %563 = vrot.lane.b32.xlu0 %v494, 4
        %v564 = vpop.permute.xlu0 %563
        %565 = vrot.lane.b32.xlu0 %v496, 4
        %v566 = vpop.permute.xlu0 %565
        %567 = vrot.lane.b32.xlu0 %v499, 4
        %v568 = vpop.permute.xlu0 %567
        %569 = vrot.lane.b32.xlu0 %v501, 4
        %v570 = vpop.permute.xlu0 %569
        %571 = vrot.lane.b32.xlu0 %v504, 4
        %v572 = vpop.permute.xlu0 %571
        %573 = vrot.lane.b32.xlu0 %v506, 4
        %v574 = vpop.permute.xlu0 %573
        %575 = vrot.lane.b32.xlu0 %v509, 4
        %v576 = vpop.permute.xlu0 %575
        %577 = vrot.lane.b32.xlu0 %v511, 4
        %v578 = vpop.permute.xlu0 %577
        %579 = vrot.lane.b32.xlu0 %v514, 4
        %v580 = vpop.permute.xlu0 %579
        %581 = vrot.lane.b32.xlu0 %v516, 4
        %v582 = vpop.permute.xlu0 %581
        %583 = vrot.lane.b32.xlu0 %v519, 4
        %v584 = vpop.permute.xlu0 %583
        %585 = vrot.lane.b32.xlu0 %v521, 4
        %v586 = vpop.permute.xlu0 %585
        %587 = vrot.lane.b32.xlu0 %v524, 4
        %v588 = vpop.permute.xlu0 %587
        %589 = vrot.lane.b32.xlu0 %v526, 4
        %v590 = vpop.permute.xlu0 %589
        %vm623 = vcmask 1045504
        %v624 = vrot.slane %v344, 2
        %v625 = vrot.slane %v345, 2
        %v626 = vsel %vm623, %v624, %v625
        %v627 = vrot.slane %v346, 2
        %v628 = vsel %vm623, %v625, %v627
        %v629 = vrot.slane %v347, 2
        %v630 = vrot.slane %v348, 2
        %v631 = vsel %vm623, %v629, %v630
        %v632 = vrot.slane %v349, 2
        %v633 = vsel %vm623, %v630, %v632
        %v634 = vrot.slane %v350, 2
        %v635 = vrot.slane %v351, 2
        %v636 = vsel %vm623, %v634, %v635
        %v637 = vrot.slane %v352, 2
        %v638 = vsel %vm623, %v635, %v637
        %v639 = vrot.slane %v353, 2
        %v640 = vrot.slane %v354, 2
        %v641 = vsel %vm623, %v639, %v640
        %v642 = vrot.slane %v355, 2
        %v643 = vsel %vm623, %v640, %v642
        %v644 = vrot.slane %v356, 2
        %v645 = vrot.slane %v357, 2
        %v646 = vsel %vm623, %v644, %v645
        %v647 = vrot.slane %v358, 2
        %v648 = vsel %vm623, %v645, %v647
        %v649 = vrot.slane %v359, 2
        %v650 = vrot.slane %v360, 2
        %v651 = vsel %vm623, %v649, %v650
        %v652 = vrot.slane %v361, 2
        %v653 = vsel %vm623, %v650, %v652
        %v654 = vrot.slane %v362, 2
        %v655 = vrot.slane %v363, 2
        %v656 = vsel %vm623, %v654, %v655
        %v657 = vrot.slane %v364, 2
        %v658 = vsel %vm623, %v655, %v657
        %v659 = vrot.slane %v365, 2
        %v660 = vrot.slane %v366, 2
        %v661 = vsel %vm623, %v659, %v660
        %v662 = vrot.slane %v367, 2
        %v663 = vsel %vm623, %v660, %v662
        %v664 = vrot.slane %v368, 2
        %v665 = vrot.slane %v369, 2
        %v666 = vsel %vm623, %v664, %v665
        %v667 = vrot.slane %v370, 2
        %v668 = vsel %vm623, %v665, %v667
        %v669 = vrot.slane %v371, 2
        %v670 = vrot.slane %v372, 2
        %v671 = vsel %vm623, %v669, %v670
        %v672 = vrot.slane %v373, 2
        %v673 = vsel %vm623, %v670, %v672
        %v674 = vrot.slane %v374, 2
        %v675 = vrot.slane %v375, 2
        %v676 = vsel %vm623, %v674, %v675
        %v677 = vrot.slane %v376, 2
        %v678 = vsel %vm623, %v675, %v677
        %v679 = vrot.slane %v377, 2
        %v680 = vrot.slane %v378, 2
        %v681 = vsel %vm623, %v679, %v680
        %v682 = vrot.slane %v379, 2
        %v683 = vsel %vm623, %v680, %v682
        %v684 = vrot.slane %v380, 2
        %v685 = vrot.slane %v381, 2
        %v686 = vsel %vm623, %v684, %v685
        %v687 = vrot.slane %v382, 2
        %v688 = vsel %vm623, %v685, %v687
        %v689 = vrot.slane %v383, 2
        %v690 = vrot.slane %v384, 2
        %v691 = vsel %vm623, %v689, %v690
        %v692 = vrot.slane %v385, 2
        %v693 = vsel %vm623, %v690, %v692
        %v694 = vrot.slane %v386, 2
        %v695 = vrot.slane %v387, 2
        %v696 = vsel %vm623, %v694, %v695
        %v697 = vrot.slane %v388, 2
        %v698 = vsel %vm623, %v695, %v697
        %v699 = vrot.slane %v389, 2
        %v700 = vrot.slane %v390, 2
        %v701 = vsel %vm623, %v699, %v700
        %v702 = vrot.slane %v391, 2
        %v703 = vsel %vm623, %v700, %v702
        %704 = vrot.lane.b32.xlu0 %v626, 8
        %v705 = vpop.permute.xlu0 %704
        %706 = vrot.lane.b32.xlu0 %v628, 8
        %v707 = vpop.permute.xlu0 %706
        %708 = vrot.lane.b32.xlu0 %v631, 8
        %v709 = vpop.permute.xlu0 %708
        %710 = vrot.lane.b32.xlu0 %v633, 8
        %v711 = vpop.permute.xlu0 %710
        %712 = vrot.lane.b32.xlu0 %v636, 8
        %v713 = vpop.permute.xlu0 %712
        %714 = vrot.lane.b32.xlu0 %v638, 8
        %v715 = vpop.permute.xlu0 %714
        %716 = vrot.lane.b32.xlu0 %v641, 8
        %v717 = vpop.permute.xlu0 %716
        %718 = vrot.lane.b32.xlu0 %v643, 8
        %v719 = vpop.permute.xlu0 %718
        %720 = vrot.lane.b32.xlu0 %v646, 8
        %v721 = vpop.permute.xlu0 %720
        %722 = vrot.lane.b32.xlu0 %v648, 8
        %v723 = vpop.permute.xlu0 %722
        %724 = vrot.lane.b32.xlu0 %v651, 8
        %v725 = vpop.permute.xlu0 %724
        %726 = vrot.lane.b32.xlu0 %v653, 8
        %v727 = vpop.permute.xlu0 %726
        %728 = vrot.lane.b32.xlu0 %v656, 8
        %v729 = vpop.permute.xlu0 %728
        %730 = vrot.lane.b32.xlu0 %v658, 8
        %v731 = vpop.permute.xlu0 %730
        %732 = vrot.lane.b32.xlu0 %v661, 8
        %v733 = vpop.permute.xlu0 %732
        %734 = vrot.lane.b32.xlu0 %v663, 8
        %v735 = vpop.permute.xlu0 %734
        %736 = vrot.lane.b32.xlu0 %v666, 8
        %v737 = vpop.permute.xlu0 %736
        %738 = vrot.lane.b32.xlu0 %v668, 8
        %v739 = vpop.permute.xlu0 %738
        %740 = vrot.lane.b32.xlu0 %v671, 8
        %v741 = vpop.permute.xlu0 %740
        %742 = vrot.lane.b32.xlu0 %v673, 8
        %v743 = vpop.permute.xlu0 %742
        %744 = vrot.lane.b32.xlu0 %v676, 8
        %v745 = vpop.permute.xlu0 %744
        %746 = vrot.lane.b32.xlu0 %v678, 8
        %v747 = vpop.permute.xlu0 %746
        %748 = vrot.lane.b32.xlu0 %v681, 8
        %v749 = vpop.permute.xlu0 %748
        %750 = vrot.lane.b32.xlu0 %v683, 8
        %v751 = vpop.permute.xlu0 %750
        %752 = vrot.lane.b32.xlu0 %v686, 8
        %v753 = vpop.permute.xlu0 %752
        %754 = vrot.lane.b32.xlu0 %v688, 8
        %v755 = vpop.permute.xlu0 %754
        %756 = vrot.lane.b32.xlu0 %v691, 8
        %v757 = vpop.permute.xlu0 %756
        %758 = vrot.lane.b32.xlu0 %v693, 8
        %v759 = vpop.permute.xlu0 %758
        %760 = vrot.lane.b32.xlu0 %v696, 8
        %v761 = vpop.permute.xlu0 %760
        %762 = vrot.lane.b32.xlu0 %v698, 8
        %v763 = vpop.permute.xlu0 %762
        %764 = vrot.lane.b32.xlu0 %v701, 8
        %v765 = vpop.permute.xlu0 %764
        %766 = vrot.lane.b32.xlu0 %v703, 8
        %v767 = vpop.permute.xlu0 %766
        %802 = vrot.lane.b32.xlu0 %v347, 12
        %v803 = vpop.permute.xlu0 %802
        %804 = vrot.lane.b32.xlu0 %v348, 12
        %v805 = vpop.permute.xlu0 %804
        %806 = vrot.lane.b32.xlu0 %v350, 12
        %v807 = vpop.permute.xlu0 %806
        %808 = vrot.lane.b32.xlu0 %v351, 12
        %v809 = vpop.permute.xlu0 %808
        %810 = vrot.lane.b32.xlu0 %v353, 12
        %v811 = vpop.permute.xlu0 %810
        %812 = vrot.lane.b32.xlu0 %v354, 12
        %v813 = vpop.permute.xlu0 %812
        %814 = vrot.lane.b32.xlu0 %v356, 12
        %v815 = vpop.permute.xlu0 %814
        %816 = vrot.lane.b32.xlu0 %v357, 12
        %v817 = vpop.permute.xlu0 %816
        %818 = vrot.lane.b32.xlu0 %v359, 12
        %v819 = vpop.permute.xlu0 %818
        %820 = vrot.lane.b32.xlu0 %v360, 12
        %v821 = vpop.permute.xlu0 %820
        %822 = vrot.lane.b32.xlu0 %v362, 12
        %v823 = vpop.permute.xlu0 %822
        %824 = vrot.lane.b32.xlu0 %v363, 12
        %v825 = vpop.permute.xlu0 %824
        %826 = vrot.lane.b32.xlu0 %v365, 12
        %v827 = vpop.permute.xlu0 %826
        %828 = vrot.lane.b32.xlu0 %v366, 12
        %v829 = vpop.permute.xlu0 %828
        %830 = vrot.lane.b32.xlu0 %v368, 12
        %v831 = vpop.permute.xlu0 %830
        %832 = vrot.lane.b32.xlu0 %v369, 12
        %v833 = vpop.permute.xlu0 %832
        %834 = vrot.lane.b32.xlu0 %v371, 12
        %v835 = vpop.permute.xlu0 %834
        %836 = vrot.lane.b32.xlu0 %v372, 12
        %v837 = vpop.permute.xlu0 %836
        %838 = vrot.lane.b32.xlu0 %v374, 12
        %v839 = vpop.permute.xlu0 %838
        %840 = vrot.lane.b32.xlu0 %v375, 12
        %v841 = vpop.permute.xlu0 %840
        %842 = vrot.lane.b32.xlu0 %v377, 12
        %v843 = vpop.permute.xlu0 %842
        %844 = vrot.lane.b32.xlu0 %v378, 12
        %v845 = vpop.permute.xlu0 %844
        %846 = vrot.lane.b32.xlu0 %v380, 12
        %v847 = vpop.permute.xlu0 %846
        %848 = vrot.lane.b32.xlu0 %v381, 12
        %v849 = vpop.permute.xlu0 %848
        %850 = vrot.lane.b32.xlu0 %v383, 12
        %v851 = vpop.permute.xlu0 %850
        %852 = vrot.lane.b32.xlu0 %v384, 12
        %v853 = vpop.permute.xlu0 %852
        %854 = vrot.lane.b32.xlu0 %v386, 12
        %v855 = vpop.permute.xlu0 %854
        %856 = vrot.lane.b32.xlu0 %v387, 12
        %v857 = vpop.permute.xlu0 %856
        %858 = vrot.lane.b32.xlu0 %v389, 12
        %v859 = vpop.permute.xlu0 %858
        %860 = vrot.lane.b32.xlu0 %v390, 12
        %v861 = vpop.permute.xlu0 %860
        %862 = vrot.lane.b32.xlu0 %v392, 12
        %v863 = vpop.permute.xlu0 %862
        %864 = vrot.lane.b32.xlu0 %v393, 12
        %v865 = vpop.permute.xlu0 %864
        %v899 = vrot.slane %v392, 1
        %v900 = vrot.slane %v393, 1
        %v901 = vsel %vm446, %v899, %v900
        %v902 = vrot.slane %v394, 1
        %v903 = vsel %vm446, %v900, %v902
        %904 = vrot.lane.b32.xlu0 %v454, 16
        %v905 = vpop.permute.xlu0 %904
        %906 = vrot.lane.b32.xlu0 %v456, 16
        %v907 = vpop.permute.xlu0 %906
        %908 = vrot.lane.b32.xlu0 %v459, 16
        %v909 = vpop.permute.xlu0 %908
        %910 = vrot.lane.b32.xlu0 %v461, 16
        %v911 = vpop.permute.xlu0 %910
        %912 = vrot.lane.b32.xlu0 %v464, 16
        %v913 = vpop.permute.xlu0 %912
        %914 = vrot.lane.b32.xlu0 %v466, 16
        %v915 = vpop.permute.xlu0 %914
        %916 = vrot.lane.b32.xlu0 %v469, 16
        %v917 = vpop.permute.xlu0 %916
        %918 = vrot.lane.b32.xlu0 %v471, 16
        %v919 = vpop.permute.xlu0 %918
        %920 = vrot.lane.b32.xlu0 %v474, 16
        %v921 = vpop.permute.xlu0 %920
        %922 = vrot.lane.b32.xlu0 %v476, 16
        %v923 = vpop.permute.xlu0 %922
        %924 = vrot.lane.b32.xlu0 %v479, 16
        %v925 = vpop.permute.xlu0 %924
        %926 = vrot.lane.b32.xlu0 %v481, 16
        %v927 = vpop.permute.xlu0 %926
        %928 = vrot.lane.b32.xlu0 %v484, 16
        %v929 = vpop.permute.xlu0 %928
        %930 = vrot.lane.b32.xlu0 %v486, 16
        %v931 = vpop.permute.xlu0 %930
        %932 = vrot.lane.b32.xlu0 %v489, 16
        %v933 = vpop.permute.xlu0 %932
        %934 = vrot.lane.b32.xlu0 %v491, 16
        %v935 = vpop.permute.xlu0 %934
        %936 = vrot.lane.b32.xlu0 %v494, 16
        %v937 = vpop.permute.xlu0 %936
        %938 = vrot.lane.b32.xlu0 %v496, 16
        %v939 = vpop.permute.xlu0 %938
        %940 = vrot.lane.b32.xlu0 %v499, 16
        %v941 = vpop.permute.xlu0 %940
        %942 = vrot.lane.b32.xlu0 %v501, 16
        %v943 = vpop.permute.xlu0 %942
        %944 = vrot.lane.b32.xlu0 %v504, 16
        %v945 = vpop.permute.xlu0 %944
        %946 = vrot.lane.b32.xlu0 %v506, 16
        %v947 = vpop.permute.xlu0 %946
        %948 = vrot.lane.b32.xlu0 %v509, 16
        %v949 = vpop.permute.xlu0 %948
        %950 = vrot.lane.b32.xlu0 %v511, 16
        %v951 = vpop.permute.xlu0 %950
        %952 = vrot.lane.b32.xlu0 %v514, 16
        %v953 = vpop.permute.xlu0 %952
        %954 = vrot.lane.b32.xlu0 %v516, 16
        %v955 = vpop.permute.xlu0 %954
        %956 = vrot.lane.b32.xlu0 %v519, 16
        %v957 = vpop.permute.xlu0 %956
        %958 = vrot.lane.b32.xlu0 %v521, 16
        %v959 = vpop.permute.xlu0 %958
        %960 = vrot.lane.b32.xlu0 %v524, 16
        %v961 = vpop.permute.xlu0 %960
        %962 = vrot.lane.b32.xlu0 %v526, 16
        %v963 = vpop.permute.xlu0 %962
        %964 = vrot.lane.b32.xlu0 %v901, 16
        %v965 = vpop.permute.xlu0 %964
        %966 = vrot.lane.b32.xlu0 %v903, 16
        %v967 = vpop.permute.xlu0 %966
        %v1000 = vrot.slane %v392, 2
        %v1001 = vrot.slane %v393, 2
        %v1002 = vsel %vm623, %v1000, %v1001
        %v1003 = vrot.slane %v394, 2
        %v1004 = vsel %vm623, %v1001, %v1003
        %1005 = vrot.lane.b32.xlu0 %v631, 20
        %v1006 = vpop.permute.xlu0 %1005
        %1007 = vrot.lane.b32.xlu0 %v633, 20
        %v1008 = vpop.permute.xlu0 %1007
        %1009 = vrot.lane.b32.xlu0 %v636, 20
        %v1010 = vpop.permute.xlu0 %1009
        %1011 = vrot.lane.b32.xlu0 %v638, 20
        %v1012 = vpop.permute.xlu0 %1011
        %1013 = vrot.lane.b32.xlu0 %v641, 20
        %v1014 = vpop.permute.xlu0 %1013
        %1015 = vrot.lane.b32.xlu0 %v643, 20
        %v1016 = vpop.permute.xlu0 %1015
        %1017 = vrot.lane.b32.xlu0 %v646, 20
        %v1018 = vpop.permute.xlu0 %1017
        %1019 = vrot.lane.b32.xlu0 %v648, 20
        %v1020 = vpop.permute.xlu0 %1019
        %1021 = vrot.lane.b32.xlu0 %v651, 20
        %v1022 = vpop.permute.xlu0 %1021
        %1023 = vrot.lane.b32.xlu0 %v653, 20
        %v1024 = vpop.permute.xlu0 %1023
        %1025 = vrot.lane.b32.xlu0 %v656, 20
        %v1026 = vpop.permute.xlu0 %1025
        %1027 = vrot.lane.b32.xlu0 %v658, 20
        %v1028 = vpop.permute.xlu0 %1027
        %1029 = vrot.lane.b32.xlu0 %v661, 20
        %v1030 = vpop.permute.xlu0 %1029
        %1031 = vrot.lane.b32.xlu0 %v663, 20
        %v1032 = vpop.permute.xlu0 %1031
        %1033 = vrot.lane.b32.xlu0 %v666, 20
        %v1034 = vpop.permute.xlu0 %1033
        %1035 = vrot.lane.b32.xlu0 %v668, 20
        %v1036 = vpop.permute.xlu0 %1035
        %1037 = vrot.lane.b32.xlu0 %v671, 20
        %v1038 = vpop.permute.xlu0 %1037
        %1039 = vrot.lane.b32.xlu0 %v673, 20
        %v1040 = vpop.permute.xlu0 %1039
        %1041 = vrot.lane.b32.xlu0 %v676, 20
        %v1042 = vpop.permute.xlu0 %1041
        %1043 = vrot.lane.b32.xlu0 %v678, 20
        %v1044 = vpop.permute.xlu0 %1043
        %1045 = vrot.lane.b32.xlu0 %v681, 20
        %v1046 = vpop.permute.xlu0 %1045
        %1047 = vrot.lane.b32.xlu0 %v683, 20
        %v1048 = vpop.permute.xlu0 %1047
        %1049 = vrot.lane.b32.xlu0 %v686, 20
        %v1050 = vpop.permute.xlu0 %1049
        %1051 = vrot.lane.b32.xlu0 %v688, 20
        %v1052 = vpop.permute.xlu0 %1051
        %1053 = vrot.lane.b32.xlu0 %v691, 20
        %v1054 = vpop.permute.xlu0 %1053
        %1055 = vrot.lane.b32.xlu0 %v693, 20
        %v1056 = vpop.permute.xlu0 %1055
        %1057 = vrot.lane.b32.xlu0 %v696, 20
        %v1058 = vpop.permute.xlu0 %1057
        %1059 = vrot.lane.b32.xlu0 %v698, 20
        %v1060 = vpop.permute.xlu0 %1059
        %1061 = vrot.lane.b32.xlu0 %v701, 20
        %v1062 = vpop.permute.xlu0 %1061
        %1063 = vrot.lane.b32.xlu0 %v703, 20
        %v1064 = vpop.permute.xlu0 %1063
        %1065 = vrot.lane.b32.xlu0 %v1002, 20
        %v1066 = vpop.permute.xlu0 %1065
        %1067 = vrot.lane.b32.xlu0 %v1004, 20
        %v1068 = vpop.permute.xlu0 %1067
        %1103 = vrot.lane.b32.xlu0 %v350, 24
        %v1104 = vpop.permute.xlu0 %1103
        %1105 = vrot.lane.b32.xlu0 %v351, 24
        %v1106 = vpop.permute.xlu0 %1105
        %1107 = vrot.lane.b32.xlu0 %v353, 24
        %v1108 = vpop.permute.xlu0 %1107
        %1109 = vrot.lane.b32.xlu0 %v354, 24
        %v1110 = vpop.permute.xlu0 %1109
        %1111 = vrot.lane.b32.xlu0 %v356, 24
        %v1112 = vpop.permute.xlu0 %1111
        %1113 = vrot.lane.b32.xlu0 %v357, 24
        %v1114 = vpop.permute.xlu0 %1113
        %1115 = vrot.lane.b32.xlu0 %v359, 24
        %v1116 = vpop.permute.xlu0 %1115
        %1117 = vrot.lane.b32.xlu0 %v360, 24
        %v1118 = vpop.permute.xlu0 %1117
        %1119 = vrot.lane.b32.xlu0 %v362, 24
        %v1120 = vpop.permute.xlu0 %1119
        %1121 = vrot.lane.b32.xlu0 %v363, 24
        %v1122 = vpop.permute.xlu0 %1121
        %1123 = vrot.lane.b32.xlu0 %v365, 24
        %v1124 = vpop.permute.xlu0 %1123
        %1125 = vrot.lane.b32.xlu0 %v366, 24
        %v1126 = vpop.permute.xlu0 %1125
        %1127 = vrot.lane.b32.xlu0 %v368, 24
        %v1128 = vpop.permute.xlu0 %1127
        %1129 = vrot.lane.b32.xlu0 %v369, 24
        %v1130 = vpop.permute.xlu0 %1129
        %1131 = vrot.lane.b32.xlu0 %v371, 24
        %v1132 = vpop.permute.xlu0 %1131
        %1133 = vrot.lane.b32.xlu0 %v372, 24
        %v1134 = vpop.permute.xlu0 %1133
        %1135 = vrot.lane.b32.xlu0 %v374, 24
        %v1136 = vpop.permute.xlu0 %1135
        %1137 = vrot.lane.b32.xlu0 %v375, 24
        %v1138 = vpop.permute.xlu0 %1137
        %1139 = vrot.lane.b32.xlu0 %v377, 24
        %v1140 = vpop.permute.xlu0 %1139
        %1141 = vrot.lane.b32.xlu0 %v378, 24
        %v1142 = vpop.permute.xlu0 %1141
        %1143 = vrot.lane.b32.xlu0 %v380, 24
        %v1144 = vpop.permute.xlu0 %1143
        %1145 = vrot.lane.b32.xlu0 %v381, 24
        %v1146 = vpop.permute.xlu0 %1145
        %1147 = vrot.lane.b32.xlu0 %v383, 24
        %v1148 = vpop.permute.xlu0 %1147
        %1149 = vrot.lane.b32.xlu0 %v384, 24
        %v1150 = vpop.permute.xlu0 %1149
        %1151 = vrot.lane.b32.xlu0 %v386, 24
        %v1152 = vpop.permute.xlu0 %1151
        %1153 = vrot.lane.b32.xlu0 %v387, 24
        %v1154 = vpop.permute.xlu0 %1153
        %1155 = vrot.lane.b32.xlu0 %v389, 24
        %v1156 = vpop.permute.xlu0 %1155
        %1157 = vrot.lane.b32.xlu0 %v390, 24
        %v1158 = vpop.permute.xlu0 %1157
        %1159 = vrot.lane.b32.xlu0 %v392, 24
        %v1160 = vpop.permute.xlu0 %1159
        %1161 = vrot.lane.b32.xlu0 %v393, 24
        %v1162 = vpop.permute.xlu0 %1161
        %1163 = vrot.lane.b32.xlu0 %v395, 24
        %v1164 = vpop.permute.xlu0 %1163
        %1165 = vrot.lane.b32.xlu0 %v396, 24
        %v1166 = vpop.permute.xlu0 %1165
        %v1200 = vrot.slane %v395, 1
        %v1201 = vrot.slane %v396, 1
        %v1202 = vsel %vm446, %v1200, %v1201
        %v1203 = vrot.slane %v397, 1
        %v1204 = vsel %vm446, %v1201, %v1203
        %1205 = vrot.lane.b32.xlu0 %v459, 28
        %v1206 = vpop.permute.xlu0 %1205
        %1207 = vrot.lane.b32.xlu0 %v461, 28
        %v1208 = vpop.permute.xlu0 %1207
        %1209 = vrot.lane.b32.xlu0 %v464, 28
        %v1210 = vpop.permute.xlu0 %1209
        %1211 = vrot.lane.b32.xlu0 %v466, 28
        %v1212 = vpop.permute.xlu0 %1211
        %1213 = vrot.lane.b32.xlu0 %v469, 28
        %v1214 = vpop.permute.xlu0 %1213
        %1215 = vrot.lane.b32.xlu0 %v471, 28
        %v1216 = vpop.permute.xlu0 %1215
        %1217 = vrot.lane.b32.xlu0 %v474, 28
        %v1218 = vpop.permute.xlu0 %1217
        %1219 = vrot.lane.b32.xlu0 %v476, 28
        %v1220 = vpop.permute.xlu0 %1219
        %1221 = vrot.lane.b32.xlu0 %v479, 28
        %v1222 = vpop.permute.xlu0 %1221
        %1223 = vrot.lane.b32.xlu0 %v481, 28
        %v1224 = vpop.permute.xlu0 %1223
        %1225 = vrot.lane.b32.xlu0 %v484, 28
        %v1226 = vpop.permute.xlu0 %1225
        %1227 = vrot.lane.b32.xlu0 %v486, 28
        %v1228 = vpop.permute.xlu0 %1227
        %1229 = vrot.lane.b32.xlu0 %v489, 28
        %v1230 = vpop.permute.xlu0 %1229
        %1231 = vrot.lane.b32.xlu0 %v491, 28
        %v1232 = vpop.permute.xlu0 %1231
        %1233 = vrot.lane.b32.xlu0 %v494, 28
        %v1234 = vpop.permute.xlu0 %1233
        %1235 = vrot.lane.b32.xlu0 %v496, 28
        %v1236 = vpop.permute.xlu0 %1235
        %1237 = vrot.lane.b32.xlu0 %v499, 28
        %v1238 = vpop.permute.xlu0 %1237
        %1239 = vrot.lane.b32.xlu0 %v501, 28
        %v1240 = vpop.permute.xlu0 %1239
        %1241 = vrot.lane.b32.xlu0 %v504, 28
        %v1242 = vpop.permute.xlu0 %1241
        %1243 = vrot.lane.b32.xlu0 %v506, 28
        %v1244 = vpop.permute.xlu0 %1243
        %1245 = vrot.lane.b32.xlu0 %v509, 28
        %v1246 = vpop.permute.xlu0 %1245
        %1247 = vrot.lane.b32.xlu0 %v511, 28
        %v1248 = vpop.permute.xlu0 %1247
        %1249 = vrot.lane.b32.xlu0 %v514, 28
        %v1250 = vpop.permute.xlu0 %1249
        %1251 = vrot.lane.b32.xlu0 %v516, 28
        %v1252 = vpop.permute.xlu0 %1251
        %1253 = vrot.lane.b32.xlu0 %v519, 28
        %v1254 = vpop.permute.xlu0 %1253
        %1255 = vrot.lane.b32.xlu0 %v521, 28
        %v1256 = vpop.permute.xlu0 %1255
        %1257 = vrot.lane.b32.xlu0 %v524, 28
        %v1258 = vpop.permute.xlu0 %1257
        %1259 = vrot.lane.b32.xlu0 %v526, 28
        %v1260 = vpop.permute.xlu0 %1259
        %1261 = vrot.lane.b32.xlu0 %v901, 28
        %v1262 = vpop.permute.xlu0 %1261
        %1263 = vrot.lane.b32.xlu0 %v903, 28
        %v1264 = vpop.permute.xlu0 %1263
        %1265 = vrot.lane.b32.xlu0 %v1202, 28
        %v1266 = vpop.permute.xlu0 %1265
        %1267 = vrot.lane.b32.xlu0 %v1204, 28
        %v1268 = vpop.permute.xlu0 %1267
        %v1301 = vrot.slane %v395, 2
        %v1302 = vrot.slane %v396, 2
        %v1303 = vsel %vm623, %v1301, %v1302
        %v1304 = vrot.slane %v397, 2
        %v1305 = vsel %vm623, %v1302, %v1304
        %1306 = vrot.lane.b32.xlu0 %v636, 32
        %v1307 = vpop.permute.xlu0 %1306
        %1308 = vrot.lane.b32.xlu0 %v638, 32
        %v1309 = vpop.permute.xlu0 %1308
        %1310 = vrot.lane.b32.xlu0 %v641, 32
        %v1311 = vpop.permute.xlu0 %1310
        %1312 = vrot.lane.b32.xlu0 %v643, 32
        %v1313 = vpop.permute.xlu0 %1312
        %1314 = vrot.lane.b32.xlu0 %v646, 32
        %v1315 = vpop.permute.xlu0 %1314
        %1316 = vrot.lane.b32.xlu0 %v648, 32
        %v1317 = vpop.permute.xlu0 %1316
        %1318 = vrot.lane.b32.xlu0 %v651, 32
        %v1319 = vpop.permute.xlu0 %1318
        %1320 = vrot.lane.b32.xlu0 %v653, 32
        %v1321 = vpop.permute.xlu0 %1320
        %1322 = vrot.lane.b32.xlu0 %v656, 32
        %v1323 = vpop.permute.xlu0 %1322
        %1324 = vrot.lane.b32.xlu0 %v658, 32
        %v1325 = vpop.permute.xlu0 %1324
        %1326 = vrot.lane.b32.xlu0 %v661, 32
        %v1327 = vpop.permute.xlu0 %1326
        %1328 = vrot.lane.b32.xlu0 %v663, 32
        %v1329 = vpop.permute.xlu0 %1328
        %1330 = vrot.lane.b32.xlu0 %v666, 32
        %v1331 = vpop.permute.xlu0 %1330
        %1332 = vrot.lane.b32.xlu0 %v668, 32
        %v1333 = vpop.permute.xlu0 %1332
        %1334 = vrot.lane.b32.xlu0 %v671, 32
        %v1335 = vpop.permute.xlu0 %1334
        %1336 = vrot.lane.b32.xlu0 %v673, 32
        %v1337 = vpop.permute.xlu0 %1336
        %1338 = vrot.lane.b32.xlu0 %v676, 32
        %v1339 = vpop.permute.xlu0 %1338
        %1340 = vrot.lane.b32.xlu0 %v678, 32
        %v1341 = vpop.permute.xlu0 %1340
        %1342 = vrot.lane.b32.xlu0 %v681, 32
        %v1343 = vpop.permute.xlu0 %1342
        %1344 = vrot.lane.b32.xlu0 %v683, 32
        %v1345 = vpop.permute.xlu0 %1344
        %1346 = vrot.lane.b32.xlu0 %v686, 32
        %v1347 = vpop.permute.xlu0 %1346
        %1348 = vrot.lane.b32.xlu0 %v688, 32
        %v1349 = vpop.permute.xlu0 %1348
        %1350 = vrot.lane.b32.xlu0 %v691, 32
        %v1351 = vpop.permute.xlu0 %1350
        %1352 = vrot.lane.b32.xlu0 %v693, 32
        %v1353 = vpop.permute.xlu0 %1352
        %1354 = vrot.lane.b32.xlu0 %v696, 32
        %v1355 = vpop.permute.xlu0 %1354
        %1356 = vrot.lane.b32.xlu0 %v698, 32
        %v1357 = vpop.permute.xlu0 %1356
        %1358 = vrot.lane.b32.xlu0 %v701, 32
        %v1359 = vpop.permute.xlu0 %1358
        %1360 = vrot.lane.b32.xlu0 %v703, 32
        %v1361 = vpop.permute.xlu0 %1360
        %1362 = vrot.lane.b32.xlu0 %v1002, 32
        %v1363 = vpop.permute.xlu0 %1362
        %1364 = vrot.lane.b32.xlu0 %v1004, 32
        %v1365 = vpop.permute.xlu0 %1364
        %1366 = vrot.lane.b32.xlu0 %v1303, 32
        %v1367 = vpop.permute.xlu0 %1366
        %1368 = vrot.lane.b32.xlu0 %v1305, 32
        %v1369 = vpop.permute.xlu0 %1368
        %v1402 = vsel %vm223, %v344, %v528
        %v1403 = vsel %vm223, %v345, %v530
        %v1404 = vsel %vm223, %v347, %v532
        %v1405 = vsel %vm223, %v348, %v534
        %v1406 = vsel %vm223, %v350, %v536
        %v1407 = vsel %vm223, %v351, %v538
        %v1408 = vsel %vm223, %v353, %v540
        %v1409 = vsel %vm223, %v354, %v542
        %v1410 = vsel %vm223, %v356, %v544
        %v1411 = vsel %vm223, %v357, %v546
        %v1412 = vsel %vm223, %v359, %v548
        %v1413 = vsel %vm223, %v360, %v550
        %v1414 = vsel %vm223, %v362, %v552
        %v1415 = vsel %vm223, %v363, %v554
        %v1416 = vsel %vm223, %v365, %v556
        %v1417 = vsel %vm223, %v366, %v558
        %v1418 = vsel %vm223, %v368, %v560
        %v1419 = vsel %vm223, %v369, %v562
        %v1420 = vsel %vm223, %v371, %v564
        %v1421 = vsel %vm223, %v372, %v566
        %v1422 = vsel %vm223, %v374, %v568
        %v1423 = vsel %vm223, %v375, %v570
        %v1424 = vsel %vm223, %v377, %v572
        %v1425 = vsel %vm223, %v378, %v574
        %v1426 = vsel %vm223, %v380, %v576
        %v1427 = vsel %vm223, %v381, %v578
        %v1428 = vsel %vm223, %v383, %v580
        %v1429 = vsel %vm223, %v384, %v582
        %v1430 = vsel %vm223, %v386, %v584
        %v1431 = vsel %vm223, %v387, %v586
        %v1432 = vsel %vm223, %v389, %v588
        %v1433 = vsel %vm223, %v390, %v590
        %vm1434 = vcmask 64512
        %v1435 = vsel %vm1434, %v1402, %v705
        %v1436 = vsel %vm1434, %v1403, %v707
        %v1437 = vsel %vm1434, %v1404, %v709
        %v1438 = vsel %vm1434, %v1405, %v711
        %v1439 = vsel %vm1434, %v1406, %v713
        %v1440 = vsel %vm1434, %v1407, %v715
        %v1441 = vsel %vm1434, %v1408, %v717
        %v1442 = vsel %vm1434, %v1409, %v719
        %v1443 = vsel %vm1434, %v1410, %v721
        %v1444 = vsel %vm1434, %v1411, %v723
        %v1445 = vsel %vm1434, %v1412, %v725
        %v1446 = vsel %vm1434, %v1413, %v727
        %v1447 = vsel %vm1434, %v1414, %v729
        %v1448 = vsel %vm1434, %v1415, %v731
        %v1449 = vsel %vm1434, %v1416, %v733
        %v1450 = vsel %vm1434, %v1417, %v735
        %v1451 = vsel %vm1434, %v1418, %v737
        %v1452 = vsel %vm1434, %v1419, %v739
        %v1453 = vsel %vm1434, %v1420, %v741
        %v1454 = vsel %vm1434, %v1421, %v743
        %v1455 = vsel %vm1434, %v1422, %v745
        %v1456 = vsel %vm1434, %v1423, %v747
        %v1457 = vsel %vm1434, %v1424, %v749
        %v1458 = vsel %vm1434, %v1425, %v751
        %v1459 = vsel %vm1434, %v1426, %v753
        %v1460 = vsel %vm1434, %v1427, %v755
        %v1461 = vsel %vm1434, %v1428, %v757
        %v1462 = vsel %vm1434, %v1429, %v759
        %v1463 = vsel %vm1434, %v1430, %v761
        %v1464 = vsel %vm1434, %v1431, %v763
        %v1465 = vsel %vm1434, %v1432, %v765
        %v1466 = vsel %vm1434, %v1433, %v767
        %vm1467 = vcmask 97280
        %v1468 = vsel %vm1467, %v1435, %v803
        %v1469 = vsel %vm1467, %v1436, %v805
        %v1470 = vsel %vm1467, %v1437, %v807
        %v1471 = vsel %vm1467, %v1438, %v809
        %v1472 = vsel %vm1467, %v1439, %v811
        %v1473 = vsel %vm1467, %v1440, %v813
        %v1474 = vsel %vm1467, %v1441, %v815
        %v1475 = vsel %vm1467, %v1442, %v817
        %v1476 = vsel %vm1467, %v1443, %v819
        %v1477 = vsel %vm1467, %v1444, %v821
        %v1478 = vsel %vm1467, %v1445, %v823
        %v1479 = vsel %vm1467, %v1446, %v825
        %v1480 = vsel %vm1467, %v1447, %v827
        %v1481 = vsel %vm1467, %v1448, %v829
        %v1482 = vsel %vm1467, %v1449, %v831
        %v1483 = vsel %vm1467, %v1450, %v833
        %v1484 = vsel %vm1467, %v1451, %v835
        %v1485 = vsel %vm1467, %v1452, %v837
        %v1486 = vsel %vm1467, %v1453, %v839
        %v1487 = vsel %vm1467, %v1454, %v841
        %v1488 = vsel %vm1467, %v1455, %v843
        %v1489 = vsel %vm1467, %v1456, %v845
        %v1490 = vsel %vm1467, %v1457, %v847
        %v1491 = vsel %vm1467, %v1458, %v849
        %v1492 = vsel %vm1467, %v1459, %v851
        %v1493 = vsel %vm1467, %v1460, %v853
        %v1494 = vsel %vm1467, %v1461, %v855
        %v1495 = vsel %vm1467, %v1462, %v857
        %v1496 = vsel %vm1467, %v1463, %v859
        %v1497 = vsel %vm1467, %v1464, %v861
        %v1498 = vsel %vm1467, %v1465, %v863
        %v1499 = vsel %vm1467, %v1466, %v865
        %vm1500 = vcmask 130048
        %v1501 = vsel %vm1500, %v1468, %v905
        %v1502 = vsel %vm1500, %v1469, %v907
        %v1503 = vsel %vm1500, %v1470, %v909
        %v1504 = vsel %vm1500, %v1471, %v911
        %v1505 = vsel %vm1500, %v1472, %v913
        %v1506 = vsel %vm1500, %v1473, %v915
        %v1507 = vsel %vm1500, %v1474, %v917
        %v1508 = vsel %vm1500, %v1475, %v919
        %v1509 = vsel %vm1500, %v1476, %v921
        %v1510 = vsel %vm1500, %v1477, %v923
        %v1511 = vsel %vm1500, %v1478, %v925
        %v1512 = vsel %vm1500, %v1479, %v927
        %v1513 = vsel %vm1500, %v1480, %v929
        %v1514 = vsel %vm1500, %v1481, %v931
        %v1515 = vsel %vm1500, %v1482, %v933
        %v1516 = vsel %vm1500, %v1483, %v935
        %v1517 = vsel %vm1500, %v1484, %v937
        %v1518 = vsel %vm1500, %v1485, %v939
        %v1519 = vsel %vm1500, %v1486, %v941
        %v1520 = vsel %vm1500, %v1487, %v943
        %v1521 = vsel %vm1500, %v1488, %v945
        %v1522 = vsel %vm1500, %v1489, %v947
        %v1523 = vsel %vm1500, %v1490, %v949
        %v1524 = vsel %vm1500, %v1491, %v951
        %v1525 = vsel %vm1500, %v1492, %v953
        %v1526 = vsel %vm1500, %v1493, %v955
        %v1527 = vsel %vm1500, %v1494, %v957
        %v1528 = vsel %vm1500, %v1495, %v959
        %v1529 = vsel %vm1500, %v1496, %v961
        %v1530 = vsel %vm1500, %v1497, %v963
        %v1531 = vsel %vm1500, %v1498, %v965
        %v1532 = vsel %vm1500, %v1499, %v967
        %vm1533 = vcmask 162816
        %v1534 = vsel %vm1533, %v1501, %v1006
        %v1535 = vsel %vm1533, %v1502, %v1008
        %v1536 = vsel %vm1533, %v1503, %v1010
        %v1537 = vsel %vm1533, %v1504, %v1012
        %v1538 = vsel %vm1533, %v1505, %v1014
        %v1539 = vsel %vm1533, %v1506, %v1016
        %v1540 = vsel %vm1533, %v1507, %v1018
        %v1541 = vsel %vm1533, %v1508, %v1020
        %v1542 = vsel %vm1533, %v1509, %v1022
        %v1543 = vsel %vm1533, %v1510, %v1024
        %v1544 = vsel %vm1533, %v1511, %v1026
        %v1545 = vsel %vm1533, %v1512, %v1028
        %v1546 = vsel %vm1533, %v1513, %v1030
        %v1547 = vsel %vm1533, %v1514, %v1032
        %v1548 = vsel %vm1533, %v1515, %v1034
        %v1549 = vsel %vm1533, %v1516, %v1036
        %v1550 = vsel %vm1533, %v1517, %v1038
        %v1551 = vsel %vm1533, %v1518, %v1040
        %v1552 = vsel %vm1533, %v1519, %v1042
        %v1553 = vsel %vm1533, %v1520, %v1044
        %v1554 = vsel %vm1533, %v1521, %v1046
        %v1555 = vsel %vm1533, %v1522, %v1048
        %v1556 = vsel %vm1533, %v1523, %v1050
        %v1557 = vsel %vm1533, %v1524, %v1052
        %v1558 = vsel %vm1533, %v1525, %v1054
        %v1559 = vsel %vm1533, %v1526, %v1056
        %v1560 = vsel %vm1533, %v1527, %v1058
        %v1561 = vsel %vm1533, %v1528, %v1060
        %v1562 = vsel %vm1533, %v1529, %v1062
        %v1563 = vsel %vm1533, %v1530, %v1064
        %v1564 = vsel %vm1533, %v1531, %v1066
        %v1565 = vsel %vm1533, %v1532, %v1068
        %vm1566 = vcmask 195584
        %v1567 = vsel %vm1566, %v1534, %v1104
        %v1568 = vsel %vm1566, %v1535, %v1106
        %v1569 = vsel %vm1566, %v1536, %v1108
        %v1570 = vsel %vm1566, %v1537, %v1110
        %v1571 = vsel %vm1566, %v1538, %v1112
        %v1572 = vsel %vm1566, %v1539, %v1114
        %v1573 = vsel %vm1566, %v1540, %v1116
        %v1574 = vsel %vm1566, %v1541, %v1118
        %v1575 = vsel %vm1566, %v1542, %v1120
        %v1576 = vsel %vm1566, %v1543, %v1122
        %v1577 = vsel %vm1566, %v1544, %v1124
        %v1578 = vsel %vm1566, %v1545, %v1126
        %v1579 = vsel %vm1566, %v1546, %v1128
        %v1580 = vsel %vm1566, %v1547, %v1130
        %v1581 = vsel %vm1566, %v1548, %v1132
        %v1582 = vsel %vm1566, %v1549, %v1134
        %v1583 = vsel %vm1566, %v1550, %v1136
        %v1584 = vsel %vm1566, %v1551, %v1138
        %v1585 = vsel %vm1566, %v1552, %v1140
        %v1586 = vsel %vm1566, %v1553, %v1142
        %v1587 = vsel %vm1566, %v1554, %v1144
        %v1588 = vsel %vm1566, %v1555, %v1146
        %v1589 = vsel %vm1566, %v1556, %v1148
        %v1590 = vsel %vm1566, %v1557, %v1150
        %v1591 = vsel %vm1566, %v1558, %v1152
        %v1592 = vsel %vm1566, %v1559, %v1154
        %v1593 = vsel %vm1566, %v1560, %v1156
        %v1594 = vsel %vm1566, %v1561, %v1158
        %v1595 = vsel %vm1566, %v1562, %v1160
        %v1596 = vsel %vm1566, %v1563, %v1162
        %v1597 = vsel %vm1566, %v1564, %v1164
        %v1598 = vsel %vm1566, %v1565, %v1166
        %vm1599 = vcmask 228352
        %v1600 = vsel %vm1599, %v1567, %v1206
        %v1601 = vsel %vm1599, %v1568, %v1208
        %v1602 = vsel %vm1599, %v1569, %v1210
        %v1603 = vsel %vm1599, %v1570, %v1212
        %v1604 = vsel %vm1599, %v1571, %v1214
        %v1605 = vsel %vm1599, %v1572, %v1216
        %v1606 = vsel %vm1599, %v1573, %v1218
        %v1607 = vsel %vm1599, %v1574, %v1220
        %v1608 = vsel %vm1599, %v1575, %v1222
        %v1609 = vsel %vm1599, %v1576, %v1224
        %v1610 = vsel %vm1599, %v1577, %v1226
        %v1611 = vsel %vm1599, %v1578, %v1228
        %v1612 = vsel %vm1599, %v1579, %v1230
        %v1613 = vsel %vm1599, %v1580, %v1232
        %v1614 = vsel %vm1599, %v1581, %v1234
        %v1615 = vsel %vm1599, %v1582, %v1236
        %v1616 = vsel %vm1599, %v1583, %v1238
        %v1617 = vsel %vm1599, %v1584, %v1240
        %v1618 = vsel %vm1599, %v1585, %v1242
        %v1619 = vsel %vm1599, %v1586, %v1244
        %v1620 = vsel %vm1599, %v1587, %v1246
        %v1621 = vsel %vm1599, %v1588, %v1248
        %v1622 = vsel %vm1599, %v1589, %v1250
        %v1623 = vsel %vm1599, %v1590, %v1252
        %v1624 = vsel %vm1599, %v1591, %v1254
        %v1625 = vsel %vm1599, %v1592, %v1256
        %v1626 = vsel %vm1599, %v1593, %v1258
        %v1627 = vsel %vm1599, %v1594, %v1260
        %v1628 = vsel %vm1599, %v1595, %v1262
        %v1629 = vsel %vm1599, %v1596, %v1264
        %v1630 = vsel %vm1599, %v1597, %v1266
        %v1631 = vsel %vm1599, %v1598, %v1268
        %vm1632 = vcmask 261120
        %v1633 = vsel %vm1632, %v1600, %v1307
        %v1634 = vsel %vm1632, %v1601, %v1309
        %v1635 = vsel %vm1632, %v1602, %v1311
        %v1636 = vsel %vm1632, %v1603, %v1313
        %v1637 = vsel %vm1632, %v1604, %v1315
        %v1638 = vsel %vm1632, %v1605, %v1317
        %v1639 = vsel %vm1632, %v1606, %v1319
        %v1640 = vsel %vm1632, %v1607, %v1321
        %v1641 = vsel %vm1632, %v1608, %v1323
        %v1642 = vsel %vm1632, %v1609, %v1325
        %v1643 = vsel %vm1632, %v1610, %v1327
        %v1644 = vsel %vm1632, %v1611, %v1329
        %v1645 = vsel %vm1632, %v1612, %v1331
        %v1646 = vsel %vm1632, %v1613, %v1333
        %v1647 = vsel %vm1632, %v1614, %v1335
        %v1648 = vsel %vm1632, %v1615, %v1337
        %v1649 = vsel %vm1632, %v1616, %v1339
        %v1650 = vsel %vm1632, %v1617, %v1341
        %v1651 = vsel %vm1632, %v1618, %v1343
        %v1652 = vsel %vm1632, %v1619, %v1345
        %v1653 = vsel %vm1632, %v1620, %v1347
        %v1654 = vsel %vm1632, %v1621, %v1349
        %v1655 = vsel %vm1632, %v1622, %v1351
        %v1656 = vsel %vm1632, %v1623, %v1353
        %v1657 = vsel %vm1632, %v1624, %v1355
        %v1658 = vsel %vm1632, %v1625, %v1357
        %v1659 = vsel %vm1632, %v1626, %v1359
        %v1660 = vsel %vm1632, %v1627, %v1361
        %v1661 = vsel %vm1632, %v1628, %v1363
        %v1662 = vsel %vm1632, %v1629, %v1365
        %v1663 = vsel %vm1632, %v1630, %v1367
        %v1664 = vsel %vm1632, %v1631, %v1369
        %v1665 = vld [vmem:[%s1] sm:$0xff]
        %v1666 = vld [vmem:[%s1 + $0x8] sm:$0xff]
        %v1667 = vld [vmem:[%s1 + $0x10] sm:$0xff]
        %v1668 = vld [vmem:[%s1 + $0x18] sm:$0xff]
        %v1669 = vld [vmem:[%s1 + $0x20] sm:$0xf]
        %v1670 = vld [vmem:[%s2] sm:$0x1]
        %v1672 = vlaneseq
        %v1673 = vshrl.u32 %v1672, 7
        %v1674 = vsub.s32 0, %v1673
        %v1675 = vrot.slane %v1670, %v1674
        %vm1677 = vcmask 293888
        %v1679 = vsel %vm1677, %v1633, 0
        %v1682 = vsel %vm1677, %v1634, 0
        %v1685 = vsel %vm1677, %v1635, 0
        %v1688 = vsel %vm1677, %v1636, 0
        %v1691 = vsel %vm1677, %v1637, 0
        %v1694 = vsel %vm1677, %v1638, 0
        %v1697 = vsel %vm1677, %v1639, 0
        %v1700 = vsel %vm1677, %v1640, 0
        %v1703 = vsel %vm1677, %v1641, 0
        %v1706 = vsel %vm1677, %v1642, 0
        %v1709 = vsel %vm1677, %v1643, 0
        %v1712 = vsel %vm1677, %v1644, 0
        %v1715 = vsel %vm1677, %v1645, 0
        %v1718 = vsel %vm1677, %v1646, 0
        %v1721 = vsel %vm1677, %v1647, 0
        %v1724 = vsel %vm1677, %v1648, 0
        %v1727 = vsel %vm1677, %v1649, 0
        %v1730 = vsel %vm1677, %v1650, 0
        %v1733 = vsel %vm1677, %v1651, 0
        %v1736 = vsel %vm1677, %v1652, 0
        %v1739 = vsel %vm1677, %v1653, 0
        %v1742 = vsel %vm1677, %v1654, 0
        %v1745 = vsel %vm1677, %v1655, 0
        %v1748 = vsel %vm1677, %v1656, 0
        %v1751 = vsel %vm1677, %v1657, 0
        %v1754 = vsel %vm1677, %v1658, 0
        %v1757 = vsel %vm1677, %v1659, 0
        %v1760 = vsel %vm1677, %v1660, 0
        %v1763 = vsel %vm1677, %v1661, 0
        %v1766 = vsel %vm1677, %v1662, 0
        %v1769 = vsel %vm1677, %v1663, 0
        %v1772 = vsel %vm1677, %v1664, 0
        %vm1774 = vcmask 1043456
        %v1776 = vsel %vm1774, %v1669, 0
        %1778 = vmatprep.subr.mxu0 0.0
        %1779 = vmatpush1.msra.mxu0 0.0
        %1780 = vmatprep.subr.mxu0 0.0
        %1781 = vmatpush1.msra.mxu0 0.0
        %1782 = vmatprep.subr.mxu0 0.0
        %1783 = vmatpush1.msra.mxu0 0.0
        %1784 = vmatprep.subr.mxu0 0.0
        %1785 = vmatpush1.msra.mxu0 0.0
        %1786 = vmatprep.subr.mxu0 0.0
        %1787 = vmatpush1.msra.mxu0 0.0
        %1788 = vmatprep.subr.mxu0 0.0
        %1789 = vmatpush1.msra.mxu0 0.0
        %1790 = vmatprep.subr.mxu0 0.0
        %1791 = vmatpush1.msra.mxu0 0.0
        %1792 = vmatprep.subr.mxu0 0.0
        %1793 = vmatpush1.msra.mxu0 0.0
        %1794 = vmatprep.subr.mxu0 0.0
        %1795 = vmatpush1.msra.mxu0 0.0
        %1796 = vmatprep.subr.mxu0 0.0
        %1797 = vmatpush1.msra.mxu0 0.0
        %1798 = vmatprep.subr.mxu0 0.0
        %1799 = vmatpush1.msra.mxu0 0.0
        %1800 = vmatprep.subr.mxu0 0.0
        %1801 = vmatpush1.msra.mxu0 %v1776
        %1802 = vmatprep.subr.mxu0 0.0
        %1803 = vmatpush1.msra.mxu0 %v1668
        %1804 = vmatprep.subr.mxu0 0.0
        %1805 = vmatpush1.msra.mxu0 %v1667
        %1806 = vmatprep.subr.mxu0 0.0
        %1807 = vmatpush1.msra.mxu0 %v1666
        %1808 = vmatprep.subr.mxu0 0.0
        %1809 = vmatpush1.msra.mxu0 %v1665
        %1810 = vmatprep.subr.mxu0 0.0
        %1811 = vmatpush2.msra.mxu0 0.0
        %1812 = vmatprep.subr.mxu0 0.0
        %1813 = vmatpush2.msra.mxu0 0.0
        %1814 = vmatprep.subr.mxu0 0.0
        %1815 = vmatpush2.msra.mxu0 0.0
        %1816 = vmatprep.subr.mxu0 0.0
        %1817 = vmatpush2.msra.mxu0 0.0
        %1818 = vmatprep.subr.mxu0 0.0
        %1819 = vmatpush2.msra.mxu0 0.0
        %1820 = vmatprep.subr.mxu0 0.0
        %1821 = vmatpush2.msra.mxu0 0.0
        %1822 = vmatprep.subr.mxu0 0.0
        %1823 = vmatpush2.msra.mxu0 0.0
        %1824 = vmatprep.subr.mxu0 0.0
        %1825 = vmatpush2.msra.mxu0 0.0
        %1826 = vmatprep.subr.mxu0 0.0
        %1827 = vmatpush2.msra.mxu0 0.0
        %1828 = vmatprep.subr.mxu0 0.0
        %1829 = vmatpush2.msra.mxu0 0.0
        %1830 = vmatprep.subr.mxu0 0.0
        %1831 = vmatpush2.msra.mxu0 0.0
        %1832 = vmatprep.subr.mxu0 0.0
        %1833 = vmatpush2.msra.mxu0 0.0
        %1834 = vmatprep.subr.mxu0 0.0
        %1835 = vmatpush2.msra.mxu0 0.0
        %1836 = vmatprep.subr.mxu0 0.0
        %1837 = vmatpush2.msra.mxu0 0.0
        %1838 = vmatprep.subr.mxu0 0.0
        %1839 = vmatpush2.msra.mxu0 0.0
        %1840 = vmatprep.subr.mxu0 0.0
        %1841 = vmatpush2.msra.mxu0 0.0
        %1842 = vmatprep.mubr.f32.mxu0 0.0
        %1843 = vmatmul.mubr.f32.gmra.mxu0 %v1679
        %v1844 = vpop.f32.mrf.mxu0
        %v1845 = vadd.f32 %v1675, %v1844
        %v1846 = vpop.f32.mrf.mxu0
        %1847 = vmatprep.mubr.f32.mxu0 0.0
        %1848 = vmatmul.mubr.f32.gmra.mxu0 %v1682
        %v1849 = vpop.f32.mrf.mxu0
        %v1850 = vadd.f32 %v1675, %v1849
        %v1851 = vpop.f32.mrf.mxu0
        %1852 = vmatprep.mubr.f32.mxu0 0.0
        %1853 = vmatmul.mubr.f32.gmra.mxu0 %v1685
        %v1854 = vpop.f32.mrf.mxu0
        %v1855 = vadd.f32 %v1675, %v1854
        %v1856 = vpop.f32.mrf.mxu0
        %1857 = vmatprep.mubr.f32.mxu0 0.0
        %1858 = vmatmul.mubr.f32.gmra.mxu0 %v1688
        %v1859 = vpop.f32.mrf.mxu0
        %v1860 = vadd.f32 %v1675, %v1859
        %v1861 = vpop.f32.mrf.mxu0
        %1862 = vmatprep.mubr.f32.mxu0 0.0
        %1863 = vmatmul.mubr.f32.gmra.mxu0 %v1691
        %v1864 = vpop.f32.mrf.mxu0
        %v1865 = vadd.f32 %v1675, %v1864
        %v1866 = vpop.f32.mrf.mxu0
        %1867 = vmatprep.mubr.f32.mxu0 0.0
        %1868 = vmatmul.mubr.f32.gmra.mxu0 %v1694
        %v1869 = vpop.f32.mrf.mxu0
        %v1870 = vadd.f32 %v1675, %v1869
        %v1871 = vpop.f32.mrf.mxu0
        %1872 = vmatprep.mubr.f32.mxu0 0.0
        %1873 = vmatmul.mubr.f32.gmra.mxu0 %v1697
        %v1874 = vpop.f32.mrf.mxu0
        %v1875 = vadd.f32 %v1675, %v1874
        %v1876 = vpop.f32.mrf.mxu0
        %1877 = vmatprep.mubr.f32.mxu0 0.0
        %1878 = vmatmul.mubr.f32.gmra.mxu0 %v1700
        %v1879 = vpop.f32.mrf.mxu0
        %v1880 = vadd.f32 %v1675, %v1879
        %v1881 = vpop.f32.mrf.mxu0
        %1882 = vmatprep.mubr.f32.mxu0 0.0
        %1883 = vmatmul.mubr.f32.gmra.mxu0 %v1703
        %v1884 = vpop.f32.mrf.mxu0
        %v1885 = vadd.f32 %v1675, %v1884
        %v1886 = vpop.f32.mrf.mxu0
        %1887 = vmatprep.mubr.f32.mxu0 0.0
        %1888 = vmatmul.mubr.f32.gmra.mxu0 %v1706
        %v1889 = vpop.f32.mrf.mxu0
        %v1890 = vadd.f32 %v1675, %v1889
        %v1891 = vpop.f32.mrf.mxu0
        %1892 = vmatprep.mubr.f32.mxu0 0.0
        %1893 = vmatmul.mubr.f32.gmra.mxu0 %v1709
        %v1894 = vpop.f32.mrf.mxu0
        %v1895 = vadd.f32 %v1675, %v1894
        %v1896 = vpop.f32.mrf.mxu0
        %1897 = vmatprep.mubr.f32.mxu0 0.0
        %1898 = vmatmul.mubr.f32.gmra.mxu0 %v1712
        %v1899 = vpop.f32.mrf.mxu0
        %v1900 = vadd.f32 %v1675, %v1899
        %v1901 = vpop.f32.mrf.mxu0
        %1902 = vmatprep.mubr.f32.mxu0 0.0
        %1903 = vmatmul.mubr.f32.gmra.mxu0 %v1715
        %v1904 = vpop.f32.mrf.mxu0
        %v1905 = vadd.f32 %v1675, %v1904
        %v1906 = vpop.f32.mrf.mxu0
        %1907 = vmatprep.mubr.f32.mxu0 0.0
        %1908 = vmatmul.mubr.f32.gmra.mxu0 %v1718
        %v1909 = vpop.f32.mrf.mxu0
        %v1910 = vadd.f32 %v1675, %v1909
        %v1911 = vpop.f32.mrf.mxu0
        %1912 = vmatprep.mubr.f32.mxu0 0.0
        %1913 = vmatmul.mubr.f32.gmra.mxu0 %v1721
        %v1914 = vpop.f32.mrf.mxu0
        %v1915 = vadd.f32 %v1675, %v1914
        %v1916 = vpop.f32.mrf.mxu0
        %1917 = vmatprep.mubr.f32.mxu0 0.0
        %1918 = vmatmul.mubr.f32.gmra.mxu0 %v1724
        %v1919 = vpop.f32.mrf.mxu0
        %v1920 = vadd.f32 %v1675, %v1919
        %v1921 = vpop.f32.mrf.mxu0
        %1922 = vmatprep.mubr.f32.mxu0 0.0
        %1923 = vmatmul.mubr.f32.gmra.mxu0 %v1727
        %v1924 = vpop.f32.mrf.mxu0
        %v1925 = vadd.f32 %v1675, %v1924
        %v1926 = vpop.f32.mrf.mxu0
        %1927 = vmatprep.mubr.f32.mxu0 0.0
        %1928 = vmatmul.mubr.f32.gmra.mxu0 %v1730
        %v1929 = vpop.f32.mrf.mxu0
        %v1930 = vadd.f32 %v1675, %v1929
        %v1931 = vpop.f32.mrf.mxu0
        %1932 = vmatprep.mubr.f32.mxu0 0.0
        %1933 = vmatmul.mubr.f32.gmra.mxu0 %v1733
        %v1934 = vpop.f32.mrf.mxu0
        %v1935 = vadd.f32 %v1675, %v1934
        %v1936 = vpop.f32.mrf.mxu0
        %1937 = vmatprep.mubr.f32.mxu0 0.0
        %1938 = vmatmul.mubr.f32.gmra.mxu0 %v1736
        %v1939 = vpop.f32.mrf.mxu0
        %v1940 = vadd.f32 %v1675, %v1939
        %v1941 = vpop.f32.mrf.mxu0
        %1942 = vmatprep.mubr.f32.mxu0 0.0
        %1943 = vmatmul.mubr.f32.gmra.mxu0 %v1739
        %v1944 = vpop.f32.mrf.mxu0
        %v1945 = vadd.f32 %v1675, %v1944
        %v1946 = vpop.f32.mrf.mxu0
        %1947 = vmatprep.mubr.f32.mxu0 0.0
        %1948 = vmatmul.mubr.f32.gmra.mxu0 %v1742
        %v1949 = vpop.f32.mrf.mxu0
        %v1950 = vadd.f32 %v1675, %v1949
        %v1951 = vpop.f32.mrf.mxu0
        %1952 = vmatprep.mubr.f32.mxu0 0.0
        %1953 = vmatmul.mubr.f32.gmra.mxu0 %v1745
        %v1954 = vpop.f32.mrf.mxu0
        %v1955 = vadd.f32 %v1675, %v1954
        %v1956 = vpop.f32.mrf.mxu0
        %1957 = vmatprep.mubr.f32.mxu0 0.0
        %1958 = vmatmul.mubr.f32.gmra.mxu0 %v1748
        %v1959 = vpop.f32.mrf.mxu0
        %v1960 = vadd.f32 %v1675, %v1959
        %v1961 = vpop.f32.mrf.mxu0
        %1962 = vmatprep.mubr.f32.mxu0 0.0
        %1963 = vmatmul.mubr.f32.gmra.mxu0 %v1751
        %v1964 = vpop.f32.mrf.mxu0
        %v1965 = vadd.f32 %v1675, %v1964
        %v1966 = vpop.f32.mrf.mxu0
        %1967 = vmatprep.mubr.f32.mxu0 0.0
        %1968 = vmatmul.mubr.f32.gmra.mxu0 %v1754
        %v1969 = vpop.f32.mrf.mxu0
        %v1970 = vadd.f32 %v1675, %v1969
        %v1971 = vpop.f32.mrf.mxu0
        %1972 = vmatprep.mubr.f32.mxu0 0.0
        %1973 = vmatmul.mubr.f32.gmra.mxu0 %v1757
        %v1974 = vpop.f32.mrf.mxu0
        %v1975 = vadd.f32 %v1675, %v1974
        %v1976 = vpop.f32.mrf.mxu0
        %1977 = vmatprep.mubr.f32.mxu0 0.0
        %1978 = vmatmul.mubr.f32.gmra.mxu0 %v1760
        %v1979 = vpop.f32.mrf.mxu0
        %v1980 = vadd.f32 %v1675, %v1979
        %v1981 = vpop.f32.mrf.mxu0
        %1982 = vmatprep.mubr.f32.mxu0 0.0
        %1983 = vmatmul.mubr.f32.gmra.mxu0 %v1763
        %v1984 = vpop.f32.mrf.mxu0
        %v1985 = vadd.f32 %v1675, %v1984
        %v1986 = vpop.f32.mrf.mxu0
        %1987 = vmatprep.mubr.f32.mxu0 0.0
        %1988 = vmatmul.mubr.f32.gmra.mxu0 %v1766
        %v1989 = vpop.f32.mrf.mxu0
        %v1990 = vadd.f32 %v1675, %v1989
        %v1991 = vpop.f32.mrf.mxu0
        %1992 = vmatprep.mubr.f32.mxu0 0.0
        %1993 = vmatmul.mubr.f32.gmra.mxu0 %v1769
        %v1994 = vpop.f32.mrf.mxu0
        %v1995 = vadd.f32 %v1675, %v1994
        %v1996 = vpop.f32.mrf.mxu0
        %1997 = vmatprep.mubr.f32.mxu0 0.0
        %1998 = vmatmul.mubr.f32.gmra.mxu0 %v1772
        %v1999 = vpop.f32.mrf.mxu0
        %v2000 = vadd.f32 %v1675, %v1999
        %v2001 = vpop.f32.mrf.mxu0
        %2002 = vdwg.mxu0
        %v2003 = vtanh.pop %v1845
        %v2004 = vtanh.pop %v1850
        %v2005 = vtanh.pop %v1855
        %v2006 = vtanh.pop %v1860
        %v2007 = vtanh.pop %v1865
        %v2008 = vtanh.pop %v1870
        %v2009 = vtanh.pop %v1875
        %v2010 = vtanh.pop %v1880
        %v2011 = vtanh.pop %v1885
        %v2012 = vtanh.pop %v1890
        %v2013 = vtanh.pop %v1895
        %v2014 = vtanh.pop %v1900
        %v2015 = vtanh.pop %v1905
        %v2016 = vtanh.pop %v1910
        %v2017 = vtanh.pop %v1915
        %v2018 = vtanh.pop %v1920
        %v2019 = vtanh.pop %v1925
        %v2020 = vtanh.pop %v1930
        %v2021 = vtanh.pop %v1935
        %v2022 = vtanh.pop %v1940
        %v2023 = vtanh.pop %v1945
        %v2024 = vtanh.pop %v1950
        %v2025 = vtanh.pop %v1955
        %v2026 = vtanh.pop %v1960
        %v2027 = vtanh.pop %v1965
        %v2028 = vtanh.pop %v1970
        %v2029 = vtanh.pop %v1975
        %v2030 = vtanh.pop %v1980
        %v2031 = vtanh.pop %v1985
        %v2032 = vtanh.pop %v1990
        %v2033 = vtanh.pop %v1995
        %v2034 = vtanh.pop %v2000
        %v2067 = vcombine.high %v2003, %v2003
        %v2069 = vunpack.c.l.s4 1983009808
        %v2070 = vunpack.c.0.s8 %v2069
        %v2071 = vlaneseq
        %v2072 = vshrl.u32 %v2071, 7
        %v2073 = vsub.s32 %v2070, %v2072
        %v2074 = vrot.slane %v2003, %v2073
        %v2076 = vunpack.c.l.s4 1983009808
        %v2077 = vunpack.c.0.s8 %v2076
        %v2078 = vlaneseq
        %v2079 = vshrl.u32 %v2078, 7
        %v2080 = vsub.s32 %v2077, %v2079
        %v2081 = vrot.slane %v2067, %v2080
        %v2082 = vcombine.high %v2074, %v2074
        %v2083 = vcombine.high %v2081, %v2081
        %v2084 = vcombine.high %v2004, %v2004
        %v2086 = vunpack.c.l.s4 1983009808
        %v2087 = vunpack.c.0.s8 %v2086
        %v2088 = vlaneseq
        %v2089 = vshrl.u32 %v2088, 7
        %v2090 = vsub.s32 %v2087, %v2089
        %v2091 = vrot.slane %v2004, %v2090
        %v2093 = vunpack.c.l.s4 1983009808
        %v2094 = vunpack.c.0.s8 %v2093
        %v2095 = vlaneseq
        %v2096 = vshrl.u32 %v2095, 7
        %v2097 = vsub.s32 %v2094, %v2096
        %v2098 = vrot.slane %v2084, %v2097
        %v2099 = vcombine.high %v2091, %v2091
        %v2100 = vcombine.high %v2098, %v2098
        %v2101 = vcombine.high %v2005, %v2005
        %v2103 = vunpack.c.l.s4 1983009808
        %v2104 = vunpack.c.0.s8 %v2103
        %v2105 = vlaneseq
        %v2106 = vshrl.u32 %v2105, 7
        %v2107 = vsub.s32 %v2104, %v2106
        %v2108 = vrot.slane %v2005, %v2107
        %v2110 = vunpack.c.l.s4 1983009808
        %v2111 = vunpack.c.0.s8 %v2110
        %v2112 = vlaneseq
        %v2113 = vshrl.u32 %v2112, 7
        %v2114 = vsub.s32 %v2111, %v2113
        %v2115 = vrot.slane %v2101, %v2114
        %v2116 = vcombine.high %v2108, %v2108
        %v2117 = vcombine.high %v2115, %v2115
        %v2118 = vcombine.high %v2006, %v2006
        %v2120 = vunpack.c.l.s4 1983009808
        %v2121 = vunpack.c.0.s8 %v2120
        %v2122 = vlaneseq
        %v2123 = vshrl.u32 %v2122, 7
        %v2124 = vsub.s32 %v2121, %v2123
        %v2125 = vrot.slane %v2006, %v2124
        %v2127 = vunpack.c.l.s4 1983009808
        %v2128 = vunpack.c.0.s8 %v2127
        %v2129 = vlaneseq
        %v2130 = vshrl.u32 %v2129, 7
        %v2131 = vsub.s32 %v2128, %v2130
        %v2132 = vrot.slane %v2118, %v2131
        %v2133 = vcombine.high %v2125, %v2125
        %v2134 = vcombine.high %v2132, %v2132
        %v2135 = vcombine.high %v2007, %v2007
        %v2137 = vunpack.c.l.s4 1983009808
        %v2138 = vunpack.c.0.s8 %v2137
        %v2139 = vlaneseq
        %v2140 = vshrl.u32 %v2139, 7
        %v2141 = vsub.s32 %v2138, %v2140
        %v2142 = vrot.slane %v2007, %v2141
        %v2144 = vunpack.c.l.s4 1983009808
        %v2145 = vunpack.c.0.s8 %v2144
        %v2146 = vlaneseq
        %v2147 = vshrl.u32 %v2146, 7
        %v2148 = vsub.s32 %v2145, %v2147
        %v2149 = vrot.slane %v2135, %v2148
        %v2150 = vcombine.high %v2142, %v2142
        %v2151 = vcombine.high %v2149, %v2149
        %v2152 = vcombine.high %v2008, %v2008
        %v2154 = vunpack.c.l.s4 1983009808
        %v2155 = vunpack.c.0.s8 %v2154
        %v2156 = vlaneseq
        %v2157 = vshrl.u32 %v2156, 7
        %v2158 = vsub.s32 %v2155, %v2157
        %v2159 = vrot.slane %v2008, %v2158
        %v2161 = vunpack.c.l.s4 1983009808
        %v2162 = vunpack.c.0.s8 %v2161
        %v2163 = vlaneseq
        %v2164 = vshrl.u32 %v2163, 7
        %v2165 = vsub.s32 %v2162, %v2164
        %v2166 = vrot.slane %v2152, %v2165
        %v2167 = vcombine.high %v2159, %v2159
        %v2168 = vcombine.high %v2166, %v2166
        %v2169 = vcombine.high %v2009, %v2009
        %v2171 = vunpack.c.l.s4 1983009808
        %v2172 = vunpack.c.0.s8 %v2171
        %v2173 = vlaneseq
        %v2174 = vshrl.u32 %v2173, 7
        %v2175 = vsub.s32 %v2172, %v2174
        %v2176 = vrot.slane %v2009, %v2175
        %v2178 = vunpack.c.l.s4 1983009808
        %v2179 = vunpack.c.0.s8 %v2178
        %v2180 = vlaneseq
        %v2181 = vshrl.u32 %v2180, 7
        %v2182 = vsub.s32 %v2179, %v2181
        %v2183 = vrot.slane %v2169, %v2182
        %v2184 = vcombine.high %v2176, %v2176
        %v2185 = vcombine.high %v2183, %v2183
        %v2186 = vcombine.high %v2010, %v2010
        %v2188 = vunpack.c.l.s4 1983009808
        %v2189 = vunpack.c.0.s8 %v2188
        %v2190 = vlaneseq
        %v2191 = vshrl.u32 %v2190, 7
        %v2192 = vsub.s32 %v2189, %v2191
        %v2193 = vrot.slane %v2010, %v2192
        %v2195 = vunpack.c.l.s4 1983009808
        %v2196 = vunpack.c.0.s8 %v2195
        %v2197 = vlaneseq
        %v2198 = vshrl.u32 %v2197, 7
        %v2199 = vsub.s32 %v2196, %v2198
        %v2200 = vrot.slane %v2186, %v2199
        %v2201 = vcombine.high %v2193, %v2193
        %v2202 = vcombine.high %v2200, %v2200
        %v2203 = vcombine.high %v2011, %v2011
        %v2205 = vunpack.c.l.s4 1983009808
        %v2206 = vunpack.c.0.s8 %v2205
        %v2207 = vlaneseq
        %v2208 = vshrl.u32 %v2207, 7
        %v2209 = vsub.s32 %v2206, %v2208
        %v2210 = vrot.slane %v2011, %v2209
        %v2212 = vunpack.c.l.s4 1983009808
        %v2213 = vunpack.c.0.s8 %v2212
        %v2214 = vlaneseq
        %v2215 = vshrl.u32 %v2214, 7
        %v2216 = vsub.s32 %v2213, %v2215
        %v2217 = vrot.slane %v2203, %v2216
        %v2218 = vcombine.high %v2210, %v2210
        %v2219 = vcombine.high %v2217, %v2217
        %v2220 = vcombine.high %v2012, %v2012
        %v2222 = vunpack.c.l.s4 1983009808
        %v2223 = vunpack.c.0.s8 %v2222
        %v2224 = vlaneseq
        %v2225 = vshrl.u32 %v2224, 7
        %v2226 = vsub.s32 %v2223, %v2225
        %v2227 = vrot.slane %v2012, %v2226
        %v2229 = vunpack.c.l.s4 1983009808
        %v2230 = vunpack.c.0.s8 %v2229
        %v2231 = vlaneseq
        %v2232 = vshrl.u32 %v2231, 7
        %v2233 = vsub.s32 %v2230, %v2232
        %v2234 = vrot.slane %v2220, %v2233
        %v2235 = vcombine.high %v2227, %v2227
        %v2236 = vcombine.high %v2234, %v2234
        %v2237 = vcombine.high %v2013, %v2013
        %v2239 = vunpack.c.l.s4 1983009808
        %v2240 = vunpack.c.0.s8 %v2239
        %v2241 = vlaneseq
        %v2242 = vshrl.u32 %v2241, 7
        %v2243 = vsub.s32 %v2240, %v2242
        %v2244 = vrot.slane %v2013, %v2243
        %v2246 = vunpack.c.l.s4 1983009808
        %v2247 = vunpack.c.0.s8 %v2246
        %v2248 = vlaneseq
        %v2249 = vshrl.u32 %v2248, 7
        %v2250 = vsub.s32 %v2247, %v2249
        %v2251 = vrot.slane %v2237, %v2250
        %v2252 = vcombine.high %v2244, %v2244
        %v2253 = vcombine.high %v2251, %v2251
        %v2254 = vcombine.high %v2014, %v2014
        %v2256 = vunpack.c.l.s4 1983009808
        %v2257 = vunpack.c.0.s8 %v2256
        %v2258 = vlaneseq
        %v2259 = vshrl.u32 %v2258, 7
        %v2260 = vsub.s32 %v2257, %v2259
        %v2261 = vrot.slane %v2014, %v2260
        %v2263 = vunpack.c.l.s4 1983009808
        %v2264 = vunpack.c.0.s8 %v2263
        %v2265 = vlaneseq
        %v2266 = vshrl.u32 %v2265, 7
        %v2267 = vsub.s32 %v2264, %v2266
        %v2268 = vrot.slane %v2254, %v2267
        %v2269 = vcombine.high %v2261, %v2261
        %v2270 = vcombine.high %v2268, %v2268
        %v2271 = vcombine.high %v2015, %v2015
        %v2273 = vunpack.c.l.s4 1983009808
        %v2274 = vunpack.c.0.s8 %v2273
        %v2275 = vlaneseq
        %v2276 = vshrl.u32 %v2275, 7
        %v2277 = vsub.s32 %v2274, %v2276
        %v2278 = vrot.slane %v2015, %v2277
        %v2280 = vunpack.c.l.s4 1983009808
        %v2281 = vunpack.c.0.s8 %v2280
        %v2282 = vlaneseq
        %v2283 = vshrl.u32 %v2282, 7
        %v2284 = vsub.s32 %v2281, %v2283
        %v2285 = vrot.slane %v2271, %v2284
        %v2286 = vcombine.high %v2278, %v2278
        %v2287 = vcombine.high %v2285, %v2285
        %v2288 = vcombine.high %v2016, %v2016
        %v2290 = vunpack.c.l.s4 1983009808
        %v2291 = vunpack.c.0.s8 %v2290
        %v2292 = vlaneseq
        %v2293 = vshrl.u32 %v2292, 7
        %v2294 = vsub.s32 %v2291, %v2293
        %v2295 = vrot.slane %v2016, %v2294
        %v2297 = vunpack.c.l.s4 1983009808
        %v2298 = vunpack.c.0.s8 %v2297
        %v2299 = vlaneseq
        %v2300 = vshrl.u32 %v2299, 7
        %v2301 = vsub.s32 %v2298, %v2300
        %v2302 = vrot.slane %v2288, %v2301
        %v2303 = vcombine.high %v2295, %v2295
        %v2304 = vcombine.high %v2302, %v2302
        %v2305 = vcombine.high %v2017, %v2017
        %v2307 = vunpack.c.l.s4 1983009808
        %v2308 = vunpack.c.0.s8 %v2307
        %v2309 = vlaneseq
        %v2310 = vshrl.u32 %v2309, 7
        %v2311 = vsub.s32 %v2308, %v2310
        %v2312 = vrot.slane %v2017, %v2311
        %v2314 = vunpack.c.l.s4 1983009808
        %v2315 = vunpack.c.0.s8 %v2314
        %v2316 = vlaneseq
        %v2317 = vshrl.u32 %v2316, 7
        %v2318 = vsub.s32 %v2315, %v2317
        %v2319 = vrot.slane %v2305, %v2318
        %v2320 = vcombine.high %v2312, %v2312
        %v2321 = vcombine.high %v2319, %v2319
        %v2322 = vcombine.high %v2018, %v2018
        %v2324 = vunpack.c.l.s4 1983009808
        %v2325 = vunpack.c.0.s8 %v2324
        %v2326 = vlaneseq
        %v2327 = vshrl.u32 %v2326, 7
        %v2328 = vsub.s32 %v2325, %v2327
        %v2329 = vrot.slane %v2018, %v2328
        %v2331 = vunpack.c.l.s4 1983009808
        %v2332 = vunpack.c.0.s8 %v2331
        %v2333 = vlaneseq
        %v2334 = vshrl.u32 %v2333, 7
        %v2335 = vsub.s32 %v2332, %v2334
        %v2336 = vrot.slane %v2322, %v2335
        %v2337 = vcombine.high %v2329, %v2329
        %v2338 = vcombine.high %v2336, %v2336
        %v2339 = vcombine.high %v2019, %v2019
        %v2341 = vunpack.c.l.s4 1983009808
        %v2342 = vunpack.c.0.s8 %v2341
        %v2343 = vlaneseq
        %v2344 = vshrl.u32 %v2343, 7
        %v2345 = vsub.s32 %v2342, %v2344
        %v2346 = vrot.slane %v2019, %v2345
        %v2348 = vunpack.c.l.s4 1983009808
        %v2349 = vunpack.c.0.s8 %v2348
        %v2350 = vlaneseq
        %v2351 = vshrl.u32 %v2350, 7
        %v2352 = vsub.s32 %v2349, %v2351
        %v2353 = vrot.slane %v2339, %v2352
        %v2354 = vcombine.high %v2346, %v2346
        %v2355 = vcombine.high %v2353, %v2353
        %v2356 = vcombine.high %v2020, %v2020
        %v2358 = vunpack.c.l.s4 1983009808
        %v2359 = vunpack.c.0.s8 %v2358
        %v2360 = vlaneseq
        %v2361 = vshrl.u32 %v2360, 7
        %v2362 = vsub.s32 %v2359, %v2361
        %v2363 = vrot.slane %v2020, %v2362
        %v2365 = vunpack.c.l.s4 1983009808
        %v2366 = vunpack.c.0.s8 %v2365
        %v2367 = vlaneseq
        %v2368 = vshrl.u32 %v2367, 7
        %v2369 = vsub.s32 %v2366, %v2368
        %v2370 = vrot.slane %v2356, %v2369
        %v2371 = vcombine.high %v2363, %v2363
        %v2372 = vcombine.high %v2370, %v2370
        %v2373 = vcombine.high %v2021, %v2021
        %v2375 = vunpack.c.l.s4 1983009808
        %v2376 = vunpack.c.0.s8 %v2375
        %v2377 = vlaneseq
        %v2378 = vshrl.u32 %v2377, 7
        %v2379 = vsub.s32 %v2376, %v2378
        %v2380 = vrot.slane %v2021, %v2379
        %v2382 = vunpack.c.l.s4 1983009808
        %v2383 = vunpack.c.0.s8 %v2382
        %v2384 = vlaneseq
        %v2385 = vshrl.u32 %v2384, 7
        %v2386 = vsub.s32 %v2383, %v2385
        %v2387 = vrot.slane %v2373, %v2386
        %v2388 = vcombine.high %v2380, %v2380
        %v2389 = vcombine.high %v2387, %v2387
        %v2390 = vcombine.high %v2022, %v2022
        %v2392 = vunpack.c.l.s4 1983009808
        %v2393 = vunpack.c.0.s8 %v2392
        %v2394 = vlaneseq
        %v2395 = vshrl.u32 %v2394, 7
        %v2396 = vsub.s32 %v2393, %v2395
        %v2397 = vrot.slane %v2022, %v2396
        %v2399 = vunpack.c.l.s4 1983009808
        %v2400 = vunpack.c.0.s8 %v2399
        %v2401 = vlaneseq
        %v2402 = vshrl.u32 %v2401, 7
        %v2403 = vsub.s32 %v2400, %v2402
        %v2404 = vrot.slane %v2390, %v2403
        %v2405 = vcombine.high %v2397, %v2397
        %v2406 = vcombine.high %v2404, %v2404
        %v2407 = vcombine.high %v2023, %v2023
        %v2409 = vunpack.c.l.s4 1983009808
        %v2410 = vunpack.c.0.s8 %v2409
        %v2411 = vlaneseq
        %v2412 = vshrl.u32 %v2411, 7
        %v2413 = vsub.s32 %v2410, %v2412
        %v2414 = vrot.slane %v2023, %v2413
        %v2416 = vunpack.c.l.s4 1983009808
        %v2417 = vunpack.c.0.s8 %v2416
        %v2418 = vlaneseq
        %v2419 = vshrl.u32 %v2418, 7
        %v2420 = vsub.s32 %v2417, %v2419
        %v2421 = vrot.slane %v2407, %v2420
        %v2422 = vcombine.high %v2414, %v2414
        %v2423 = vcombine.high %v2421, %v2421
        %v2424 = vcombine.high %v2024, %v2024
        %v2426 = vunpack.c.l.s4 1983009808
        %v2427 = vunpack.c.0.s8 %v2426
        %v2428 = vlaneseq
        %v2429 = vshrl.u32 %v2428, 7
        %v2430 = vsub.s32 %v2427, %v2429
        %v2431 = vrot.slane %v2024, %v2430
        %v2433 = vunpack.c.l.s4 1983009808
        %v2434 = vunpack.c.0.s8 %v2433
        %v2435 = vlaneseq
        %v2436 = vshrl.u32 %v2435, 7
        %v2437 = vsub.s32 %v2434, %v2436
        %v2438 = vrot.slane %v2424, %v2437
        %v2439 = vcombine.high %v2431, %v2431
        %v2440 = vcombine.high %v2438, %v2438
        %v2441 = vcombine.high %v2025, %v2025
        %v2443 = vunpack.c.l.s4 1983009808
        %v2444 = vunpack.c.0.s8 %v2443
        %v2445 = vlaneseq
        %v2446 = vshrl.u32 %v2445, 7
        %v2447 = vsub.s32 %v2444, %v2446
        %v2448 = vrot.slane %v2025, %v2447
        %v2450 = vunpack.c.l.s4 1983009808
        %v2451 = vunpack.c.0.s8 %v2450
        %v2452 = vlaneseq
        %v2453 = vshrl.u32 %v2452, 7
        %v2454 = vsub.s32 %v2451, %v2453
        %v2455 = vrot.slane %v2441, %v2454
        %v2456 = vcombine.high %v2448, %v2448
        %v2457 = vcombine.high %v2455, %v2455
        %v2458 = vcombine.high %v2026, %v2026
        %v2460 = vunpack.c.l.s4 1983009808
        %v2461 = vunpack.c.0.s8 %v2460
        %v2462 = vlaneseq
        %v2463 = vshrl.u32 %v2462, 7
        %v2464 = vsub.s32 %v2461, %v2463
        %v2465 = vrot.slane %v2026, %v2464
        %v2467 = vunpack.c.l.s4 1983009808
        %v2468 = vunpack.c.0.s8 %v2467
        %v2469 = vlaneseq
        %v2470 = vshrl.u32 %v2469, 7
        %v2471 = vsub.s32 %v2468, %v2470
        %v2472 = vrot.slane %v2458, %v2471
        %v2473 = vcombine.high %v2465, %v2465
        %v2474 = vcombine.high %v2472, %v2472
        %v2475 = vcombine.high %v2027, %v2027
        %v2477 = vunpack.c.l.s4 1983009808
        %v2478 = vunpack.c.0.s8 %v2477
        %v2479 = vlaneseq
        %v2480 = vshrl.u32 %v2479, 7
        %v2481 = vsub.s32 %v2478, %v2480
        %v2482 = vrot.slane %v2027, %v2481
        %v2484 = vunpack.c.l.s4 1983009808
        %v2485 = vunpack.c.0.s8 %v2484
        %v2486 = vlaneseq
        %v2487 = vshrl.u32 %v2486, 7
        %v2488 = vsub.s32 %v2485, %v2487
        %v2489 = vrot.slane %v2475, %v2488
        %v2490 = vcombine.high %v2482, %v2482
        %v2491 = vcombine.high %v2489, %v2489
        %v2492 = vcombine.high %v2028, %v2028
        %v2494 = vunpack.c.l.s4 1983009808
        %v2495 = vunpack.c.0.s8 %v2494
        %v2496 = vlaneseq
        %v2497 = vshrl.u32 %v2496, 7
        %v2498 = vsub.s32 %v2495, %v2497
        %v2499 = vrot.slane %v2028, %v2498
        %v2501 = vunpack.c.l.s4 1983009808
        %v2502 = vunpack.c.0.s8 %v2501
        %v2503 = vlaneseq
        %v2504 = vshrl.u32 %v2503, 7
        %v2505 = vsub.s32 %v2502, %v2504
        %v2506 = vrot.slane %v2492, %v2505
        %v2507 = vcombine.high %v2499, %v2499
        %v2508 = vcombine.high %v2506, %v2506
        %v2509 = vcombine.high %v2029, %v2029
        %v2511 = vunpack.c.l.s4 1983009808
        %v2512 = vunpack.c.0.s8 %v2511
        %v2513 = vlaneseq
        %v2514 = vshrl.u32 %v2513, 7
        %v2515 = vsub.s32 %v2512, %v2514
        %v2516 = vrot.slane %v2029, %v2515
        %v2518 = vunpack.c.l.s4 1983009808
        %v2519 = vunpack.c.0.s8 %v2518
        %v2520 = vlaneseq
        %v2521 = vshrl.u32 %v2520, 7
        %v2522 = vsub.s32 %v2519, %v2521
        %v2523 = vrot.slane %v2509, %v2522
        %v2524 = vcombine.high %v2516, %v2516
        %v2525 = vcombine.high %v2523, %v2523
        %v2526 = vcombine.high %v2030, %v2030
        %v2528 = vunpack.c.l.s4 1983009808
        %v2529 = vunpack.c.0.s8 %v2528
        %v2530 = vlaneseq
        %v2531 = vshrl.u32 %v2530, 7
        %v2532 = vsub.s32 %v2529, %v2531
        %v2533 = vrot.slane %v2030, %v2532
        %v2535 = vunpack.c.l.s4 1983009808
        %v2536 = vunpack.c.0.s8 %v2535
        %v2537 = vlaneseq
        %v2538 = vshrl.u32 %v2537, 7
        %v2539 = vsub.s32 %v2536, %v2538
        %v2540 = vrot.slane %v2526, %v2539
        %v2541 = vcombine.high %v2533, %v2533
        %v2542 = vcombine.high %v2540, %v2540
        %v2543 = vcombine.high %v2031, %v2031
        %v2545 = vunpack.c.l.s4 1983009808
        %v2546 = vunpack.c.0.s8 %v2545
        %v2547 = vlaneseq
        %v2548 = vshrl.u32 %v2547, 7
        %v2549 = vsub.s32 %v2546, %v2548
        %v2550 = vrot.slane %v2031, %v2549
        %v2552 = vunpack.c.l.s4 1983009808
        %v2553 = vunpack.c.0.s8 %v2552
        %v2554 = vlaneseq
        %v2555 = vshrl.u32 %v2554, 7
        %v2556 = vsub.s32 %v2553, %v2555
        %v2557 = vrot.slane %v2543, %v2556
        %v2558 = vcombine.high %v2550, %v2550
        %v2559 = vcombine.high %v2557, %v2557
        %v2560 = vcombine.high %v2032, %v2032
        %v2562 = vunpack.c.l.s4 1983009808
        %v2563 = vunpack.c.0.s8 %v2562
        %v2564 = vlaneseq
        %v2565 = vshrl.u32 %v2564, 7
        %v2566 = vsub.s32 %v2563, %v2565
        %v2567 = vrot.slane %v2032, %v2566
        %v2569 = vunpack.c.l.s4 1983009808
        %v2570 = vunpack.c.0.s8 %v2569
        %v2571 = vlaneseq
        %v2572 = vshrl.u32 %v2571, 7
        %v2573 = vsub.s32 %v2570, %v2572
        %v2574 = vrot.slane %v2560, %v2573
        %v2575 = vcombine.high %v2567, %v2567
        %v2576 = vcombine.high %v2574, %v2574
        %v2577 = vcombine.high %v2033, %v2033
        %v2579 = vunpack.c.l.s4 1983009808
        %v2580 = vunpack.c.0.s8 %v2579
        %v2581 = vlaneseq
        %v2582 = vshrl.u32 %v2581, 7
        %v2583 = vsub.s32 %v2580, %v2582
        %v2584 = vrot.slane %v2033, %v2583
        %v2586 = vunpack.c.l.s4 1983009808
        %v2587 = vunpack.c.0.s8 %v2586
        %v2588 = vlaneseq
        %v2589 = vshrl.u32 %v2588, 7
        %v2590 = vsub.s32 %v2587, %v2589
        %v2591 = vrot.slane %v2577, %v2590
        %v2592 = vcombine.high %v2584, %v2584
        %v2593 = vcombine.high %v2591, %v2591
        %v2594 = vcombine.high %v2034, %v2034
        %v2596 = vunpack.c.l.s4 1983009808
        %v2597 = vunpack.c.0.s8 %v2596
        %v2598 = vlaneseq
        %v2599 = vshrl.u32 %v2598, 7
        %v2600 = vsub.s32 %v2597, %v2599
        %v2601 = vrot.slane %v2034, %v2600
        %v2603 = vunpack.c.l.s4 1983009808
        %v2604 = vunpack.c.0.s8 %v2603
        %v2605 = vlaneseq
        %v2606 = vshrl.u32 %v2605, 7
        %v2607 = vsub.s32 %v2604, %v2606
        %v2608 = vrot.slane %v2594, %v2607
        %v2609 = vcombine.high %v2601, %v2601
        %v2610 = vcombine.high %v2608, %v2608
        %v2739 = vrot.slane %v2074, 7
        %v2740 = vrot.slane %v2739, 2
        %v2741 = vrot.slane %v2082, 7
        %v2742 = vrot.slane %v2741, 2
        %v2743 = vrot.slane %v2081, 7
        %v2744 = vrot.slane %v2743, 2
        %v2745 = vrot.slane %v2083, 7
        %v2746 = vrot.slane %v2745, 2
        %v2747 = vrot.slane %v2091, 7
        %v2748 = vrot.slane %v2747, 2
        %v2749 = vrot.slane %v2099, 7
        %v2750 = vrot.slane %v2749, 2
        %v2751 = vrot.slane %v2098, 7
        %v2752 = vrot.slane %v2751, 2
        %v2753 = vrot.slane %v2100, 7
        %v2754 = vrot.slane %v2753, 2
        %v2755 = vrot.slane %v2142, 7
        %v2756 = vrot.slane %v2755, 2
        %v2757 = vrot.slane %v2150, 7
        %v2758 = vrot.slane %v2757, 2
        %v2759 = vrot.slane %v2149, 7
        %v2760 = vrot.slane %v2759, 2
        %v2761 = vrot.slane %v2151, 7
        %v2762 = vrot.slane %v2761, 2
        %v2763 = vrot.slane %v2159, 7
        %v2764 = vrot.slane %v2763, 2
        %v2765 = vrot.slane %v2167, 7
        %v2766 = vrot.slane %v2765, 2
        %v2767 = vrot.slane %v2166, 7
        %v2768 = vrot.slane %v2767, 2
        %v2769 = vrot.slane %v2168, 7
        %v2770 = vrot.slane %v2769, 2
        %v2771 = vrot.slane %v2210, 7
        %v2772 = vrot.slane %v2771, 2
        %v2773 = vrot.slane %v2218, 7
        %v2774 = vrot.slane %v2773, 2
        %v2775 = vrot.slane %v2217, 7
        %v2776 = vrot.slane %v2775, 2
        %v2777 = vrot.slane %v2219, 7
        %v2778 = vrot.slane %v2777, 2
        %v2779 = vrot.slane %v2227, 7
        %v2780 = vrot.slane %v2779, 2
        %v2781 = vrot.slane %v2235, 7
        %v2782 = vrot.slane %v2781, 2
        %v2783 = vrot.slane %v2234, 7
        %v2784 = vrot.slane %v2783, 2
        %v2785 = vrot.slane %v2236, 7
        %v2786 = vrot.slane %v2785, 2
        %v2787 = vrot.slane %v2278, 7
        %v2788 = vrot.slane %v2787, 2
        %v2789 = vrot.slane %v2286, 7
        %v2790 = vrot.slane %v2789, 2
        %v2791 = vrot.slane %v2285, 7
        %v2792 = vrot.slane %v2791, 2
        %v2793 = vrot.slane %v2287, 7
        %v2794 = vrot.slane %v2793, 2
        %v2795 = vrot.slane %v2295, 7
        %v2796 = vrot.slane %v2795, 2
        %v2797 = vrot.slane %v2303, 7
        %v2798 = vrot.slane %v2797, 2
        %v2799 = vrot.slane %v2302, 7
        %v2800 = vrot.slane %v2799, 2
        %v2801 = vrot.slane %v2304, 7
        %v2802 = vrot.slane %v2801, 2
        %v2803 = vrot.slane %v2346, 7
        %v2804 = vrot.slane %v2803, 2
        %v2805 = vrot.slane %v2354, 7
        %v2806 = vrot.slane %v2805, 2
        %v2807 = vrot.slane %v2353, 7
        %v2808 = vrot.slane %v2807, 2
        %v2809 = vrot.slane %v2355, 7
        %v2810 = vrot.slane %v2809, 2
        %v2811 = vrot.slane %v2363, 7
        %v2812 = vrot.slane %v2811, 2
        %v2813 = vrot.slane %v2371, 7
        %v2814 = vrot.slane %v2813, 2
        %v2815 = vrot.slane %v2370, 7
        %v2816 = vrot.slane %v2815, 2
        %v2817 = vrot.slane %v2372, 7
        %v2818 = vrot.slane %v2817, 2
        %v2819 = vrot.slane %v2414, 7
        %v2820 = vrot.slane %v2819, 2
        %v2821 = vrot.slane %v2422, 7
        %v2822 = vrot.slane %v2821, 2
        %v2823 = vrot.slane %v2421, 7
        %v2824 = vrot.slane %v2823, 2
        %v2825 = vrot.slane %v2423, 7
        %v2826 = vrot.slane %v2825, 2
        %v2827 = vrot.slane %v2431, 7
        %v2828 = vrot.slane %v2827, 2
        %v2829 = vrot.slane %v2439, 7
        %v2830 = vrot.slane %v2829, 2
        %v2831 = vrot.slane %v2438, 7
        %v2832 = vrot.slane %v2831, 2
        %v2833 = vrot.slane %v2440, 7
        %v2834 = vrot.slane %v2833, 2
        %v2835 = vrot.slane %v2482, 7
        %v2836 = vrot.slane %v2835, 2
        %v2837 = vrot.slane %v2490, 7
        %v2838 = vrot.slane %v2837, 2
        %v2839 = vrot.slane %v2489, 7
        %v2840 = vrot.slane %v2839, 2
        %v2841 = vrot.slane %v2491, 7
        %v2842 = vrot.slane %v2841, 2
        %v2843 = vrot.slane %v2499, 7
        %v2844 = vrot.slane %v2843, 2
        %v2845 = vrot.slane %v2507, 7
        %v2846 = vrot.slane %v2845, 2
        %v2847 = vrot.slane %v2506, 7
        %v2848 = vrot.slane %v2847, 2
        %v2849 = vrot.slane %v2508, 7
        %v2850 = vrot.slane %v2849, 2
        %v2851 = vrot.slane %v2550, 7
        %v2852 = vrot.slane %v2851, 2
        %v2853 = vrot.slane %v2558, 7
        %v2854 = vrot.slane %v2853, 2
        %v2855 = vrot.slane %v2557, 7
        %v2856 = vrot.slane %v2855, 2
        %v2857 = vrot.slane %v2559, 7
        %v2858 = vrot.slane %v2857, 2
        %v2859 = vrot.slane %v2567, 7
        %v2860 = vrot.slane %v2859, 2
        %v2861 = vrot.slane %v2575, 7
        %v2862 = vrot.slane %v2861, 2
        %v2863 = vrot.slane %v2574, 7
        %v2864 = vrot.slane %v2863, 2
        %v2865 = vrot.slane %v2576, 7
        %v2866 = vrot.slane %v2865, 2
        %v2931 = vmax.f32 %v2074, %v2740
        %v2932 = vmax.f32 %v2082, %v2742
        %v2933 = vmax.f32 %v2081, %v2744
        %v2934 = vmax.f32 %v2083, %v2746
        %v2935 = vmax.f32 %v2091, %v2748
        %v2936 = vmax.f32 %v2099, %v2750
        %v2937 = vmax.f32 %v2098, %v2752
        %v2938 = vmax.f32 %v2100, %v2754
        %v2939 = vmax.f32 %v2142, %v2756
        %v2940 = vmax.f32 %v2150, %v2758
        %v2941 = vmax.f32 %v2149, %v2760
        %v2942 = vmax.f32 %v2151, %v2762
        %v2943 = vmax.f32 %v2159, %v2764
        %v2944 = vmax.f32 %v2167, %v2766
        %v2945 = vmax.f32 %v2166, %v2768
        %v2946 = vmax.f32 %v2168, %v2770
        %v2947 = vmax.f32 %v2210, %v2772
        %v2948 = vmax.f32 %v2218, %v2774
        %v2949 = vmax.f32 %v2217, %v2776
        %v2950 = vmax.f32 %v2219, %v2778
        %v2951 = vmax.f32 %v2227, %v2780
        %v2952 = vmax.f32 %v2235, %v2782
        %v2953 = vmax.f32 %v2234, %v2784
        %v2954 = vmax.f32 %v2236, %v2786
        %v2955 = vmax.f32 %v2278, %v2788
        %v2956 = vmax.f32 %v2286, %v2790
        %v2957 = vmax.f32 %v2285, %v2792
        %v2958 = vmax.f32 %v2287, %v2794
        %v2959 = vmax.f32 %v2295, %v2796
        %v2960 = vmax.f32 %v2303, %v2798
        %v2961 = vmax.f32 %v2302, %v2800
        %v2962 = vmax.f32 %v2304, %v2802
        %v2963 = vmax.f32 %v2346, %v2804
        %v2964 = vmax.f32 %v2354, %v2806
        %v2965 = vmax.f32 %v2353, %v2808
        %v2966 = vmax.f32 %v2355, %v2810
        %v2967 = vmax.f32 %v2363, %v2812
        %v2968 = vmax.f32 %v2371, %v2814
        %v2969 = vmax.f32 %v2370, %v2816
        %v2970 = vmax.f32 %v2372, %v2818
        %v2971 = vmax.f32 %v2414, %v2820
        %v2972 = vmax.f32 %v2422, %v2822
        %v2973 = vmax.f32 %v2421, %v2824
        %v2974 = vmax.f32 %v2423, %v2826
        %v2975 = vmax.f32 %v2431, %v2828
        %v2976 = vmax.f32 %v2439, %v2830
        %v2977 = vmax.f32 %v2438, %v2832
        %v2978 = vmax.f32 %v2440, %v2834
        %v2979 = vmax.f32 %v2482, %v2836
        %v2980 = vmax.f32 %v2490, %v2838
        %v2981 = vmax.f32 %v2489, %v2840
        %v2982 = vmax.f32 %v2491, %v2842
        %v2983 = vmax.f32 %v2499, %v2844
        %v2984 = vmax.f32 %v2507, %v2846
        %v2985 = vmax.f32 %v2506, %v2848
        %v2986 = vmax.f32 %v2508, %v2850
        %v2987 = vmax.f32 %v2550, %v2852
        %v2988 = vmax.f32 %v2558, %v2854
        %v2989 = vmax.f32 %v2557, %v2856
        %v2990 = vmax.f32 %v2559, %v2858
        %v2991 = vmax.f32 %v2567, %v2860
        %v2992 = vmax.f32 %v2575, %v2862
        %v2993 = vmax.f32 %v2574, %v2864
        %v2994 = vmax.f32 %v2576, %v2866
        %v2995 = vrot.slane %v2108, 7
        %v2996 = vrot.slane %v2995, 2
        %v2997 = vrot.slane %v2116, 7
        %v2998 = vrot.slane %v2997, 2
        %v2999 = vrot.slane %v2115, 7
        %v3000 = vrot.slane %v2999, 2
        %v3001 = vrot.slane %v2117, 7
        %v3002 = vrot.slane %v3001, 2
        %v3003 = vrot.slane %v2125, 7
        %v3004 = vrot.slane %v3003, 2
        %v3005 = vrot.slane %v2133, 7
        %v3006 = vrot.slane %v3005, 2
        %v3007 = vrot.slane %v2132, 7
        %v3008 = vrot.slane %v3007, 2
        %v3009 = vrot.slane %v2134, 7
        %v3010 = vrot.slane %v3009, 2
        %v3011 = vrot.slane %v2176, 7
        %v3012 = vrot.slane %v3011, 2
        %v3013 = vrot.slane %v2184, 7
        %v3014 = vrot.slane %v3013, 2
        %v3015 = vrot.slane %v2183, 7
        %v3016 = vrot.slane %v3015, 2
        %v3017 = vrot.slane %v2185, 7
        %v3018 = vrot.slane %v3017, 2
        %v3019 = vrot.slane %v2193, 7
        %v3020 = vrot.slane %v3019, 2
        %v3021 = vrot.slane %v2201, 7
        %v3022 = vrot.slane %v3021, 2
        %v3023 = vrot.slane %v2200, 7
        %v3024 = vrot.slane %v3023, 2
        %v3025 = vrot.slane %v2202, 7
        %v3026 = vrot.slane %v3025, 2
        %v3027 = vrot.slane %v2244, 7
        %v3028 = vrot.slane %v3027, 2
        %v3029 = vrot.slane %v2252, 7
        %v3030 = vrot.slane %v3029, 2
        %v3031 = vrot.slane %v2251, 7
        %v3032 = vrot.slane %v3031, 2
        %v3033 = vrot.slane %v2253, 7
        %v3034 = vrot.slane %v3033, 2
        %v3035 = vrot.slane %v2261, 7
        %v3036 = vrot.slane %v3035, 2
        %v3037 = vrot.slane %v2269, 7
        %v3038 = vrot.slane %v3037, 2
        %v3039 = vrot.slane %v2268, 7
        %v3040 = vrot.slane %v3039, 2
        %v3041 = vrot.slane %v2270, 7
        %v3042 = vrot.slane %v3041, 2
        %v3043 = vrot.slane %v2312, 7
        %v3044 = vrot.slane %v3043, 2
        %v3045 = vrot.slane %v2320, 7
        %v3046 = vrot.slane %v3045, 2
        %v3047 = vrot.slane %v2319, 7
        %v3048 = vrot.slane %v3047, 2
        %v3049 = vrot.slane %v2321, 7
        %v3050 = vrot.slane %v3049, 2
        %v3051 = vrot.slane %v2329, 7
        %v3052 = vrot.slane %v3051, 2
        %v3053 = vrot.slane %v2337, 7
        %v3054 = vrot.slane %v3053, 2
        %v3055 = vrot.slane %v2336, 7
        %v3056 = vrot.slane %v3055, 2
        %v3057 = vrot.slane %v2338, 7
        %v3058 = vrot.slane %v3057, 2
        %v3059 = vrot.slane %v2380, 7
        %v3060 = vrot.slane %v3059, 2
        %v3061 = vrot.slane %v2388, 7
        %v3062 = vrot.slane %v3061, 2
        %v3063 = vrot.slane %v2387, 7
        %v3064 = vrot.slane %v3063, 2
        %v3065 = vrot.slane %v2389, 7
        %v3066 = vrot.slane %v3065, 2
        %v3067 = vrot.slane %v2397, 7
        %v3068 = vrot.slane %v3067, 2
        %v3069 = vrot.slane %v2405, 7
        %v3070 = vrot.slane %v3069, 2
        %v3071 = vrot.slane %v2404, 7
        %v3072 = vrot.slane %v3071, 2
        %v3073 = vrot.slane %v2406, 7
        %v3074 = vrot.slane %v3073, 2
        %v3075 = vrot.slane %v2448, 7
        %v3076 = vrot.slane %v3075, 2
        %v3077 = vrot.slane %v2456, 7
        %v3078 = vrot.slane %v3077, 2
        %v3079 = vrot.slane %v2455, 7
        %v3080 = vrot.slane %v3079, 2
        %v3081 = vrot.slane %v2457, 7
        %v3082 = vrot.slane %v3081, 2
        %v3083 = vrot.slane %v2465, 7
        %v3084 = vrot.slane %v3083, 2
        %v3085 = vrot.slane %v2473, 7
        %v3086 = vrot.slane %v3085, 2
        %v3087 = vrot.slane %v2472, 7
        %v3088 = vrot.slane %v3087, 2
        %v3089 = vrot.slane %v2474, 7
        %v3090 = vrot.slane %v3089, 2
        %v3091 = vrot.slane %v2516, 7
        %v3092 = vrot.slane %v3091, 2
        %v3093 = vrot.slane %v2524, 7
        %v3094 = vrot.slane %v3093, 2
        %v3095 = vrot.slane %v2523, 7
        %v3096 = vrot.slane %v3095, 2
        %v3097 = vrot.slane %v2525, 7
        %v3098 = vrot.slane %v3097, 2
        %v3099 = vrot.slane %v2533, 7
        %v3100 = vrot.slane %v3099, 2
        %v3101 = vrot.slane %v2541, 7
        %v3102 = vrot.slane %v3101, 2
        %v3103 = vrot.slane %v2540, 7
        %v3104 = vrot.slane %v3103, 2
        %v3105 = vrot.slane %v2542, 7
        %v3106 = vrot.slane %v3105, 2
        %v3107 = vrot.slane %v2584, 7
        %v3108 = vrot.slane %v3107, 2
        %v3109 = vrot.slane %v2592, 7
        %v3110 = vrot.slane %v3109, 2
        %v3111 = vrot.slane %v2591, 7
        %v3112 = vrot.slane %v3111, 2
        %v3113 = vrot.slane %v2593, 7
        %v3114 = vrot.slane %v3113, 2
        %v3115 = vrot.slane %v2601, 7
        %v3116 = vrot.slane %v3115, 2
        %v3117 = vrot.slane %v2609, 7
        %v3118 = vrot.slane %v3117, 2
        %v3119 = vrot.slane %v2608, 7
        %v3120 = vrot.slane %v3119, 2
        %v3121 = vrot.slane %v2610, 7
        %v3122 = vrot.slane %v3121, 2
        %v3187 = vmax.f32 %v2108, %v2996
        %v3188 = vmax.f32 %v2116, %v2998
        %v3189 = vmax.f32 %v2115, %v3000
        %v3190 = vmax.f32 %v2117, %v3002
        %v3191 = vmax.f32 %v2125, %v3004
        %v3192 = vmax.f32 %v2133, %v3006
        %v3193 = vmax.f32 %v2132, %v3008
        %v3194 = vmax.f32 %v2134, %v3010
        %v3195 = vmax.f32 %v2176, %v3012
        %v3196 = vmax.f32 %v2184, %v3014
        %v3197 = vmax.f32 %v2183, %v3016
        %v3198 = vmax.f32 %v2185, %v3018
        %v3199 = vmax.f32 %v2193, %v3020
        %v3200 = vmax.f32 %v2201, %v3022
        %v3201 = vmax.f32 %v2200, %v3024
        %v3202 = vmax.f32 %v2202, %v3026
        %v3203 = vmax.f32 %v2244, %v3028
        %v3204 = vmax.f32 %v2252, %v3030
        %v3205 = vmax.f32 %v2251, %v3032
        %v3206 = vmax.f32 %v2253, %v3034
        %v3207 = vmax.f32 %v2261, %v3036
        %v3208 = vmax.f32 %v2269, %v3038
        %v3209 = vmax.f32 %v2268, %v3040
        %v3210 = vmax.f32 %v2270, %v3042
        %v3211 = vmax.f32 %v2312, %v3044
        %v3212 = vmax.f32 %v2320, %v3046
        %v3213 = vmax.f32 %v2319, %v3048
        %v3214 = vmax.f32 %v2321, %v3050
        %v3215 = vmax.f32 %v2329, %v3052
        %v3216 = vmax.f32 %v2337, %v3054
        %v3217 = vmax.f32 %v2336, %v3056
        %v3218 = vmax.f32 %v2338, %v3058
        %v3219 = vmax.f32 %v2380, %v3060
        %v3220 = vmax.f32 %v2388, %v3062
        %v3221 = vmax.f32 %v2387, %v3064
        %v3222 = vmax.f32 %v2389, %v3066
        %v3223 = vmax.f32 %v2397, %v3068
        %v3224 = vmax.f32 %v2405, %v3070
        %v3225 = vmax.f32 %v2404, %v3072
        %v3226 = vmax.f32 %v2406, %v3074
        %v3227 = vmax.f32 %v2448, %v3076
        %v3228 = vmax.f32 %v2456, %v3078
        %v3229 = vmax.f32 %v2455, %v3080
        %v3230 = vmax.f32 %v2457, %v3082
        %v3231 = vmax.f32 %v2465, %v3084
        %v3232 = vmax.f32 %v2473, %v3086
        %v3233 = vmax.f32 %v2472, %v3088
        %v3234 = vmax.f32 %v2474, %v3090
        %v3235 = vmax.f32 %v2516, %v3092
        %v3236 = vmax.f32 %v2524, %v3094
        %v3237 = vmax.f32 %v2523, %v3096
        %v3238 = vmax.f32 %v2525, %v3098
        %v3239 = vmax.f32 %v2533, %v3100
        %v3240 = vmax.f32 %v2541, %v3102
        %v3241 = vmax.f32 %v2540, %v3104
        %v3242 = vmax.f32 %v2542, %v3106
        %v3243 = vmax.f32 %v2584, %v3108
        %v3244 = vmax.f32 %v2592, %v3110
        %v3245 = vmax.f32 %v2591, %v3112
        %v3246 = vmax.f32 %v2593, %v3114
        %v3247 = vmax.f32 %v2601, %v3116
        %v3248 = vmax.f32 %v2609, %v3118
        %v3249 = vmax.f32 %v2608, %v3120
        %v3250 = vmax.f32 %v2610, %v3122
        %v3251 = vmax.f32 %v2931, %v3187
        %v3252 = vmax.f32 %v2932, %v3188
        %v3253 = vmax.f32 %v2933, %v3189
        %v3254 = vmax.f32 %v2934, %v3190
        %v3255 = vmax.f32 %v2935, %v3191
        %v3256 = vmax.f32 %v2936, %v3192
        %v3257 = vmax.f32 %v2937, %v3193
        %v3258 = vmax.f32 %v2938, %v3194
        %v3259 = vmax.f32 %v2939, %v3195
        %v3260 = vmax.f32 %v2940, %v3196
        %v3261 = vmax.f32 %v2941, %v3197
        %v3262 = vmax.f32 %v2942, %v3198
        %v3263 = vmax.f32 %v2943, %v3199
        %v3264 = vmax.f32 %v2944, %v3200
        %v3265 = vmax.f32 %v2945, %v3201
        %v3266 = vmax.f32 %v2946, %v3202
        %v3267 = vmax.f32 %v2947, %v3203
        %v3268 = vmax.f32 %v2948, %v3204
        %v3269 = vmax.f32 %v2949, %v3205
        %v3270 = vmax.f32 %v2950, %v3206
        %v3271 = vmax.f32 %v2951, %v3207
        %v3272 = vmax.f32 %v2952, %v3208
        %v3273 = vmax.f32 %v2953, %v3209
        %v3274 = vmax.f32 %v2954, %v3210
        %v3275 = vmax.f32 %v2955, %v3211
        %v3276 = vmax.f32 %v2956, %v3212
        %v3277 = vmax.f32 %v2957, %v3213
        %v3278 = vmax.f32 %v2958, %v3214
        %v3279 = vmax.f32 %v2959, %v3215
        %v3280 = vmax.f32 %v2960, %v3216
        %v3281 = vmax.f32 %v2961, %v3217
        %v3282 = vmax.f32 %v2962, %v3218
        %v3283 = vmax.f32 %v2963, %v3219
        %v3284 = vmax.f32 %v2964, %v3220
        %v3285 = vmax.f32 %v2965, %v3221
        %v3286 = vmax.f32 %v2966, %v3222
        %v3287 = vmax.f32 %v2967, %v3223
        %v3288 = vmax.f32 %v2968, %v3224
        %v3289 = vmax.f32 %v2969, %v3225
        %v3290 = vmax.f32 %v2970, %v3226
        %v3291 = vmax.f32 %v2971, %v3227
        %v3292 = vmax.f32 %v2972, %v3228
        %v3293 = vmax.f32 %v2973, %v3229
        %v3294 = vmax.f32 %v2974, %v3230
        %v3295 = vmax.f32 %v2975, %v3231
        %v3296 = vmax.f32 %v2976, %v3232
        %v3297 = vmax.f32 %v2977, %v3233
        %v3298 = vmax.f32 %v2978, %v3234
        %v3299 = vmax.f32 %v2979, %v3235
        %v3300 = vmax.f32 %v2980, %v3236
        %v3301 = vmax.f32 %v2981, %v3237
        %v3302 = vmax.f32 %v2982, %v3238
        %v3303 = vmax.f32 %v2983, %v3239
        %v3304 = vmax.f32 %v2984, %v3240
        %v3305 = vmax.f32 %v2985, %v3241
        %v3306 = vmax.f32 %v2986, %v3242
        %v3307 = vmax.f32 %v2987, %v3243
        %v3308 = vmax.f32 %v2988, %v3244
        %v3309 = vmax.f32 %v2989, %v3245
        %v3310 = vmax.f32 %v2990, %v3246
        %v3311 = vmax.f32 %v2991, %v3247
        %v3312 = vmax.f32 %v2992, %v3248
        %v3313 = vmax.f32 %v2993, %v3249
        %v3314 = vmax.f32 %v2994, %v3250
        %3315 = vst.msk [vmem:[#allocation3] sm:$0xff] %vm1434, 0.0
        %vm3316 = vcmask 58368
        %3317 = vst.msk [vmem:[#allocation3 + $0x8] sm:$0x3] %vm3316, 0.0
        %3318 = vst.msk [vmem:[#allocation3 + $0x10] sm:$0xff] %vm1434, 0.0
        %3319 = vst.msk [vmem:[#allocation3 + $0x18] sm:$0x3] %vm3316, 0.0
        %3320 = vst.msk [vmem:[#allocation3 + $0x20] sm:$0xff] %vm1434, 0.0
        %3321 = vst.msk [vmem:[#allocation3 + $0x28] sm:$0x3] %vm3316, 0.0
        %3322 = vst.msk [vmem:[#allocation3 + $0x30] sm:$0xff] %vm1434, 0.0
        %3323 = vst.msk [vmem:[#allocation3 + $0x38] sm:$0x3] %vm3316, 0.0
        %3324 = vst.msk [vmem:[#allocation3 + $0x40] sm:$0xff] %vm1434, 0.0
        %3325 = vst.msk [vmem:[#allocation3 + $0x48] sm:$0x3] %vm3316, 0.0
        %3326 = vst.msk [vmem:[#allocation3 + $0x50] sm:$0xff] %vm1434, 0.0
        %3327 = vst.msk [vmem:[#allocation3 + $0x58] sm:$0x3] %vm3316, 0.0
        %3328 = vst.msk [vmem:[#allocation3 + $0x60] sm:$0xff] %vm1434, 0.0
        %3329 = vst.msk [vmem:[#allocation3 + $0x68] sm:$0x3] %vm3316, 0.0
        %3330 = vst.msk [vmem:[#allocation3 + $0x70] sm:$0xff] %vm1434, 0.0
        %3331 = vst.msk [vmem:[#allocation3 + $0x78] sm:$0x3] %vm3316, 0.0
        %3332 = vst.msk [vmem:[#allocation3 + $0x80] sm:$0xff] %vm1434, 0.0
        %3333 = vst.msk [vmem:[#allocation3 + $0x88] sm:$0x3] %vm3316, 0.0
        %3334 = vst.msk [vmem:[#allocation3 + $0x90] sm:$0xff] %vm1434, 0.0
        %3335 = vst.msk [vmem:[#allocation3 + $0x98] sm:$0x3] %vm3316, 0.0
        %v3400 = vlaneseq
        %v3401 = vshrl.u32 %v3400, 7
        %v3402 = vsub.s32 0, %v3401
        %v3403 = vrot.slane %v3251, %v3402
        %v3404 = vlaneseq
        %v3405 = vshrl.u32 %v3404, 7
        %v3406 = vsub.s32 0, %v3405
        %v3407 = vrot.slane %v3252, %v3406
        %v3408 = vlaneseq
        %v3409 = vshrl.u32 %v3408, 7
        %v3410 = vsub.s32 0, %v3409
        %v3411 = vrot.slane %v3253, %v3410
        %v3412 = vlaneseq
        %v3413 = vshrl.u32 %v3412, 7
        %v3414 = vsub.s32 0, %v3413
        %v3415 = vrot.slane %v3254, %v3414
        %v3416 = vlaneseq
        %v3417 = vshrl.u32 %v3416, 7
        %v3418 = vsub.s32 0, %v3417
        %v3419 = vrot.slane %v3255, %v3418
        %v3420 = vlaneseq
        %v3421 = vshrl.u32 %v3420, 7
        %v3422 = vsub.s32 0, %v3421
        %v3423 = vrot.slane %v3256, %v3422
        %v3424 = vlaneseq
        %v3425 = vshrl.u32 %v3424, 7
        %v3426 = vsub.s32 0, %v3425
        %v3427 = vrot.slane %v3257, %v3426
        %v3428 = vlaneseq
        %v3429 = vshrl.u32 %v3428, 7
        %v3430 = vsub.s32 0, %v3429
        %v3431 = vrot.slane %v3258, %v3430
        %v3432 = vlaneseq
        %v3433 = vshrl.u32 %v3432, 7
        %v3434 = vsub.s32 0, %v3433
        %v3435 = vrot.slane %v3259, %v3434
        %v3436 = vlaneseq
        %v3437 = vshrl.u32 %v3436, 7
        %v3438 = vsub.s32 0, %v3437
        %v3439 = vrot.slane %v3260, %v3438
        %v3440 = vlaneseq
        %v3441 = vshrl.u32 %v3440, 7
        %v3442 = vsub.s32 0, %v3441
        %v3443 = vrot.slane %v3261, %v3442
        %v3444 = vlaneseq
        %v3445 = vshrl.u32 %v3444, 7
        %v3446 = vsub.s32 0, %v3445
        %v3447 = vrot.slane %v3262, %v3446
        %v3448 = vlaneseq
        %v3449 = vshrl.u32 %v3448, 7
        %v3450 = vsub.s32 0, %v3449
        %v3451 = vrot.slane %v3263, %v3450
        %v3452 = vlaneseq
        %v3453 = vshrl.u32 %v3452, 7
        %v3454 = vsub.s32 0, %v3453
        %v3455 = vrot.slane %v3264, %v3454
        %v3456 = vlaneseq
        %v3457 = vshrl.u32 %v3456, 7
        %v3458 = vsub.s32 0, %v3457
        %v3459 = vrot.slane %v3265, %v3458
        %v3460 = vlaneseq
        %v3461 = vshrl.u32 %v3460, 7
        %v3462 = vsub.s32 0, %v3461
        %v3463 = vrot.slane %v3266, %v3462
        %v3464 = vlaneseq
        %v3465 = vshrl.u32 %v3464, 7
        %v3466 = vsub.s32 0, %v3465
        %v3467 = vrot.slane %v3267, %v3466
        %v3468 = vlaneseq
        %v3469 = vshrl.u32 %v3468, 7
        %v3470 = vsub.s32 0, %v3469
        %v3471 = vrot.slane %v3268, %v3470
        %v3472 = vlaneseq
        %v3473 = vshrl.u32 %v3472, 7
        %v3474 = vsub.s32 0, %v3473
        %v3475 = vrot.slane %v3269, %v3474
        %v3476 = vlaneseq
        %v3477 = vshrl.u32 %v3476, 7
        %v3478 = vsub.s32 0, %v3477
        %v3479 = vrot.slane %v3270, %v3478
        %v3480 = vlaneseq
        %v3481 = vshrl.u32 %v3480, 7
        %v3482 = vsub.s32 0, %v3481
        %v3483 = vrot.slane %v3271, %v3482
        %v3484 = vlaneseq
        %v3485 = vshrl.u32 %v3484, 7
        %v3486 = vsub.s32 0, %v3485
        %v3487 = vrot.slane %v3272, %v3486
        %v3488 = vlaneseq
        %v3489 = vshrl.u32 %v3488, 7
        %v3490 = vsub.s32 0, %v3489
        %v3491 = vrot.slane %v3273, %v3490
        %v3492 = vlaneseq
        %v3493 = vshrl.u32 %v3492, 7
        %v3494 = vsub.s32 0, %v3493
        %v3495 = vrot.slane %v3274, %v3494
        %v3496 = vlaneseq
        %v3497 = vshrl.u32 %v3496, 7
        %v3498 = vsub.s32 0, %v3497
        %v3499 = vrot.slane %v3275, %v3498
        %v3500 = vlaneseq
        %v3501 = vshrl.u32 %v3500, 7
        %v3502 = vsub.s32 0, %v3501
        %v3503 = vrot.slane %v3276, %v3502
        %v3504 = vlaneseq
        %v3505 = vshrl.u32 %v3504, 7
        %v3506 = vsub.s32 0, %v3505
        %v3507 = vrot.slane %v3277, %v3506
        %v3508 = vlaneseq
        %v3509 = vshrl.u32 %v3508, 7
        %v3510 = vsub.s32 0, %v3509
        %v3511 = vrot.slane %v3278, %v3510
        %v3512 = vlaneseq
        %v3513 = vshrl.u32 %v3512, 7
        %v3514 = vsub.s32 0, %v3513
        %v3515 = vrot.slane %v3279, %v3514
        %v3516 = vlaneseq
        %v3517 = vshrl.u32 %v3516, 7
        %v3518 = vsub.s32 0, %v3517
        %v3519 = vrot.slane %v3280, %v3518
        %v3520 = vlaneseq
        %v3521 = vshrl.u32 %v3520, 7
        %v3522 = vsub.s32 0, %v3521
        %v3523 = vrot.slane %v3281, %v3522
        %v3524 = vlaneseq
        %v3525 = vshrl.u32 %v3524, 7
        %v3526 = vsub.s32 0, %v3525
        %v3527 = vrot.slane %v3282, %v3526
        %v3528 = vlaneseq
        %v3529 = vshrl.u32 %v3528, 7
        %v3530 = vsub.s32 0, %v3529
        %v3531 = vrot.slane %v3283, %v3530
        %v3532 = vlaneseq
        %v3533 = vshrl.u32 %v3532, 7
        %v3534 = vsub.s32 0, %v3533
        %v3535 = vrot.slane %v3284, %v3534
        %v3536 = vlaneseq
        %v3537 = vshrl.u32 %v3536, 7
        %v3538 = vsub.s32 0, %v3537
        %v3539 = vrot.slane %v3285, %v3538
        %v3540 = vlaneseq
        %v3541 = vshrl.u32 %v3540, 7
        %v3542 = vsub.s32 0, %v3541
        %v3543 = vrot.slane %v3286, %v3542
        %v3544 = vlaneseq
        %v3545 = vshrl.u32 %v3544, 7
        %v3546 = vsub.s32 0, %v3545
        %v3547 = vrot.slane %v3287, %v3546
        %v3548 = vlaneseq
        %v3549 = vshrl.u32 %v3548, 7
        %v3550 = vsub.s32 0, %v3549
        %v3551 = vrot.slane %v3288, %v3550
        %v3552 = vlaneseq
        %v3553 = vshrl.u32 %v3552, 7
        %v3554 = vsub.s32 0, %v3553
        %v3555 = vrot.slane %v3289, %v3554
        %v3556 = vlaneseq
        %v3557 = vshrl.u32 %v3556, 7
        %v3558 = vsub.s32 0, %v3557
        %v3559 = vrot.slane %v3290, %v3558
        %v3560 = vlaneseq
        %v3561 = vshrl.u32 %v3560, 7
        %v3562 = vsub.s32 0, %v3561
        %v3563 = vrot.slane %v3291, %v3562
        %v3564 = vlaneseq
        %v3565 = vshrl.u32 %v3564, 7
        %v3566 = vsub.s32 0, %v3565
        %v3567 = vrot.slane %v3292, %v3566
        %v3568 = vlaneseq
        %v3569 = vshrl.u32 %v3568, 7
        %v3570 = vsub.s32 0, %v3569
        %v3571 = vrot.slane %v3293, %v3570
        %v3572 = vlaneseq
        %v3573 = vshrl.u32 %v3572, 7
        %v3574 = vsub.s32 0, %v3573
        %v3575 = vrot.slane %v3294, %v3574
        %v3576 = vlaneseq
        %v3577 = vshrl.u32 %v3576, 7
        %v3578 = vsub.s32 0, %v3577
        %v3579 = vrot.slane %v3295, %v3578
        %v3580 = vlaneseq
        %v3581 = vshrl.u32 %v3580, 7
        %v3582 = vsub.s32 0, %v3581
        %v3583 = vrot.slane %v3296, %v3582
        %v3584 = vlaneseq
        %v3585 = vshrl.u32 %v3584, 7
        %v3586 = vsub.s32 0, %v3585
        %v3587 = vrot.slane %v3297, %v3586
        %v3588 = vlaneseq
        %v3589 = vshrl.u32 %v3588, 7
        %v3590 = vsub.s32 0, %v3589
        %v3591 = vrot.slane %v3298, %v3590
        %v3592 = vlaneseq
        %v3593 = vshrl.u32 %v3592, 7
        %v3594 = vsub.s32 0, %v3593
        %v3595 = vrot.slane %v3299, %v3594
        %v3596 = vlaneseq
        %v3597 = vshrl.u32 %v3596, 7
        %v3598 = vsub.s32 0, %v3597
        %v3599 = vrot.slane %v3300, %v3598
        %v3600 = vlaneseq
        %v3601 = vshrl.u32 %v3600, 7
        %v3602 = vsub.s32 0, %v3601
        %v3603 = vrot.slane %v3301, %v3602
        %v3604 = vlaneseq
        %v3605 = vshrl.u32 %v3604, 7
        %v3606 = vsub.s32 0, %v3605
        %v3607 = vrot.slane %v3302, %v3606
        %v3608 = vlaneseq
        %v3609 = vshrl.u32 %v3608, 7
        %v3610 = vsub.s32 0, %v3609
        %v3611 = vrot.slane %v3303, %v3610
        %v3612 = vlaneseq
        %v3613 = vshrl.u32 %v3612, 7
        %v3614 = vsub.s32 0, %v3613
        %v3615 = vrot.slane %v3304, %v3614
        %v3616 = vlaneseq
        %v3617 = vshrl.u32 %v3616, 7
        %v3618 = vsub.s32 0, %v3617
        %v3619 = vrot.slane %v3305, %v3618
        %v3620 = vlaneseq
        %v3621 = vshrl.u32 %v3620, 7
        %v3622 = vsub.s32 0, %v3621
        %v3623 = vrot.slane %v3306, %v3622
        %v3624 = vlaneseq
        %v3625 = vshrl.u32 %v3624, 7
        %v3626 = vsub.s32 0, %v3625
        %v3627 = vrot.slane %v3307, %v3626
        %v3628 = vlaneseq
        %v3629 = vshrl.u32 %v3628, 7
        %v3630 = vsub.s32 0, %v3629
        %v3631 = vrot.slane %v3308, %v3630
        %v3632 = vlaneseq
        %v3633 = vshrl.u32 %v3632, 7
        %v3634 = vsub.s32 0, %v3633
        %v3635 = vrot.slane %v3309, %v3634
        %v3636 = vlaneseq
        %v3637 = vshrl.u32 %v3636, 7
        %v3638 = vsub.s32 0, %v3637
        %v3639 = vrot.slane %v3310, %v3638
        %v3640 = vlaneseq
        %v3641 = vshrl.u32 %v3640, 7
        %v3642 = vsub.s32 0, %v3641
        %v3643 = vrot.slane %v3311, %v3642
        %v3644 = vlaneseq
        %v3645 = vshrl.u32 %v3644, 7
        %v3646 = vsub.s32 0, %v3645
        %v3647 = vrot.slane %v3312, %v3646
        %v3648 = vlaneseq
        %v3649 = vshrl.u32 %v3648, 7
        %v3650 = vsub.s32 0, %v3649
        %v3651 = vrot.slane %v3313, %v3650
        %v3652 = vlaneseq
        %v3653 = vshrl.u32 %v3652, 7
        %v3654 = vsub.s32 0, %v3653
        %v3655 = vrot.slane %v3314, %v3654
        %vm3656 = vcmask 1041409
        %v3657 = vsel %vm3656, %v3407, %v3403
        %vm3658 = vcmask 1042434
        %v3659 = vsel %vm3658, %v3411, %v3657
        %vm3660 = vcmask 1043459
        %v3661 = vsel %vm3660, %v3415, %v3659
        %vm3662 = vcmask 1044484
        %v3663 = vsel %vm3662, %v3419, %v3661
        %vm3664 = vcmask 1045509
        %v3665 = vsel %vm3664, %v3423, %v3663
        %vm3666 = vcmask 1046534
        %v3667 = vsel %vm3666, %v3427, %v3665
        %vm3668 = vcmask 1047559
        %v3669 = vsel %vm3668, %v3431, %v3667
        %v3670 = vsel %vm3656, %v3439, %v3435
        %v3671 = vsel %vm3658, %v3443, %v3670
        %v3672 = vsel %vm3660, %v3447, %v3671
        %v3673 = vsel %vm3662, %v3451, %v3672
        %v3674 = vsel %vm3664, %v3455, %v3673
        %v3675 = vsel %vm3666, %v3459, %v3674
        %v3676 = vsel %vm3668, %v3463, %v3675
        %v3677 = vsel %vm3656, %v3471, %v3467
        %v3678 = vsel %vm3658, %v3475, %v3677
        %v3679 = vsel %vm3660, %v3479, %v3678
        %v3680 = vsel %vm3662, %v3483, %v3679
        %v3681 = vsel %vm3664, %v3487, %v3680
        %v3682 = vsel %vm3666, %v3491, %v3681
        %v3683 = vsel %vm3668, %v3495, %v3682
        %v3684 = vsel %vm3656, %v3503, %v3499
        %v3685 = vsel %vm3658, %v3507, %v3684
        %v3686 = vsel %vm3660, %v3511, %v3685
        %v3687 = vsel %vm3662, %v3515, %v3686
        %v3688 = vsel %vm3664, %v3519, %v3687
        %v3689 = vsel %vm3666, %v3523, %v3688
        %v3690 = vsel %vm3668, %v3527, %v3689
        %v3691 = vsel %vm3656, %v3535, %v3531
        %v3692 = vsel %vm3658, %v3539, %v3691
        %v3693 = vsel %vm3660, %v3543, %v3692
        %v3694 = vsel %vm3662, %v3547, %v3693
        %v3695 = vsel %vm3664, %v3551, %v3694
        %v3696 = vsel %vm3666, %v3555, %v3695
        %v3697 = vsel %vm3668, %v3559, %v3696
        %v3698 = vsel %vm3656, %v3567, %v3563
        %v3699 = vsel %vm3658, %v3571, %v3698
        %v3700 = vsel %vm3660, %v3575, %v3699
        %v3701 = vsel %vm3662, %v3579, %v3700
        %v3702 = vsel %vm3664, %v3583, %v3701
        %v3703 = vsel %vm3666, %v3587, %v3702
        %v3704 = vsel %vm3668, %v3591, %v3703
        %v3705 = vsel %vm3656, %v3599, %v3595
        %v3706 = vsel %vm3658, %v3603, %v3705
        %v3707 = vsel %vm3660, %v3607, %v3706
        %v3708 = vsel %vm3662, %v3611, %v3707
        %v3709 = vsel %vm3664, %v3615, %v3708
        %v3710 = vsel %vm3666, %v3619, %v3709
        %v3711 = vsel %vm3668, %v3623, %v3710
        %v3712 = vsel %vm3656, %v3631, %v3627
        %v3713 = vsel %vm3658, %v3635, %v3712
        %v3714 = vsel %vm3660, %v3639, %v3713
        %v3715 = vsel %vm3662, %v3643, %v3714
        %v3716 = vsel %vm3664, %v3647, %v3715
        %v3717 = vsel %vm3666, %v3651, %v3716
        %v3718 = vsel %vm3668, %v3655, %v3717
        %s3727 = scalar_lea.vmem [#allocation3], 16
        %3728 = vst.msk [vmem:[%s3727 + $0x1] sm:$0xff] %vm1434, %v3669
        %3729 = vst.msk [vmem:[%s3727 + $0x11] sm:$0xff] %vm1434, %v3676
        %3730 = vst.msk [vmem:[%s3727 + $0x21] sm:$0xff] %vm1434, %v3683
        %3731 = vst.msk [vmem:[%s3727 + $0x31] sm:$0xff] %vm1434, %v3690
        %3732 = vst.msk [vmem:[%s3727 + $0x41] sm:$0xff] %vm1434, %v3697
        %3733 = vst.msk [vmem:[%s3727 + $0x51] sm:$0xff] %vm1434, %v3704
        %3734 = vst.msk [vmem:[%s3727 + $0x61] sm:$0xff] %vm1434, %v3711
        %3735 = vst.msk [vmem:[%s3727 + $0x71] sm:$0xff] %vm1434, %v3718
        %v3736 = vld [vmem:[#allocation3] sm:$0xff]
        %v3737 = vld [vmem:[#allocation3 + $0x8] sm:$0x3]
        %v3738 = vld [vmem:[#allocation3 + $0x10] sm:$0xff]
        %v3739 = vld [vmem:[#allocation3 + $0x18] sm:$0x3]
        %v3740 = vld [vmem:[#allocation3 + $0x20] sm:$0xff]
        %v3741 = vld [vmem:[#allocation3 + $0x28] sm:$0x3]
        %v3742 = vld [vmem:[#allocation3 + $0x30] sm:$0xff]
        %v3743 = vld [vmem:[#allocation3 + $0x38] sm:$0x3]
        %v3744 = vld [vmem:[#allocation3 + $0x40] sm:$0xff]
        %v3745 = vld [vmem:[#allocation3 + $0x48] sm:$0x3]
        %v3746 = vld [vmem:[#allocation3 + $0x50] sm:$0xff]
        %v3747 = vld [vmem:[#allocation3 + $0x58] sm:$0x3]
        %v3748 = vld [vmem:[#allocation3 + $0x60] sm:$0xff]
        %v3749 = vld [vmem:[#allocation3 + $0x68] sm:$0x3]
        %v3750 = vld [vmem:[#allocation3 + $0x70] sm:$0xff]
        %v3751 = vld [vmem:[#allocation3 + $0x78] sm:$0x3]
        %v3752 = vld [vmem:[#allocation3 + $0x80] sm:$0xff]
        %v3753 = vld [vmem:[#allocation3 + $0x88] sm:$0x3]
        %v3754 = vld [vmem:[#allocation3 + $0x90] sm:$0xff]
        %v3755 = vld [vmem:[#allocation3 + $0x98] sm:$0x3]
        %v3772 = vrot.slane %v3736, 1
        %v3773 = vrot.slane %v3737, 1
        %v3774 = vsel %vm446, %v3772, %v3773
        %v3775 = vrot.slane %v3738, 1
        %v3776 = vrot.slane %v3739, 1
        %v3777 = vsel %vm446, %v3775, %v3776
        %v3778 = vrot.slane %v3740, 1
        %v3779 = vrot.slane %v3741, 1
        %v3780 = vsel %vm446, %v3778, %v3779
        %v3781 = vrot.slane %v3742, 1
        %v3782 = vrot.slane %v3743, 1
        %v3783 = vsel %vm446, %v3781, %v3782
        %v3784 = vrot.slane %v3744, 1
        %v3785 = vrot.slane %v3745, 1
        %v3786 = vsel %vm446, %v3784, %v3785
        %v3787 = vrot.slane %v3746, 1
        %v3788 = vrot.slane %v3747, 1
        %v3789 = vsel %vm446, %v3787, %v3788
        %v3790 = vrot.slane %v3748, 1
        %v3791 = vrot.slane %v3749, 1
        %v3792 = vsel %vm446, %v3790, %v3791
        %v3793 = vrot.slane %v3750, 1
        %v3794 = vrot.slane %v3751, 1
        %v3795 = vsel %vm446, %v3793, %v3794
        %3796 = vrot.lane.b32.xlu0 %v3774, 8
        %v3797 = vpop.permute.xlu0 %3796
        %3798 = vrot.lane.b32.xlu0 %v3777, 8
        %v3799 = vpop.permute.xlu0 %3798
        %3800 = vrot.lane.b32.xlu0 %v3780, 8
        %v3801 = vpop.permute.xlu0 %3800
        %3802 = vrot.lane.b32.xlu0 %v3783, 8
        %v3803 = vpop.permute.xlu0 %3802
        %3804 = vrot.lane.b32.xlu0 %v3786, 8
        %v3805 = vpop.permute.xlu0 %3804
        %3806 = vrot.lane.b32.xlu0 %v3789, 8
        %v3807 = vpop.permute.xlu0 %3806
        %3808 = vrot.lane.b32.xlu0 %v3792, 8
        %v3809 = vpop.permute.xlu0 %3808
        %3810 = vrot.lane.b32.xlu0 %v3795, 8
        %v3811 = vpop.permute.xlu0 %3810
        %v3820 = vrot.slane %v3736, 2
        %v3821 = vrot.slane %v3737, 2
        %v3822 = vsel %vm623, %v3820, %v3821
        %v3823 = vrot.slane %v3738, 2
        %v3824 = vrot.slane %v3739, 2
        %v3825 = vsel %vm623, %v3823, %v3824
        %v3826 = vrot.slane %v3740, 2
        %v3827 = vrot.slane %v3741, 2
        %v3828 = vsel %vm623, %v3826, %v3827
        %v3829 = vrot.slane %v3742, 2
        %v3830 = vrot.slane %v3743, 2
        %v3831 = vsel %vm623, %v3829, %v3830
        %v3832 = vrot.slane %v3744, 2
        %v3833 = vrot.slane %v3745, 2
        %v3834 = vsel %vm623, %v3832, %v3833
        %v3835 = vrot.slane %v3746, 2
        %v3836 = vrot.slane %v3747, 2
        %v3837 = vsel %vm623, %v3835, %v3836
        %v3838 = vrot.slane %v3748, 2
        %v3839 = vrot.slane %v3749, 2
        %v3840 = vsel %vm623, %v3838, %v3839
        %v3841 = vrot.slane %v3750, 2
        %v3842 = vrot.slane %v3751, 2
        %v3843 = vsel %vm623, %v3841, %v3842
        %3844 = vrot.lane.b32.xlu0 %v3822, 16
        %v3845 = vpop.permute.xlu0 %3844
        %3846 = vrot.lane.b32.xlu0 %v3825, 16
        %v3847 = vpop.permute.xlu0 %3846
        %3848 = vrot.lane.b32.xlu0 %v3828, 16
        %v3849 = vpop.permute.xlu0 %3848
        %3850 = vrot.lane.b32.xlu0 %v3831, 16
        %v3851 = vpop.permute.xlu0 %3850
        %3852 = vrot.lane.b32.xlu0 %v3834, 16
        %v3853 = vpop.permute.xlu0 %3852
        %3854 = vrot.lane.b32.xlu0 %v3837, 16
        %v3855 = vpop.permute.xlu0 %3854
        %3856 = vrot.lane.b32.xlu0 %v3840, 16
        %v3857 = vpop.permute.xlu0 %3856
        %3858 = vrot.lane.b32.xlu0 %v3843, 16
        %v3859 = vpop.permute.xlu0 %3858
        %3869 = vrot.lane.b32.xlu0 %v3738, 24
        %v3870 = vpop.permute.xlu0 %3869
        %3871 = vrot.lane.b32.xlu0 %v3740, 24
        %v3872 = vpop.permute.xlu0 %3871
        %3873 = vrot.lane.b32.xlu0 %v3742, 24
        %v3874 = vpop.permute.xlu0 %3873
        %3875 = vrot.lane.b32.xlu0 %v3744, 24
        %v3876 = vpop.permute.xlu0 %3875
        %3877 = vrot.lane.b32.xlu0 %v3746, 24
        %v3878 = vpop.permute.xlu0 %3877
        %3879 = vrot.lane.b32.xlu0 %v3748, 24
        %v3880 = vpop.permute.xlu0 %3879
        %3881 = vrot.lane.b32.xlu0 %v3750, 24
        %v3882 = vpop.permute.xlu0 %3881
        %3883 = vrot.lane.b32.xlu0 %v3752, 24
        %v3884 = vpop.permute.xlu0 %3883
        %v3894 = vrot.slane %v3752, 1
        %v3895 = vrot.slane %v3753, 1
        %v3896 = vsel %vm446, %v3894, %v3895
        %3897 = vrot.lane.b32.xlu0 %v3777, 32
        %v3898 = vpop.permute.xlu0 %3897
        %3899 = vrot.lane.b32.xlu0 %v3780, 32
        %v3900 = vpop.permute.xlu0 %3899
        %3901 = vrot.lane.b32.xlu0 %v3783, 32
        %v3902 = vpop.permute.xlu0 %3901
        %3903 = vrot.lane.b32.xlu0 %v3786, 32
        %v3904 = vpop.permute.xlu0 %3903
        %3905 = vrot.lane.b32.xlu0 %v3789, 32
        %v3906 = vpop.permute.xlu0 %3905
        %3907 = vrot.lane.b32.xlu0 %v3792, 32
        %v3908 = vpop.permute.xlu0 %3907
        %3909 = vrot.lane.b32.xlu0 %v3795, 32
        %v3910 = vpop.permute.xlu0 %3909
        %3911 = vrot.lane.b32.xlu0 %v3896, 32
        %v3912 = vpop.permute.xlu0 %3911
        %v3921 = vrot.slane %v3752, 2
        %v3922 = vrot.slane %v3753, 2
        %v3923 = vsel %vm623, %v3921, %v3922
        %3924 = vrot.lane.b32.xlu0 %v3825, 40
        %v3925 = vpop.permute.xlu0 %3924
        %3926 = vrot.lane.b32.xlu0 %v3828, 40
        %v3927 = vpop.permute.xlu0 %3926
        %3928 = vrot.lane.b32.xlu0 %v3831, 40
        %v3929 = vpop.permute.xlu0 %3928
        %3930 = vrot.lane.b32.xlu0 %v3834, 40
        %v3931 = vpop.permute.xlu0 %3930
        %3932 = vrot.lane.b32.xlu0 %v3837, 40
        %v3933 = vpop.permute.xlu0 %3932
        %3934 = vrot.lane.b32.xlu0 %v3840, 40
        %v3935 = vpop.permute.xlu0 %3934
        %3936 = vrot.lane.b32.xlu0 %v3843, 40
        %v3937 = vpop.permute.xlu0 %3936
        %3938 = vrot.lane.b32.xlu0 %v3923, 40
        %v3939 = vpop.permute.xlu0 %3938
        %3949 = vrot.lane.b32.xlu0 %v3740, 48
        %v3950 = vpop.permute.xlu0 %3949
        %3951 = vrot.lane.b32.xlu0 %v3742, 48
        %v3952 = vpop.permute.xlu0 %3951
        %3953 = vrot.lane.b32.xlu0 %v3744, 48
        %v3954 = vpop.permute.xlu0 %3953
        %3955 = vrot.lane.b32.xlu0 %v3746, 48
        %v3956 = vpop.permute.xlu0 %3955
        %3957 = vrot.lane.b32.xlu0 %v3748, 48
        %v3958 = vpop.permute.xlu0 %3957
        %3959 = vrot.lane.b32.xlu0 %v3750, 48
        %v3960 = vpop.permute.xlu0 %3959
        %3961 = vrot.lane.b32.xlu0 %v3752, 48
        %v3962 = vpop.permute.xlu0 %3961
        %3963 = vrot.lane.b32.xlu0 %v3754, 48
        %v3964 = vpop.permute.xlu0 %3963
        %v3974 = vrot.slane %v3754, 1
        %v3975 = vrot.slane %v3755, 1
        %v3976 = vsel %vm446, %v3974, %v3975
        %3977 = vrot.lane.b32.xlu0 %v3780, 56
        %v3978 = vpop.permute.xlu0 %3977
        %3979 = vrot.lane.b32.xlu0 %v3783, 56
        %v3980 = vpop.permute.xlu0 %3979
        %3981 = vrot.lane.b32.xlu0 %v3786, 56
        %v3982 = vpop.permute.xlu0 %3981
        %3983 = vrot.lane.b32.xlu0 %v3789, 56
        %v3984 = vpop.permute.xlu0 %3983
        %3985 = vrot.lane.b32.xlu0 %v3792, 56
        %v3986 = vpop.permute.xlu0 %3985
        %3987 = vrot.lane.b32.xlu0 %v3795, 56
        %v3988 = vpop.permute.xlu0 %3987
        %3989 = vrot.lane.b32.xlu0 %v3896, 56
        %v3990 = vpop.permute.xlu0 %3989
        %3991 = vrot.lane.b32.xlu0 %v3976, 56
        %v3992 = vpop.permute.xlu0 %3991
        %v4001 = vrot.slane %v3754, 2
        %v4002 = vrot.slane %v3755, 2
        %v4003 = vsel %vm623, %v4001, %v4002
        %4004 = vrot.lane.b32.xlu0 %v3828, 64
        %v4005 = vpop.permute.xlu0 %4004
        %4006 = vrot.lane.b32.xlu0 %v3831, 64
        %v4007 = vpop.permute.xlu0 %4006
        %4008 = vrot.lane.b32.xlu0 %v3834, 64
        %v4009 = vpop.permute.xlu0 %4008
        %4010 = vrot.lane.b32.xlu0 %v3837, 64
        %v4011 = vpop.permute.xlu0 %4010
        %4012 = vrot.lane.b32.xlu0 %v3840, 64
        %v4013 = vpop.permute.xlu0 %4012
        %4014 = vrot.lane.b32.xlu0 %v3843, 64
        %v4015 = vpop.permute.xlu0 %4014
        %4016 = vrot.lane.b32.xlu0 %v3923, 64
        %v4017 = vpop.permute.xlu0 %4016
        %4018 = vrot.lane.b32.xlu0 %v4003, 64
        %v4019 = vpop.permute.xlu0 %4018
        %v4028 = vsel %vm1434, %v3736, %v3797
        %v4029 = vsel %vm1434, %v3738, %v3799
        %v4030 = vsel %vm1434, %v3740, %v3801
        %v4031 = vsel %vm1434, %v3742, %v3803
        %v4032 = vsel %vm1434, %v3744, %v3805
        %v4033 = vsel %vm1434, %v3746, %v3807
        %v4034 = vsel %vm1434, %v3748, %v3809
        %v4035 = vsel %vm1434, %v3750, %v3811
        %v4036 = vsel %vm1500, %v4028, %v3845
        %v4037 = vsel %vm1500, %v4029, %v3847
        %v4038 = vsel %vm1500, %v4030, %v3849
        %v4039 = vsel %vm1500, %v4031, %v3851
        %v4040 = vsel %vm1500, %v4032, %v3853
        %v4041 = vsel %vm1500, %v4033, %v3855
        %v4042 = vsel %vm1500, %v4034, %v3857
        %v4043 = vsel %vm1500, %v4035, %v3859
        %v4044 = vsel %vm1566, %v4036, %v3870
        %v4045 = vsel %vm1566, %v4037, %v3872
        %v4046 = vsel %vm1566, %v4038, %v3874
        %v4047 = vsel %vm1566, %v4039, %v3876
        %v4048 = vsel %vm1566, %v4040, %v3878
        %v4049 = vsel %vm1566, %v4041, %v3880
        %v4050 = vsel %vm1566, %v4042, %v3882
        %v4051 = vsel %vm1566, %v4043, %v3884
        %v4052 = vsel %vm1632, %v4044, %v3898
        %v4053 = vsel %vm1632, %v4045, %v3900
        %v4054 = vsel %vm1632, %v4046, %v3902
        %v4055 = vsel %vm1632, %v4047, %v3904
        %v4056 = vsel %vm1632, %v4048, %v3906
        %v4057 = vsel %vm1632, %v4049, %v3908
        %v4058 = vsel %vm1632, %v4050, %v3910
        %v4059 = vsel %vm1632, %v4051, %v3912
        %vm4060 = vcmask 326656
        %v4061 = vsel %vm4060, %v4052, %v3925
        %v4062 = vsel %vm4060, %v4053, %v3927
        %v4063 = vsel %vm4060, %v4054, %v3929
        %v4064 = vsel %vm4060, %v4055, %v3931
        %v4065 = vsel %vm4060, %v4056, %v3933
        %v4066 = vsel %vm4060, %v4057, %v3935
        %v4067 = vsel %vm4060, %v4058, %v3937
        %v4068 = vsel %vm4060, %v4059, %v3939
        %vm4069 = vcmask 392192
        %v4070 = vsel %vm4069, %v4061, %v3950
        %v4071 = vsel %vm4069, %v4062, %v3952
        %v4072 = vsel %vm4069, %v4063, %v3954
        %v4073 = vsel %vm4069, %v4064, %v3956
        %v4074 = vsel %vm4069, %v4065, %v3958
        %v4075 = vsel %vm4069, %v4066, %v3960
        %v4076 = vsel %vm4069, %v4067, %v3962
        %v4077 = vsel %vm4069, %v4068, %v3964
        %vm4078 = vcmask 457728
        %v4079 = vsel %vm4078, %v4070, %v3978
        %v4080 = vsel %vm4078, %v4071, %v3980
        %v4081 = vsel %vm4078, %v4072, %v3982
        %v4082 = vsel %vm4078, %v4073, %v3984
        %v4083 = vsel %vm4078, %v4074, %v3986
        %v4084 = vsel %vm4078, %v4075, %v3988
        %v4085 = vsel %vm4078, %v4076, %v3990
        %v4086 = vsel %vm4078, %v4077, %v3992
        %vm4087 = vcmask 523264
        %v4088 = vsel %vm4087, %v4079, %v4005
        %v4089 = vsel %vm4087, %v4080, %v4007
        %v4090 = vsel %vm4087, %v4081, %v4009
        %v4091 = vsel %vm4087, %v4082, %v4011
        %v4092 = vsel %vm4087, %v4083, %v4013
        %v4093 = vsel %vm4087, %v4084, %v4015
        %v4094 = vsel %vm4087, %v4085, %v4017
        %v4095 = vsel %vm4087, %v4086, %v4019
        %v4096 = vld [vmem:[%s3] sm:$0xff]
        %v4097 = vld [vmem:[%s3 + $0x8] sm:$0xff]
        %v4098 = vld [vmem:[%s3 + $0x10] sm:$0xff]
        %v4099 = vld [vmem:[%s3 + $0x18] sm:$0xff]
        %v4100 = vld [vmem:[%s3 + $0x20] sm:$0xff]
        %v4101 = vld [vmem:[%s3 + $0x28] sm:$0xff]
        %v4102 = vld [vmem:[%s3 + $0x30] sm:$0xff]
        %v4103 = vld [vmem:[%s3 + $0x38] sm:$0xff]
        %v4104 = vld [vmem:[%s3 + $0x40] sm:$0xff]
        %v4105 = vld [vmem:[%s4] sm:$0x1]
        %v4107 = vlaneseq
        %v4108 = vshrl.u32 %v4107, 7
        %v4109 = vsub.s32 0, %v4108
        %v4110 = vrot.slane %v4105, %v4109
        %vm4112 = vcmask 588800
        %v4114 = vsel %vm4112, %v4088, 0
        %v4117 = vsel %vm4112, %v4089, 0
        %v4120 = vsel %vm4112, %v4090, 0
        %v4123 = vsel %vm4112, %v4091, 0
        %v4126 = vsel %vm4112, %v4092, 0
        %v4129 = vsel %vm4112, %v4093, 0
        %v4132 = vsel %vm4112, %v4094, 0
        %v4135 = vsel %vm4112, %v4095, 0
        %4137 = vmatprep.subr.mxu0 0.0
        %4138 = vmatpush1.msra.mxu0 0.0
        %4139 = vmatprep.subr.mxu0 0.0
        %4140 = vmatpush1.msra.mxu0 0.0
        %4141 = vmatprep.subr.mxu0 0.0
        %4142 = vmatpush1.msra.mxu0 0.0
        %4143 = vmatprep.subr.mxu0 0.0
        %4144 = vmatpush1.msra.mxu0 0.0
        %4145 = vmatprep.subr.mxu0 0.0
        %4146 = vmatpush1.msra.mxu0 0.0
        %4147 = vmatprep.subr.mxu0 0.0
        %4148 = vmatpush1.msra.mxu0 0.0
        %4149 = vmatprep.subr.mxu0 0.0
        %4150 = vmatpush1.msra.mxu0 0.0
        %4151 = vmatprep.subr.mxu0 0.0
        %4152 = vmatpush1.msra.mxu0 %v4104
        %4153 = vmatprep.subr.mxu0 0.0
        %4154 = vmatpush1.msra.mxu0 %v4103
        %4155 = vmatprep.subr.mxu0 0.0
        %4156 = vmatpush1.msra.mxu0 %v4102
        %4157 = vmatprep.subr.mxu0 0.0
        %4158 = vmatpush1.msra.mxu0 %v4101
        %4159 = vmatprep.subr.mxu0 0.0
        %4160 = vmatpush1.msra.mxu0 %v4100
        %4161 = vmatprep.subr.mxu0 0.0
        %4162 = vmatpush1.msra.mxu0 %v4099
        %4163 = vmatprep.subr.mxu0 0.0
        %4164 = vmatpush1.msra.mxu0 %v4098
        %4165 = vmatprep.subr.mxu0 0.0
        %4166 = vmatpush1.msra.mxu0 %v4097
        %4167 = vmatprep.subr.mxu0 0.0
        %4168 = vmatpush1.msra.mxu0 %v4096
        %4169 = vmatprep.subr.mxu0 0.0
        %4170 = vmatpush2.msra.mxu0 0.0
        %4171 = vmatprep.subr.mxu0 0.0
        %4172 = vmatpush2.msra.mxu0 0.0
        %4173 = vmatprep.subr.mxu0 0.0
        %4174 = vmatpush2.msra.mxu0 0.0
        %4175 = vmatprep.subr.mxu0 0.0
        %4176 = vmatpush2.msra.mxu0 0.0
        %4177 = vmatprep.subr.mxu0 0.0
        %4178 = vmatpush2.msra.mxu0 0.0
        %4179 = vmatprep.subr.mxu0 0.0
        %4180 = vmatpush2.msra.mxu0 0.0
        %4181 = vmatprep.subr.mxu0 0.0
        %4182 = vmatpush2.msra.mxu0 0.0
        %4183 = vmatprep.subr.mxu0 0.0
        %4184 = vmatpush2.msra.mxu0 0.0
        %4185 = vmatprep.subr.mxu0 0.0
        %4186 = vmatpush2.msra.mxu0 0.0
        %4187 = vmatprep.subr.mxu0 0.0
        %4188 = vmatpush2.msra.mxu0 0.0
        %4189 = vmatprep.subr.mxu0 0.0
        %4190 = vmatpush2.msra.mxu0 0.0
        %4191 = vmatprep.subr.mxu0 0.0
        %4192 = vmatpush2.msra.mxu0 0.0
        %4193 = vmatprep.subr.mxu0 0.0
        %4194 = vmatpush2.msra.mxu0 0.0
        %4195 = vmatprep.subr.mxu0 0.0
        %4196 = vmatpush2.msra.mxu0 0.0
        %4197 = vmatprep.subr.mxu0 0.0
        %4198 = vmatpush2.msra.mxu0 0.0
        %4199 = vmatprep.subr.mxu0 0.0
        %4200 = vmatpush2.msra.mxu0 0.0
        %4201 = vmatprep.mubr.f32.mxu0 0.0
        %4202 = vmatmul.mubr.f32.gmra.mxu0 %v4114
        %v4203 = vpop.f32.mrf.mxu0
        %v4204 = vadd.f32 %v4110, %v4203
        %v4205 = vpop.f32.mrf.mxu0
        %4206 = vmatprep.mubr.f32.mxu0 0.0
        %4207 = vmatmul.mubr.f32.gmra.mxu0 %v4117
        %v4208 = vpop.f32.mrf.mxu0
        %v4209 = vadd.f32 %v4110, %v4208
        %v4210 = vpop.f32.mrf.mxu0
        %4211 = vmatprep.mubr.f32.mxu0 0.0
        %4212 = vmatmul.mubr.f32.gmra.mxu0 %v4120
        %v4213 = vpop.f32.mrf.mxu0
        %v4214 = vadd.f32 %v4110, %v4213
        %v4215 = vpop.f32.mrf.mxu0
        %4216 = vmatprep.mubr.f32.mxu0 0.0
        %4217 = vmatmul.mubr.f32.gmra.mxu0 %v4123
        %v4218 = vpop.f32.mrf.mxu0
        %v4219 = vadd.f32 %v4110, %v4218
        %v4220 = vpop.f32.mrf.mxu0
        %4221 = vmatprep.mubr.f32.mxu0 0.0
        %4222 = vmatmul.mubr.f32.gmra.mxu0 %v4126
        %v4223 = vpop.f32.mrf.mxu0
        %v4224 = vadd.f32 %v4110, %v4223
        %v4225 = vpop.f32.mrf.mxu0
        %4226 = vmatprep.mubr.f32.mxu0 0.0
        %4227 = vmatmul.mubr.f32.gmra.mxu0 %v4129
        %v4228 = vpop.f32.mrf.mxu0
        %v4229 = vadd.f32 %v4110, %v4228
        %v4230 = vpop.f32.mrf.mxu0
        %4231 = vmatprep.mubr.f32.mxu0 0.0
        %4232 = vmatmul.mubr.f32.gmra.mxu0 %v4132
        %v4233 = vpop.f32.mrf.mxu0
        %v4234 = vadd.f32 %v4110, %v4233
        %v4235 = vpop.f32.mrf.mxu0
        %4236 = vmatprep.mubr.f32.mxu0 0.0
        %4237 = vmatmul.mubr.f32.gmra.mxu0 %v4135
        %v4238 = vpop.f32.mrf.mxu0
        %v4239 = vadd.f32 %v4110, %v4238
        %v4240 = vpop.f32.mrf.mxu0
        %4241 = vdwg.mxu0
        %v4242 = vtanh.pop %v4204
        %v4243 = vtanh.pop %v4209
        %v4244 = vtanh.pop %v4214
        %v4245 = vtanh.pop %v4219
        %v4246 = vtanh.pop %v4224
        %v4247 = vtanh.pop %v4229
        %v4248 = vtanh.pop %v4234
        %v4249 = vtanh.pop %v4239
        %v4258 = vcombine.high %v4242, %v4242
        %v4260 = vunpack.c.l.s4 1983009808
        %v4261 = vunpack.c.0.s8 %v4260
        %v4262 = vlaneseq
        %v4263 = vshrl.u32 %v4262, 7
        %v4264 = vsub.s32 %v4261, %v4263
        %v4265 = vrot.slane %v4242, %v4264
        %v4267 = vunpack.c.l.s4 1983009808
        %v4268 = vunpack.c.0.s8 %v4267
        %v4269 = vlaneseq
        %v4270 = vshrl.u32 %v4269, 7
        %v4271 = vsub.s32 %v4268, %v4270
        %v4272 = vrot.slane %v4258, %v4271
        %v4273 = vcombine.high %v4265, %v4265
        %v4274 = vcombine.high %v4272, %v4272
        %v4275 = vcombine.high %v4243, %v4243
        %v4277 = vunpack.c.l.s4 1983009808
        %v4278 = vunpack.c.0.s8 %v4277
        %v4279 = vlaneseq
        %v4280 = vshrl.u32 %v4279, 7
        %v4281 = vsub.s32 %v4278, %v4280
        %v4282 = vrot.slane %v4243, %v4281
        %v4284 = vunpack.c.l.s4 1983009808
        %v4285 = vunpack.c.0.s8 %v4284
        %v4286 = vlaneseq
        %v4287 = vshrl.u32 %v4286, 7
        %v4288 = vsub.s32 %v4285, %v4287
        %v4289 = vrot.slane %v4275, %v4288
        %v4290 = vcombine.high %v4282, %v4282
        %v4291 = vcombine.high %v4289, %v4289
        %v4292 = vcombine.high %v4244, %v4244
        %v4294 = vunpack.c.l.s4 1983009808
        %v4295 = vunpack.c.0.s8 %v4294
        %v4296 = vlaneseq
        %v4297 = vshrl.u32 %v4296, 7
        %v4298 = vsub.s32 %v4295, %v4297
        %v4299 = vrot.slane %v4244, %v4298
        %v4301 = vunpack.c.l.s4 1983009808
        %v4302 = vunpack.c.0.s8 %v4301
        %v4303 = vlaneseq
        %v4304 = vshrl.u32 %v4303, 7
        %v4305 = vsub.s32 %v4302, %v4304
        %v4306 = vrot.slane %v4292, %v4305
        %v4307 = vcombine.high %v4299, %v4299
        %v4308 = vcombine.high %v4306, %v4306
        %v4309 = vcombine.high %v4245, %v4245
        %v4311 = vunpack.c.l.s4 1983009808
        %v4312 = vunpack.c.0.s8 %v4311
        %v4313 = vlaneseq
        %v4314 = vshrl.u32 %v4313, 7
        %v4315 = vsub.s32 %v4312, %v4314
        %v4316 = vrot.slane %v4245, %v4315
        %v4318 = vunpack.c.l.s4 1983009808
        %v4319 = vunpack.c.0.s8 %v4318
        %v4320 = vlaneseq
        %v4321 = vshrl.u32 %v4320, 7
        %v4322 = vsub.s32 %v4319, %v4321
        %v4323 = vrot.slane %v4309, %v4322
        %v4324 = vcombine.high %v4316, %v4316
        %v4325 = vcombine.high %v4323, %v4323
        %v4326 = vcombine.high %v4246, %v4246
        %v4328 = vunpack.c.l.s4 1983009808
        %v4329 = vunpack.c.0.s8 %v4328
        %v4330 = vlaneseq
        %v4331 = vshrl.u32 %v4330, 7
        %v4332 = vsub.s32 %v4329, %v4331
        %v4333 = vrot.slane %v4246, %v4332
        %v4335 = vunpack.c.l.s4 1983009808
        %v4336 = vunpack.c.0.s8 %v4335
        %v4337 = vlaneseq
        %v4338 = vshrl.u32 %v4337, 7
        %v4339 = vsub.s32 %v4336, %v4338
        %v4340 = vrot.slane %v4326, %v4339
        %v4341 = vcombine.high %v4333, %v4333
        %v4342 = vcombine.high %v4340, %v4340
        %v4343 = vcombine.high %v4247, %v4247
        %v4345 = vunpack.c.l.s4 1983009808
        %v4346 = vunpack.c.0.s8 %v4345
        %v4347 = vlaneseq
        %v4348 = vshrl.u32 %v4347, 7
        %v4349 = vsub.s32 %v4346, %v4348
        %v4350 = vrot.slane %v4247, %v4349
        %v4352 = vunpack.c.l.s4 1983009808
        %v4353 = vunpack.c.0.s8 %v4352
        %v4354 = vlaneseq
        %v4355 = vshrl.u32 %v4354, 7
        %v4356 = vsub.s32 %v4353, %v4355
        %v4357 = vrot.slane %v4343, %v4356
        %v4358 = vcombine.high %v4350, %v4350
        %v4359 = vcombine.high %v4357, %v4357
        %v4360 = vcombine.high %v4248, %v4248
        %v4362 = vunpack.c.l.s4 1983009808
        %v4363 = vunpack.c.0.s8 %v4362
        %v4364 = vlaneseq
        %v4365 = vshrl.u32 %v4364, 7
        %v4366 = vsub.s32 %v4363, %v4365
        %v4367 = vrot.slane %v4248, %v4366
        %v4369 = vunpack.c.l.s4 1983009808
        %v4370 = vunpack.c.0.s8 %v4369
        %v4371 = vlaneseq
        %v4372 = vshrl.u32 %v4371, 7
        %v4373 = vsub.s32 %v4370, %v4372
        %v4374 = vrot.slane %v4360, %v4373
        %v4375 = vcombine.high %v4367, %v4367
        %v4376 = vcombine.high %v4374, %v4374
        %v4377 = vcombine.high %v4249, %v4249
        %v4379 = vunpack.c.l.s4 1983009808
        %v4380 = vunpack.c.0.s8 %v4379
        %v4381 = vlaneseq
        %v4382 = vshrl.u32 %v4381, 7
        %v4383 = vsub.s32 %v4380, %v4382
        %v4384 = vrot.slane %v4249, %v4383
        %v4386 = vunpack.c.l.s4 1983009808
        %v4387 = vunpack.c.0.s8 %v4386
        %v4388 = vlaneseq
        %v4389 = vshrl.u32 %v4388, 7
        %v4390 = vsub.s32 %v4387, %v4389
        %v4391 = vrot.slane %v4377, %v4390
        %v4392 = vcombine.high %v4384, %v4384
        %v4393 = vcombine.high %v4391, %v4391
        %v4426 = vrot.slane %v4265, 7
        %v4427 = vrot.slane %v4426, 2
        %v4428 = vrot.slane %v4273, 7
        %v4429 = vrot.slane %v4428, 2
        %v4430 = vrot.slane %v4272, 7
        %v4431 = vrot.slane %v4430, 2
        %v4432 = vrot.slane %v4274, 7
        %v4433 = vrot.slane %v4432, 2
        %v4434 = vrot.slane %v4299, 7
        %v4435 = vrot.slane %v4434, 2
        %v4436 = vrot.slane %v4307, 7
        %v4437 = vrot.slane %v4436, 2
        %v4438 = vrot.slane %v4306, 7
        %v4439 = vrot.slane %v4438, 2
        %v4440 = vrot.slane %v4308, 7
        %v4441 = vrot.slane %v4440, 2
        %v4442 = vrot.slane %v4333, 7
        %v4443 = vrot.slane %v4442, 2
        %v4444 = vrot.slane %v4341, 7
        %v4445 = vrot.slane %v4444, 2
        %v4446 = vrot.slane %v4340, 7
        %v4447 = vrot.slane %v4446, 2
        %v4448 = vrot.slane %v4342, 7
        %v4449 = vrot.slane %v4448, 2
        %v4450 = vrot.slane %v4367, 7
        %v4451 = vrot.slane %v4450, 2
        %v4452 = vrot.slane %v4375, 7
        %v4453 = vrot.slane %v4452, 2
        %v4454 = vrot.slane %v4374, 7
        %v4455 = vrot.slane %v4454, 2
        %v4456 = vrot.slane %v4376, 7
        %v4457 = vrot.slane %v4456, 2
        %v4474 = vmax.f32 %v4265, %v4427
        %v4475 = vmax.f32 %v4273, %v4429
        %v4476 = vmax.f32 %v4272, %v4431
        %v4477 = vmax.f32 %v4274, %v4433
        %v4478 = vmax.f32 %v4299, %v4435
        %v4479 = vmax.f32 %v4307, %v4437
        %v4480 = vmax.f32 %v4306, %v4439
        %v4481 = vmax.f32 %v4308, %v4441
        %v4482 = vmax.f32 %v4333, %v4443
        %v4483 = vmax.f32 %v4341, %v4445
        %v4484 = vmax.f32 %v4340, %v4447
        %v4485 = vmax.f32 %v4342, %v4449
        %v4486 = vmax.f32 %v4367, %v4451
        %v4487 = vmax.f32 %v4375, %v4453
        %v4488 = vmax.f32 %v4374, %v4455
        %v4489 = vmax.f32 %v4376, %v4457
        %v4490 = vrot.slane %v4282, 7
        %v4491 = vrot.slane %v4490, 2
        %v4492 = vrot.slane %v4290, 7
        %v4493 = vrot.slane %v4492, 2
        %v4494 = vrot.slane %v4289, 7
        %v4495 = vrot.slane %v4494, 2
        %v4496 = vrot.slane %v4291, 7
        %v4497 = vrot.slane %v4496, 2
        %v4498 = vrot.slane %v4316, 7
        %v4499 = vrot.slane %v4498, 2
        %v4500 = vrot.slane %v4324, 7
        %v4501 = vrot.slane %v4500, 2
        %v4502 = vrot.slane %v4323, 7
        %v4503 = vrot.slane %v4502, 2
        %v4504 = vrot.slane %v4325, 7
        %v4505 = vrot.slane %v4504, 2
        %v4506 = vrot.slane %v4350, 7
        %v4507 = vrot.slane %v4506, 2
        %v4508 = vrot.slane %v4358, 7
        %v4509 = vrot.slane %v4508, 2
        %v4510 = vrot.slane %v4357, 7
        %v4511 = vrot.slane %v4510, 2
        %v4512 = vrot.slane %v4359, 7
        %v4513 = vrot.slane %v4512, 2
        %v4514 = vrot.slane %v4384, 7
        %v4515 = vrot.slane %v4514, 2
        %v4516 = vrot.slane %v4392, 7
        %v4517 = vrot.slane %v4516, 2
        %v4518 = vrot.slane %v4391, 7
        %v4519 = vrot.slane %v4518, 2
        %v4520 = vrot.slane %v4393, 7
        %v4521 = vrot.slane %v4520, 2
        %v4538 = vmax.f32 %v4282, %v4491
        %v4539 = vmax.f32 %v4290, %v4493
        %v4540 = vmax.f32 %v4289, %v4495
        %v4541 = vmax.f32 %v4291, %v4497
        %v4542 = vmax.f32 %v4316, %v4499
        %v4543 = vmax.f32 %v4324, %v4501
        %v4544 = vmax.f32 %v4323, %v4503
        %v4545 = vmax.f32 %v4325, %v4505
        %v4546 = vmax.f32 %v4350, %v4507
        %v4547 = vmax.f32 %v4358, %v4509
        %v4548 = vmax.f32 %v4357, %v4511
        %v4549 = vmax.f32 %v4359, %v4513
        %v4550 = vmax.f32 %v4384, %v4515
        %v4551 = vmax.f32 %v4392, %v4517
        %v4552 = vmax.f32 %v4391, %v4519
        %v4553 = vmax.f32 %v4393, %v4521
        %v4554 = vmax.f32 %v4474, %v4538
        %v4555 = vmax.f32 %v4475, %v4539
        %v4556 = vmax.f32 %v4476, %v4540
        %v4557 = vmax.f32 %v4477, %v4541
        %v4558 = vmax.f32 %v4478, %v4542
        %v4559 = vmax.f32 %v4479, %v4543
        %v4560 = vmax.f32 %v4480, %v4544
        %v4561 = vmax.f32 %v4481, %v4545
        %v4562 = vmax.f32 %v4482, %v4546
        %v4563 = vmax.f32 %v4483, %v4547
        %v4564 = vmax.f32 %v4484, %v4548
        %v4565 = vmax.f32 %v4485, %v4549
        %v4566 = vmax.f32 %v4486, %v4550
        %v4567 = vmax.f32 %v4487, %v4551
        %v4568 = vmax.f32 %v4488, %v4552
        %v4569 = vmax.f32 %v4489, %v4553
        %v4586 = vsel %vm3662, %v4554, %v4554
        %v4587 = vsel %vm3666, %v4554, %v4586
        %v4588 = vrot.slane %v4555, 7
        %v4589 = vsel %vm3656, %v4588, %v4587
        %v4590 = vsel %vm3660, %v4588, %v4589
        %v4591 = vsel %vm3664, %v4588, %v4590
        %v4592 = vsel %vm3668, %v4588, %v4591
        %v4593 = vsel %vm3662, %v4556, %v4556
        %v4594 = vsel %vm3666, %v4556, %v4593
        %v4595 = vrot.slane %v4557, 7
        %v4596 = vsel %vm3656, %v4595, %v4594
        %v4597 = vsel %vm3660, %v4595, %v4596
        %v4598 = vsel %vm3664, %v4595, %v4597
        %v4599 = vsel %vm3668, %v4595, %v4598
        %v4600 = vsel %vm3662, %v4558, %v4558
        %v4601 = vsel %vm3666, %v4558, %v4600
        %v4602 = vrot.slane %v4559, 7
        %v4603 = vsel %vm3656, %v4602, %v4601
        %v4604 = vsel %vm3660, %v4602, %v4603
        %v4605 = vsel %vm3664, %v4602, %v4604
        %v4606 = vsel %vm3668, %v4602, %v4605
        %v4607 = vsel %vm3662, %v4560, %v4560
        %v4608 = vsel %vm3666, %v4560, %v4607
        %v4609 = vrot.slane %v4561, 7
        %v4610 = vsel %vm3656, %v4609, %v4608
        %v4611 = vsel %vm3660, %v4609, %v4610
        %v4612 = vsel %vm3664, %v4609, %v4611
        %v4613 = vsel %vm3668, %v4609, %v4612
        %v4614 = vsel %vm3662, %v4562, %v4562
        %v4615 = vsel %vm3666, %v4562, %v4614
        %v4616 = vrot.slane %v4563, 7
        %v4617 = vsel %vm3656, %v4616, %v4615
        %v4618 = vsel %vm3660, %v4616, %v4617
        %v4619 = vsel %vm3664, %v4616, %v4618
        %v4620 = vsel %vm3668, %v4616, %v4619
        %v4621 = vsel %vm3662, %v4564, %v4564
        %v4622 = vsel %vm3666, %v4564, %v4621
        %v4623 = vrot.slane %v4565, 7
        %v4624 = vsel %vm3656, %v4623, %v4622
        %v4625 = vsel %vm3660, %v4623, %v4624
        %v4626 = vsel %vm3664, %v4623, %v4625
        %v4627 = vsel %vm3668, %v4623, %v4626
        %v4628 = vsel %vm3662, %v4566, %v4566
        %v4629 = vsel %vm3666, %v4566, %v4628
        %v4630 = vrot.slane %v4567, 7
        %v4631 = vsel %vm3656, %v4630, %v4629
        %v4632 = vsel %vm3660, %v4630, %v4631
        %v4633 = vsel %vm3664, %v4630, %v4632
        %v4634 = vsel %vm3668, %v4630, %v4633
        %v4635 = vsel %vm3662, %v4568, %v4568
        %v4636 = vsel %vm3666, %v4568, %v4635
        %v4637 = vrot.slane %v4569, 7
        %v4638 = vsel %vm3656, %v4637, %v4636
        %v4639 = vsel %vm3660, %v4637, %v4638
        %v4640 = vsel %vm3664, %v4637, %v4639
        %v4641 = vsel %vm3668, %v4637, %v4640
        %v4650 = vcombine.low %v4592, %v4606
        %v4652 = vunpack.c.l.s4 1934713408
        %v4653 = vunpack.c.0.s8 %v4652
        %v4654 = vlaneseq
        %v4655 = vshrl.u32 %v4654, 7
        %v4656 = vsub.s32 %v4653, %v4655
        %v4657 = vrot.slane %v4650, %v4656
        %v4658 = vcombine.high %v4657, 0.0
        %v4659 = vcombine.low %v4620, %v4634
        %v4661 = vunpack.c.l.s4 1934713408
        %v4662 = vunpack.c.0.s8 %v4661
        %v4663 = vlaneseq
        %v4664 = vshrl.u32 %v4663, 7
        %v4665 = vsub.s32 %v4662, %v4664
        %v4666 = vrot.slane %v4659, %v4665
        %v4667 = vcombine.high %v4666, 0.0
        %v4668 = vcombine.low %v4599, %v4613
        %v4670 = vunpack.c.l.s4 1934713408
        %v4671 = vunpack.c.0.s8 %v4670
        %v4672 = vlaneseq
        %v4673 = vshrl.u32 %v4672, 7
        %v4674 = vsub.s32 %v4671, %v4673
        %v4675 = vrot.slane %v4668, %v4674
        %v4676 = vcombine.high %v4675, 0.0
        %v4677 = vcombine.low %v4627, %v4641
        %v4679 = vunpack.c.l.s4 1934713408
        %v4680 = vunpack.c.0.s8 %v4679
        %v4681 = vlaneseq
        %v4682 = vshrl.u32 %v4681, 7
        %v4683 = vsub.s32 %v4680, %v4682
        %v4684 = vrot.slane %v4677, %v4683
        %v4685 = vcombine.high %v4684, 0.0
        %v4688 = vcombine.low %v4657, %v4666
        %v4690 = vunpack.c.l.s4 1983009808
        %v4691 = vunpack.c.0.s8 %v4690
        %v4692 = vlaneseq
        %v4693 = vshrl.u32 %v4692, 7
        %v4694 = vsub.s32 %v4691, %v4693
        %v4695 = vrot.slane %v4688, %v4694
        %v4699 = vcombine.low %v4658, %v4667
        %v4701 = vunpack.c.l.s4 1983009808
        %v4702 = vunpack.c.0.s8 %v4701
        %v4703 = vlaneseq
        %v4704 = vshrl.u32 %v4703, 7
        %v4705 = vsub.s32 %v4702, %v4704
        %v4706 = vrot.slane %v4699, %v4705
        %4707 = vrot.lane.b32.xlu0 %v4706, 32
        %v4708 = vpop.permute.xlu0 %4707
        %v4712 = vcombine.low %v4675, %v4684
        %v4714 = vunpack.c.l.s4 1983009808
        %v4715 = vunpack.c.0.s8 %v4714
        %v4716 = vlaneseq
        %v4717 = vshrl.u32 %v4716, 7
        %v4718 = vsub.s32 %v4715, %v4717
        %v4719 = vrot.slane %v4712, %v4718
        %4720 = vrot.lane.b32.xlu0 %v4719, 64
        %v4721 = vpop.permute.xlu0 %4720
        %v4725 = vcombine.low %v4676, %v4685
        %v4727 = vunpack.c.l.s4 1983009808
        %v4728 = vunpack.c.0.s8 %v4727
        %v4729 = vlaneseq
        %v4730 = vshrl.u32 %v4729, 7
        %v4731 = vsub.s32 %v4728, %v4730
        %v4732 = vrot.slane %v4725, %v4731
        %4733 = vrot.lane.b32.xlu0 %v4732, 96
        %v4734 = vpop.permute.xlu0 %4733
        %v4736 = vsel %vm1632, %v4695, %v4708
        %v4737 = vsel %vm4087, %v4736, %v4721
        %vm4738 = vcmask 785408
        %v4739 = vsel %vm4738, %v4737, %v4734
        %4740 = vst [vmem:[%s217] sm:$0xf] %v4739
        %s4741 = sand.u32 %s137, 1
        %s4742 = scalar_lea.sflag [#allocation5], %s4741
        %s4743 = sand.u32 %s137, 1
        %s4744 = smul.addr %s4743, 4
        %s4745 = scalar_lea.vmem [#allocation4], %s4744
        // Predicated region
        $region41: #{tpu_custom_call.1} parent=39 // pred_check
          %p4746 = pneg %p147
        $region42: #{tpu_custom_call.1} parent=39 // pred_check_branch
          %4748 = sbr.rel (%p4746) target = $region44
        $region43: #{tpu_custom_call.1} parent=39 // pred_region
          %s4750 = ssub.s32 64, 64
          %4751 = vsyncadd %s4742, %s4750
          %s4752 = smul.addr %s19, 64
          %s4753 = scalar_lea.hbm %s5, %s4752
          %s4755 = sshll.u32 %s4745, 4
          %s4756 = int_to_ptr.vmem [resolvable:$true] %s4755
          %4758 = dma.vmem_to_hbm [thread:$0]  %s4756, 64, %s4753, %s4742
        $region44: #{tpu_custom_call.1} parent=39 // pred_fallthru
          _
      $region40: #{tpu_custom_call.1} parent=5 // pred_fallthru
        _
      %p4759 = scmp.le.s32.totalorder 2, %s14
      // Predicated region
      $region45: #{tpu_custom_call.1} parent=5 // pred_check
        %p4760 = pneg %p4759
      $region46: #{tpu_custom_call.1} parent=5 // pred_check_branch
        %4762 = sbr.rel (%p4760) target = $region48
      $region47: #{tpu_custom_call.1} parent=5 // pred_region
        %s4763 = ssub.s32 %s14, 2
        // Predicated region
        $region49: #{tpu_custom_call.1} parent=47 // pred_check
          %p4764 = pneg %p153
        $region50: #{tpu_custom_call.1} parent=47 // pred_check_branch
          %4766 = sbr.rel (%p4764) target = $region52
        $region51: #{tpu_custom_call.1} parent=47 // pred_region
          %s4767 = sand.u32 %s138, 1
          %s4768 = scalar_lea.sflag [#allocation5], %s4767
          %s4769 = sand.u32 %s138, 1
          %s4770 = smul.addr %s4769, 4
          %s4771 = scalar_lea.vmem [#allocation4], %s4770
          %4772 = dma.done %s4768, 64
        $region52: #{tpu_custom_call.1} parent=47 // pred_fallthru
          _
      $region48: #{tpu_custom_call.1} parent=5 // pred_fallthru
        _
    $region6: #{tpu_custom_call.1} parent=1 // loop_footer
      %s18 = sadd.s32 1, %s14
    $region7: #{tpu_custom_call.1} parent=1 // loop_footer_branch
      %13 = sbr.rel target = $region3
    $region8: #{tpu_custom_call.1} parent=1 // loop_exit
      _
    %4773 = vsyncpa [#allocation5], 1
    %s4774 = scalar_lea.sflag [#allocation5], 1
    %4775 = vsyncpa %s4774, 1

</llo_original>
